<compile_context>
chip_gen: v7x
topology: tpu7x:2x2x1
jax: 0.10.0
libtpu: 0.0.40
codegen_flags: <defaults>
</compile_context>

<pallas_src>
import functools

import numpy as np
import jax
import jax.numpy as jnp
from jax.experimental import pallas as pl
from jax.experimental.pallas import tpu as pltpu


# ---------------------------------------------------------------------------
# host-side constant tables (static shapes only)
# ---------------------------------------------------------------------------
def _bilinear_matrix_t(out_h, out_w, in_h, in_w):
    """(in_h*in_w, out_h*out_w) matrix M^T such that  up = feat @ M^T  in
    channel-major (C, HW) layout reproduces
    F.interpolate(mode='bilinear', align_corners=False)."""
    def axis_mat(out_size, in_size):
        m = np.zeros((out_size, in_size), dtype=np.float64)
        if in_size == 1:
            m[:, 0] = 1.0
            return m
        scale = in_size / out_size
        src = (np.arange(out_size, dtype=np.float64) + 0.5) * scale - 0.5
        src = np.clip(src, 0.0, in_size - 1)
        i0 = np.floor(src).astype(np.int64)
        i1 = np.minimum(i0 + 1, in_size - 1)
        frac = src - i0
        for o in range(out_size):
            m[o, i0[o]] += 1.0 - frac[o]
            m[o, i1[o]] += frac[o]
        return m

    full = np.kron(axis_mat(out_h, in_h), axis_mat(out_w, in_w))  # (HWout, HWin)
    return jnp.asarray(full.T.astype(np.float32))                 # (HWin, HWout)


def _conv_tv_masks(H, W):
    """(11, H*W) float masks over pixel index p = y*W + x:
       rows 0..8 : validity of 3x3 conv tap t = ky*3+kx (offset (ky-1, kx-1))
       row  9    : vertical  TV pairs  (y < H-1, partner p+W)
       row 10    : horizontal TV pairs (x < W-1, partner p+1)"""
    ys, xs = np.divmod(np.arange(H * W), W)
    rows = []
    for t in range(9):
        dy, dx = t // 3 - 1, t % 3 - 1
        ok = (ys + dy >= 0) & (ys + dy < H) & (xs + dx >= 0) & (xs + dx < W)
        rows.append(ok)
    rows.append(ys < H - 1)
    rows.append(xs < W - 1)
    return jnp.asarray(np.stack(rows).astype(np.float32))


def _row_wrap_mask(H, W):
    """(1, H*W-1) mask over adjacent-pixel diffs f[p+1]-f[p]; zero where the
    pair wraps a row (x == W-1)."""
    idx = np.arange(H * W - 1)
    return jnp.asarray(((idx % W) != (W - 1)).astype(np.float32)[None, :])


# ---------------------------------------------------------------------------
# Fused SAEmbed kernel (one grid step == one batch image, channel-major)
# ---------------------------------------------------------------------------
def _sa_embed_kernel(
    x1_ref,        # (1, C1, H1*W1)  feat1 (NCHW, spatial flattened)
    x2_ref,        # (1, C,  H2*W2)  feat2
    wp_ref,        # (C, C1)         feat1 1x1 projection (conv2_1x1)
    wcc_ref,       # (4, C, C):      [att1 1x1, att2 1x1, sp_w2, co_w2]
    wmlp_ref,      # (2, C, r*r):    [sp_w1, co_w1]
    bias_ref,      # (C, 9) columns: [bp, ba1, ba2, spb1, spb2, cob1, cob2, ctxb, smb]
    wconv_ref,     # (2, C, 9*C):    [context_head, smooth], K index = tap*C + cin
    mupt_ref,      # (H2*W2, H1*W1)  transposed bilinear matrix
    masks1_ref,    # (11, H1*W1)     conv tap masks + feat1 TV masks
    hmask2_ref,    # (1, H2*W2-1)    feat2 horizontal-TV row-wrap mask
    g_ref,         # (2,) SMEM:      g1, g2
    out_ref,       # (1, C, H1*W1)
    *, H1, W1, H2, W2, r):

    C = wcc_ref.shape[1]
    s = C // r
    HW1 = H1 * W1
    HW2 = H2 * W2

    def bias(k):                       # bias column k as a (C, 1) vector
        return bias_ref[:, k:k + 1]

    # ---- ChannelAtt(feat1): 1x1 projection + TV statistics ------------------
    # TODO(synk): InspiredAtt treated as identity.
    x1 = x1_ref[0]                                                    # (C1, HW1)
    f1 = jnp.dot(wp_ref[...], x1,
                 preferred_element_type=jnp.float32) + bias(0)        # (C, HW1)

    vmask1 = masks1_ref[9:10, :]
    hmask1 = masks1_ref[10:11, :]
    # roll (XLU) instead of offset slices: out[:, p] = f[:, (p+W) % HW] etc.
    vd1 = (pltpu.roll(f1, shift=HW1 - W1, axis=1) - f1) * vmask1
    hd1 = (pltpu.roll(f1, shift=HW1 - 1, axis=1) - f1) * hmask1
    tv1 = (jnp.sum(vd1 * vd1, axis=1, keepdims=True) * (1.0 / float((H1 - 1) * W1))
           + jnp.sum(hd1 * hd1, axis=1, keepdims=True) * (1.0 / float(H1 * (W1 - 1))))
    att1 = jnp.dot(wcc_ref[0], tv1,
                   preferred_element_type=jnp.float32) + bias(1)      # (C, 1)

    # ---- ChannelAtt(feat2): no projection (c == outChannel) -----------------
    f2 = x2_ref[0]                                                    # (C, HW2)
    vd2 = f2[:, W2:] - f2[:, :HW2 - W2]                               # tiny slices
    hd2 = (f2[:, 1:] - f2[:, :HW2 - 1]) * hmask2_ref[...]
    tv2 = (jnp.sum(vd2 * vd2, axis=1, keepdims=True) * (1.0 / float((H2 - 1) * W2))
           + jnp.sum(hd2 * hd2, axis=1, keepdims=True) * (1.0 / float(H2 * (W2 - 1))))
    att2 = jnp.dot(wcc_ref[1], tv2,
                   preferred_element_type=jnp.float32) + bias(2)      # (C, 1)

    # ---- r x r channel affinity + the two 2-layer MLPs ----------------------
    # aff[i, j] = <att1 block i, att2 block j>; flat index i*r + j matches
    # torch's view(b, -1) of bmm(att1_split, att2_split^T).  Each affinity
    # scalar is computed once and fed to both MLP-layer-1 accumulations;
    # r independent partial accumulators keep the serial chain short.
    w_sp1 = wmlp_ref[0]                                               # (C, r*r)
    w_co1 = wmlp_ref[1]
    a2_blk = [att2[j * s:(j + 1) * s, :] for j in range(r)]           # (s, 1) each
    sp_parts, co_parts = [], []
    for i in range(r):
        a1_blk = att1[i * s:(i + 1) * s, :]
        acc_sp = None
        acc_co = None
        for j in range(r):
            aff_ij = jnp.sum(a1_blk * a2_blk[j], axis=0, keepdims=True)  # (1, 1)
            col = i * r + j
            t_sp = aff_ij * w_sp1[:, col:col + 1]
            t_co = aff_ij * w_co1[:, col:col + 1]
            acc_sp = t_sp if acc_sp is None else acc_sp + t_sp
            acc_co = t_co if acc_co is None else acc_co + t_co
        sp_parts.append(acc_sp)
        co_parts.append(acc_co)

    h_sp = jnp.maximum(sum(sp_parts) + bias(3), 0.0)                  # inner ReLU
    h_co = jnp.maximum(sum(co_parts) + bias(5), 0.0)
    sp_out = jnp.maximum(
        jnp.dot(wcc_ref[2], h_sp, preferred_element_type=jnp.float32) + bias(4),
        0.0)                                                          # outer F.relu
    co_out = jnp.maximum(
        jnp.dot(wcc_ref[3], h_co, preferred_element_type=jnp.float32) + bias(6),
        0.0)

    gate1 = jax.nn.sigmoid(att1 + g_ref[0] * sp_out)                  # (C, 1)
    gate2 = jax.nn.sigmoid(att2 + g_ref[1] * co_out)

    att_f1 = f1 * gate1                                               # (C, HW1)
    att_f2 = f2 * gate2                                               # (C, HW2)

    # ---- bilinear upsample of gated feat2: one MXU matmul -------------------
    up2 = jnp.dot(att_f2, mupt_ref[...],
                  preferred_element_type=jnp.float32)                 # (C, HW1)

    # ---- 3x3 convs: roll + mask taps, K-stacked single matmul per conv ------
    def conv3x3(img, w_idx, b_idx):
        taps = []
        for t in range(9):
            dy, dx = t // 3 - 1, t % 3 - 1
            off = dy * W1 + dx
            if off == 0:
                taps.append(img)                                      # center tap
            else:
                sh = pltpu.roll(img, shift=(-off) % HW1, axis=1)
                taps.append(sh * masks1_ref[t:t + 1, :])              # zero padding
        stacked = jnp.concatenate(taps, axis=0)                       # (9C, HW1)
        return jnp.dot(wconv_ref[w_idx], stacked,
                       preferred_element_type=jnp.float32) + bias(b_idx)

    ctx = conv3x3(up2, 0, 7)                       # context_head
    out = conv3x3(att_f1 + ctx, 1, 8)              # smooth
    out_ref[0] = out.astype(out_ref.dtype)


# ---------------------------------------------------------------------------
# SAEmbed forward (wrapper)
# ---------------------------------------------------------------------------
def sa_embed_forward(feat1_nchw, feat2_nchw, p, r):
    B, C1, H1, W1 = feat1_nchw.shape
    _, C, H2, W2 = feat2_nchw.shape
    HW1, HW2 = H1 * W1, H2 * W2

    # channel-major (C, HW): NCHW only needs a free spatial flatten.
    x1 = feat1_nchw.reshape(B, C1, HW1)
    x2 = feat2_nchw.reshape(B, C, HW2)

    # --- pack the many tiny weights/biases into a few kernel operands --------
    # Column orientation (y = W @ x) uses PyTorch's (out, in) layouts directly.
    wp = p["ca1_w_proj"]                                              # (C, C1)
    wcc = jnp.stack([p["ca1_w_att"], p["ca2_w_att"],
                     p["sp_w2"], p["co_w2"]])                         # (4, C, C)
    wmlp = jnp.stack([p["sp_w1"], p["co_w1"]])                        # (2, C, r*r)
    biasp = jnp.stack([p["ca1_b_proj"], p["ca1_b_att"], p["ca2_b_att"],
                       p["sp_b1"], p["sp_b2"], p["co_b1"], p["co_b2"],
                       p["ctx_b"], p["smooth_b"]], axis=1)            # (C, 9)

    def conv_w9(w):   # torch (Cout, Cin, 3, 3) -> (Cout, 9*Cin), K = tap*Cin + ci
        return jnp.transpose(w, (0, 2, 3, 1)).reshape(w.shape[0], 9 * w.shape[1])

    wconv = jnp.stack([conv_w9(p["ctx_w"]), conv_w9(p["smooth_w"])])  # (2, C, 9C)

    mup_t = _bilinear_matrix_t(H1, W1, H2, W2)                        # (HW2, HW1)
    masks1 = _conv_tv_masks(H1, W1)                                   # (11, HW1)
    hmask2 = _row_wrap_mask(H2, W2)                                   # (1, HW2-1)

    def full_spec(arr):
        if arr.ndim == 2:
            return pl.BlockSpec(arr.shape, lambda i: (0, 0))
        return pl.BlockSpec(arr.shape, lambda i: (0, 0, 0))

    in_specs = [
        pl.BlockSpec((1, C1, HW1), lambda i: (i, 0, 0)),
        pl.BlockSpec((1, C, HW2), lambda i: (i, 0, 0)),
        full_spec(wp), full_spec(wcc), full_spec(wmlp), full_spec(biasp),
        full_spec(wconv), full_spec(mup_t), full_spec(masks1), full_spec(hmask2),
        pl.BlockSpec(memory_space=pltpu.MemorySpace.SMEM),            # g1, g2
    ]

    kernel = functools.partial(_sa_embed_kernel, H1=H1, W1=W1, H2=H2, W2=W2, r=r)
    out = pl.pallas_call(
        kernel,
        grid=(B,),
        in_specs=in_specs,
        out_specs=pl.BlockSpec((1, C, HW1), lambda i: (i, 0, 0)),
        out_shape=jax.ShapeDtypeStruct((B, C, HW1), jnp.float32),
        compiler_params=pltpu.CompilerParams(dimension_semantics=("parallel",)),
    )(x1, x2, wp, wcc, wmlp, biasp, wconv, mup_t, masks1, hmask2, p["g"])

    return out.reshape(B, C, H1, W1)                                  # NCHW


# ---------------------------------------------------------------------------
# Main
# ---------------------------------------------------------------------------
if __name__ == "__main__":
    B = 2
    channels = 8          # feat1 input channels
    out_channels = 32     # must be divisible by r
    r = 4
    H1 = W1 = 16          # feat1 spatial size
    H2 = W2 = 8           # feat2 spatial size (upsampled to feat1's size)

    key = jax.random.PRNGKey(0)
    ks = jax.random.split(key, 20)

    def nrm(k, shape, scale=0.1):
        return scale * jax.random.normal(k, shape, dtype=jnp.float32)

    C = out_channels
    # Weights kept in native PyTorch layouts:
    #   Linear / 1x1 conv: (out, in);  3x3 conv: (Cout, Cin, 3, 3);  bias: (out,).
    params = {
        "ca1_w_proj": nrm(ks[0], (C, channels)),      # ChannelAtt(feat1) conv2_1x1
        "ca1_b_proj": nrm(ks[1], (C,), 0.01),
        "ca1_w_att": nrm(ks[2], (C, C)),              # ChannelAtt(feat1) conv_1x1
        "ca1_b_att": nrm(ks[3], (C,), 0.01),
        "ca2_w_att": nrm(ks[4], (C, C)),              # ChannelAtt(feat2) conv_1x1
        "ca2_b_att": nrm(ks[5], (C,), 0.01),
        "sp_w1": nrm(ks[6], (C, r * r)),              # spatial_mlp Linear(r*r, C)
        "sp_b1": nrm(ks[7], (C,), 0.01),
        "sp_w2": nrm(ks[8], (C, C)),                  # spatial_mlp Linear(C, C)
        "sp_b2": nrm(ks[9], (C,), 0.01),
        "co_w1": nrm(ks[10], (C, r * r)),             # context_mlp Linear(r*r, C)
        "co_b1": nrm(ks[11], (C,), 0.01),
        "co_w2": nrm(ks[12], (C, C)),                 # context_mlp Linear(C, C)
        "co_b2": nrm(ks[13], (C,), 0.01),
        "g": jnp.zeros((2,), dtype=jnp.float32),      # g1, g2 (torch.zeros(1) each)
        "ctx_w": nrm(ks[14], (C, C, 3, 3)),           # context_head 3x3
        "ctx_b": nrm(ks[15], (C,), 0.01),
        "smooth_w": nrm(ks[16], (C, C, 3, 3)),        # smooth 3x3
        "smooth_b": nrm(ks[17], (C,), 0.01),
    }

    feat1 = jax.random.normal(ks[18], (B, channels, H1, W1), dtype=jnp.float32)
    feat2 = jax.random.normal(ks[19], (B, out_channels, H2, W2), dtype=jnp.float32)

    fwd = jax.jit(functools.partial(sa_embed_forward, r=r))
    out = jax.block_until_ready(fwd(feat1, feat2, params))
    assert out.shape == (B, out_channels, H1, W1)
    assert bool(jnp.all(jnp.isfinite(out)))
    print("KERNEL_OK")
</pallas_src>

<mosaic_0001>
module attributes {stable_mosaic.version = 11 : i64} {
  func.func @_sa_embed_kernel(%arg0: i32, %arg1: memref<1x8x256xf32, #tpu.memory_space<vmem>>, %arg2: memref<1x32x64xf32, #tpu.memory_space<vmem>>, %arg3: memref<32x8xf32, #tpu.memory_space<vmem>>, %arg4: memref<4x32x32xf32, #tpu.memory_space<vmem>>, %arg5: memref<2x32x16xf32, #tpu.memory_space<vmem>>, %arg6: memref<32x9xf32, #tpu.memory_space<vmem>>, %arg7: memref<2x32x288xf32, #tpu.memory_space<vmem>>, %arg8: memref<64x256xf32, #tpu.memory_space<vmem>>, %arg9: memref<11x256xf32, #tpu.memory_space<vmem>>, %arg10: memref<1x63xf32, #tpu.memory_space<vmem>>, %arg11: memref<2xf32, #tpu.memory_space<smem>>, %arg12: memref<1x32x256xf32, #tpu.memory_space<vmem>>) attributes {dimension_semantics = [#tpu.dimension_semantics<parallel>], iteration_bounds = array<i64: 2>, scalar_prefetch = 0 : i64, scratch_operands = 0 : i64, tpu.core_type = #tpu.core_type<tc>, window_params = [{transform_indices = @transform_0, window_bounds = array<i64: 1, 8, 256>}, {transform_indices = @transform_1, window_bounds = array<i64: 1, 32, 64>}, {pipeline_mode = #tpu.pipeline_mode<synchronous>, transform_indices = @transform_2, window_bounds = array<i64: 32, 8>}, {pipeline_mode = #tpu.pipeline_mode<synchronous>, transform_indices = @transform_3, window_bounds = array<i64: 4, 32, 32>}, {pipeline_mode = #tpu.pipeline_mode<synchronous>, transform_indices = @transform_4, window_bounds = array<i64: 2, 32, 16>}, {pipeline_mode = #tpu.pipeline_mode<synchronous>, transform_indices = @transform_5, window_bounds = array<i64: 32, 9>}, {pipeline_mode = #tpu.pipeline_mode<synchronous>, transform_indices = @transform_6, window_bounds = array<i64: 2, 32, 288>}, {pipeline_mode = #tpu.pipeline_mode<synchronous>, transform_indices = @transform_7, window_bounds = array<i64: 64, 256>}, {pipeline_mode = #tpu.pipeline_mode<synchronous>, transform_indices = @transform_8, window_bounds = array<i64: 11, 256>}, {pipeline_mode = #tpu.pipeline_mode<synchronous>, transform_indices = @transform_9, window_bounds = array<i64: 1, 63>}, {transform_indices = @transform_10, window_bounds = array<i64: 2>}, {transform_indices = @transform_11, window_bounds = array<i64: 1, 32, 256>}]} {
    %c0 = arith.constant 0 : index
    %c0_0 = arith.constant 0 : index
    %c0_1 = arith.constant 0 : index
    %0 = vector.load %arg1[%c0, %c0_0, %c0_1] : memref<1x8x256xf32, #tpu.memory_space<vmem>>, vector<1x8x256xf32>
    %1 = vector.shape_cast %0 : vector<1x8x256xf32> to vector<8x256xf32>
    %c0_2 = arith.constant 0 : index
    %c0_3 = arith.constant 0 : index
    %2 = vector.load %arg3[%c0_2, %c0_3] : memref<32x8xf32, #tpu.memory_space<vmem>>, vector<32x8xf32>
    %cst = arith.constant dense<0.000000e+00> : vector<32x256xf32>
    %3 = tpu.matmul %2, %1, %cst {dimension_numbers = #tpu.dot_dimension_numbers<[1], [0], [0], [1], [0, 0, 1, 1], [], []>} : vector<32x8xf32>, vector<8x256xf32>, vector<32x256xf32> -> vector<32x256xf32>
    %c0_4 = arith.constant 0 : index
    %c0_5 = arith.constant 0 : index
    %4 = vector.load %arg6[%c0_4, %c0_5] : memref<32x9xf32, #tpu.memory_space<vmem>>, vector<32x1xf32>
    %5 = vector.broadcast %4 : vector<32x1xf32> to vector<32x256xf32>
    %6 = arith.addf %3, %5 : vector<32x256xf32>
    %c9 = arith.constant 9 : index
    %c0_6 = arith.constant 0 : index
    %7 = vector.load %arg9[%c9, %c0_6] : memref<11x256xf32, #tpu.memory_space<vmem>>, vector<1x256xf32>
    %c10 = arith.constant 10 : index
    %c0_7 = arith.constant 0 : index
    %8 = vector.load %arg9[%c10, %c0_7] : memref<11x256xf32, #tpu.memory_space<vmem>>, vector<1x256xf32>
    %c240_i32 = arith.constant 240 : i32
    %9 = tpu.dynamic_rotate %6 by %c240_i32 dim 1 : vector<32x256xf32>, i32 -> vector<32x256xf32>
    %10 = arith.subf %9, %6 : vector<32x256xf32>
    %11 = vector.broadcast %7 : vector<1x256xf32> to vector<32x256xf32>
    %12 = arith.mulf %10, %11 : vector<32x256xf32>
    %c255_i32 = arith.constant 255 : i32
    %13 = tpu.dynamic_rotate %6 by %c255_i32 dim 1 : vector<32x256xf32>, i32 -> vector<32x256xf32>
    %14 = arith.subf %13, %6 : vector<32x256xf32>
    %15 = vector.broadcast %8 : vector<1x256xf32> to vector<32x256xf32>
    %16 = arith.mulf %14, %15 : vector<32x256xf32>
    %17 = arith.mulf %12, %12 : vector<32x256xf32>
    %cst_8 = arith.constant dense<0.000000e+00> : vector<32xf32>
    %18 = vector.multi_reduction <add>, %17, %cst_8 [1] : vector<32x256xf32> to vector<32xf32>
    %19 = vector.shape_cast %18 : vector<32xf32> to vector<32x1xf32>
    %cst_9 = arith.constant 0.00416666688 : f32
    %20 = vector.broadcast %cst_9 : f32 to vector<32x1xf32>
    %21 = arith.mulf %19, %20 : vector<32x1xf32>
    %22 = arith.mulf %16, %16 : vector<32x256xf32>
    %cst_10 = arith.constant dense<0.000000e+00> : vector<32xf32>
    %23 = vector.multi_reduction <add>, %22, %cst_10 [1] : vector<32x256xf32> to vector<32xf32>
    %24 = vector.shape_cast %23 : vector<32xf32> to vector<32x1xf32>
    %cst_11 = arith.constant 0.00416666688 : f32
    %25 = vector.broadcast %cst_11 : f32 to vector<32x1xf32>
    %26 = arith.mulf %24, %25 : vector<32x1xf32>
    %27 = arith.addf %21, %26 : vector<32x1xf32>
    %c0_12 = arith.constant 0 : index
    %c0_13 = arith.constant 0 : index
    %c0_14 = arith.constant 0 : index
    %28 = vector.load %arg4[%c0_12, %c0_13, %c0_14] : memref<4x32x32xf32, #tpu.memory_space<vmem>>, vector<1x32x32xf32>
    %29 = vector.shape_cast %28 : vector<1x32x32xf32> to vector<32x32xf32>
    %cst_15 = arith.constant dense<0.000000e+00> : vector<32x1xf32>
    %30 = tpu.matmul %29, %27, %cst_15 {dimension_numbers = #tpu.dot_dimension_numbers<[1], [0], [0], [1], [0, 0, 1, 1], [], []>} : vector<32x32xf32>, vector<32x1xf32>, vector<32x1xf32> -> vector<32x1xf32>
    %c0_16 = arith.constant 0 : index
    %c1 = arith.constant 1 : index
    %31 = vector.load %arg6[%c0_16, %c1] : memref<32x9xf32, #tpu.memory_space<vmem>>, vector<32x1xf32>
    %32 = arith.addf %30, %31 : vector<32x1xf32>
    %c0_17 = arith.constant 0 : index
    %c0_18 = arith.constant 0 : index
    %c0_19 = arith.constant 0 : index
    %33 = vector.load %arg2[%c0_17, %c0_18, %c0_19] : memref<1x32x64xf32, #tpu.memory_space<vmem>>, vector<1x32x64xf32>
    %34 = vector.shape_cast %33 : vector<1x32x64xf32> to vector<32x64xf32>
    %35 = vector.extract_strided_slice %34 {offsets = [0, 8], sizes = [32, 56], strides = [1, 1]} : vector<32x64xf32> to vector<32x56xf32>
    %36 = vector.extract_strided_slice %34 {offsets = [0, 0], sizes = [32, 56], strides = [1, 1]} : vector<32x64xf32> to vector<32x56xf32>
    %37 = arith.subf %35, %36 : vector<32x56xf32>
    %38 = vector.extract_strided_slice %34 {offsets = [0, 1], sizes = [32, 63], strides = [1, 1]} : vector<32x64xf32> to vector<32x63xf32>
    %39 = vector.extract_strided_slice %34 {offsets = [0, 0], sizes = [32, 63], strides = [1, 1]} : vector<32x64xf32> to vector<32x63xf32>
    %40 = arith.subf %38, %39 : vector<32x63xf32>
    %c0_20 = arith.constant 0 : index
    %c0_21 = arith.constant 0 : index
    %41 = vector.load %arg10[%c0_20, %c0_21] : memref<1x63xf32, #tpu.memory_space<vmem>>, vector<1x63xf32>
    %42 = vector.broadcast %41 : vector<1x63xf32> to vector<32x63xf32>
    %43 = arith.mulf %40, %42 : vector<32x63xf32>
    %44 = arith.mulf %37, %37 : vector<32x56xf32>
    %cst_22 = arith.constant dense<0.000000e+00> : vector<32xf32>
    %45 = vector.multi_reduction <add>, %44, %cst_22 [1] : vector<32x56xf32> to vector<32xf32>
    %46 = vector.shape_cast %45 : vector<32xf32> to vector<32x1xf32>
    %cst_23 = arith.constant 0.0178571437 : f32
    %47 = vector.broadcast %cst_23 : f32 to vector<32x1xf32>
    %48 = arith.mulf %46, %47 : vector<32x1xf32>
    %49 = arith.mulf %43, %43 : vector<32x63xf32>
    %cst_24 = arith.constant dense<0.000000e+00> : vector<32xf32>
    %50 = vector.multi_reduction <add>, %49, %cst_24 [1] : vector<32x63xf32> to vector<32xf32>
    %51 = vector.shape_cast %50 : vector<32xf32> to vector<32x1xf32>
    %cst_25 = arith.constant 0.0178571437 : f32
    %52 = vector.broadcast %cst_25 : f32 to vector<32x1xf32>
    %53 = arith.mulf %51, %52 : vector<32x1xf32>
    %54 = arith.addf %48, %53 : vector<32x1xf32>
    %c1_26 = arith.constant 1 : index
    %c0_27 = arith.constant 0 : index
    %c0_28 = arith.constant 0 : index
    %55 = vector.load %arg4[%c1_26, %c0_27, %c0_28] : memref<4x32x32xf32, #tpu.memory_space<vmem>>, vector<1x32x32xf32>
    %56 = vector.shape_cast %55 : vector<1x32x32xf32> to vector<32x32xf32>
    %cst_29 = arith.constant dense<0.000000e+00> : vector<32x1xf32>
    %57 = tpu.matmul %56, %54, %cst_29 {dimension_numbers = #tpu.dot_dimension_numbers<[1], [0], [0], [1], [0, 0, 1, 1], [], []>} : vector<32x32xf32>, vector<32x1xf32>, vector<32x1xf32> -> vector<32x1xf32>
    %c0_30 = arith.constant 0 : index
    %c2 = arith.constant 2 : index
    %58 = vector.load %arg6[%c0_30, %c2] : memref<32x9xf32, #tpu.memory_space<vmem>>, vector<32x1xf32>
    %59 = arith.addf %57, %58 : vector<32x1xf32>
    %c0_31 = arith.constant 0 : index
    %c0_32 = arith.constant 0 : index
    %c0_33 = arith.constant 0 : index
    %60 = vector.load %arg5[%c0_31, %c0_32, %c0_33] : memref<2x32x16xf32, #tpu.memory_space<vmem>>, vector<1x32x16xf32>
    %61 = vector.shape_cast %60 : vector<1x32x16xf32> to vector<32x16xf32>
    %c1_34 = arith.constant 1 : index
    %c0_35 = arith.constant 0 : index
    %c0_36 = arith.constant 0 : index
    %62 = vector.load %arg5[%c1_34, %c0_35, %c0_36] : memref<2x32x16xf32, #tpu.memory_space<vmem>>, vector<1x32x16xf32>
    %63 = vector.shape_cast %62 : vector<1x32x16xf32> to vector<32x16xf32>
    %64 = vector.extract_strided_slice %59 {offsets = [0, 0], sizes = [8, 1], strides = [1, 1]} : vector<32x1xf32> to vector<8x1xf32>
    %65 = vector.extract_strided_slice %59 {offsets = [8, 0], sizes = [8, 1], strides = [1, 1]} : vector<32x1xf32> to vector<8x1xf32>
    %66 = vector.extract_strided_slice %59 {offsets = [16, 0], sizes = [8, 1], strides = [1, 1]} : vector<32x1xf32> to vector<8x1xf32>
    %67 = vector.extract_strided_slice %59 {offsets = [24, 0], sizes = [8, 1], strides = [1, 1]} : vector<32x1xf32> to vector<8x1xf32>
    %68 = vector.extract_strided_slice %32 {offsets = [0, 0], sizes = [8, 1], strides = [1, 1]} : vector<32x1xf32> to vector<8x1xf32>
    %69 = arith.mulf %68, %64 : vector<8x1xf32>
    %cst_37 = arith.constant dense<0.000000e+00> : vector<1xf32>
    %70 = vector.multi_reduction <add>, %69, %cst_37 [0] : vector<8x1xf32> to vector<1xf32>
    %71 = vector.shape_cast %70 : vector<1xf32> to vector<1x1xf32>
    %72 = vector.extract_strided_slice %61 {offsets = [0, 0], sizes = [32, 1], strides = [1, 1]} : vector<32x16xf32> to vector<32x1xf32>
    %73 = vector.broadcast %71 : vector<1x1xf32> to vector<32x1xf32>
    %74 = arith.mulf %73, %72 : vector<32x1xf32>
    %75 = vector.extract_strided_slice %63 {offsets = [0, 0], sizes = [32, 1], strides = [1, 1]} : vector<32x16xf32> to vector<32x1xf32>
    %76 = vector.broadcast %71 : vector<1x1xf32> to vector<32x1xf32>
    %77 = arith.mulf %76, %75 : vector<32x1xf32>
    %78 = arith.mulf %68, %65 : vector<8x1xf32>
    %cst_38 = arith.constant dense<0.000000e+00> : vector<1xf32>
    %79 = vector.multi_reduction <add>, %78, %cst_38 [0] : vector<8x1xf32> to vector<1xf32>
    %80 = vector.shape_cast %79 : vector<1xf32> to vector<1x1xf32>
    %81 = vector.extract_strided_slice %61 {offsets = [0, 1], sizes = [32, 1], strides = [1, 1]} : vector<32x16xf32> to vector<32x1xf32>
    %82 = vector.broadcast %80 : vector<1x1xf32> to vector<32x1xf32>
    %83 = arith.mulf %82, %81 : vector<32x1xf32>
    %84 = vector.extract_strided_slice %63 {offsets = [0, 1], sizes = [32, 1], strides = [1, 1]} : vector<32x16xf32> to vector<32x1xf32>
    %85 = vector.broadcast %80 : vector<1x1xf32> to vector<32x1xf32>
    %86 = arith.mulf %85, %84 : vector<32x1xf32>
    %87 = arith.addf %74, %83 : vector<32x1xf32>
    %88 = arith.addf %77, %86 : vector<32x1xf32>
    %89 = arith.mulf %68, %66 : vector<8x1xf32>
    %cst_39 = arith.constant dense<0.000000e+00> : vector<1xf32>
    %90 = vector.multi_reduction <add>, %89, %cst_39 [0] : vector<8x1xf32> to vector<1xf32>
    %91 = vector.shape_cast %90 : vector<1xf32> to vector<1x1xf32>
    %92 = vector.extract_strided_slice %61 {offsets = [0, 2], sizes = [32, 1], strides = [1, 1]} : vector<32x16xf32> to vector<32x1xf32>
    %93 = vector.broadcast %91 : vector<1x1xf32> to vector<32x1xf32>
    %94 = arith.mulf %93, %92 : vector<32x1xf32>
    %95 = vector.extract_strided_slice %63 {offsets = [0, 2], sizes = [32, 1], strides = [1, 1]} : vector<32x16xf32> to vector<32x1xf32>
    %96 = vector.broadcast %91 : vector<1x1xf32> to vector<32x1xf32>
    %97 = arith.mulf %96, %95 : vector<32x1xf32>
    %98 = arith.addf %87, %94 : vector<32x1xf32>
    %99 = arith.addf %88, %97 : vector<32x1xf32>
    %100 = arith.mulf %68, %67 : vector<8x1xf32>
    %cst_40 = arith.constant dense<0.000000e+00> : vector<1xf32>
    %101 = vector.multi_reduction <add>, %100, %cst_40 [0] : vector<8x1xf32> to vector<1xf32>
    %102 = vector.shape_cast %101 : vector<1xf32> to vector<1x1xf32>
    %103 = vector.extract_strided_slice %61 {offsets = [0, 3], sizes = [32, 1], strides = [1, 1]} : vector<32x16xf32> to vector<32x1xf32>
    %104 = vector.broadcast %102 : vector<1x1xf32> to vector<32x1xf32>
    %105 = arith.mulf %104, %103 : vector<32x1xf32>
    %106 = vector.extract_strided_slice %63 {offsets = [0, 3], sizes = [32, 1], strides = [1, 1]} : vector<32x16xf32> to vector<32x1xf32>
    %107 = vector.broadcast %102 : vector<1x1xf32> to vector<32x1xf32>
    %108 = arith.mulf %107, %106 : vector<32x1xf32>
    %109 = arith.addf %98, %105 : vector<32x1xf32>
    %110 = arith.addf %99, %108 : vector<32x1xf32>
    %111 = vector.extract_strided_slice %32 {offsets = [8, 0], sizes = [8, 1], strides = [1, 1]} : vector<32x1xf32> to vector<8x1xf32>
    %112 = arith.mulf %111, %64 : vector<8x1xf32>
    %cst_41 = arith.constant dense<0.000000e+00> : vector<1xf32>
    %113 = vector.multi_reduction <add>, %112, %cst_41 [0] : vector<8x1xf32> to vector<1xf32>
    %114 = vector.shape_cast %113 : vector<1xf32> to vector<1x1xf32>
    %115 = vector.extract_strided_slice %61 {offsets = [0, 4], sizes = [32, 1], strides = [1, 1]} : vector<32x16xf32> to vector<32x1xf32>
    %116 = vector.broadcast %114 : vector<1x1xf32> to vector<32x1xf32>
    %117 = arith.mulf %116, %115 : vector<32x1xf32>
    %118 = vector.extract_strided_slice %63 {offsets = [0, 4], sizes = [32, 1], strides = [1, 1]} : vector<32x16xf32> to vector<32x1xf32>
    %119 = vector.broadcast %114 : vector<1x1xf32> to vector<32x1xf32>
    %120 = arith.mulf %119, %118 : vector<32x1xf32>
    %121 = arith.mulf %111, %65 : vector<8x1xf32>
    %cst_42 = arith.constant dense<0.000000e+00> : vector<1xf32>
    %122 = vector.multi_reduction <add>, %121, %cst_42 [0] : vector<8x1xf32> to vector<1xf32>
    %123 = vector.shape_cast %122 : vector<1xf32> to vector<1x1xf32>
    %124 = vector.extract_strided_slice %61 {offsets = [0, 5], sizes = [32, 1], strides = [1, 1]} : vector<32x16xf32> to vector<32x1xf32>
    %125 = vector.broadcast %123 : vector<1x1xf32> to vector<32x1xf32>
    %126 = arith.mulf %125, %124 : vector<32x1xf32>
    %127 = vector.extract_strided_slice %63 {offsets = [0, 5], sizes = [32, 1], strides = [1, 1]} : vector<32x16xf32> to vector<32x1xf32>
    %128 = vector.broadcast %123 : vector<1x1xf32> to vector<32x1xf32>
    %129 = arith.mulf %128, %127 : vector<32x1xf32>
    %130 = arith.addf %117, %126 : vector<32x1xf32>
    %131 = arith.addf %120, %129 : vector<32x1xf32>
    %132 = arith.mulf %111, %66 : vector<8x1xf32>
    %cst_43 = arith.constant dense<0.000000e+00> : vector<1xf32>
    %133 = vector.multi_reduction <add>, %132, %cst_43 [0] : vector<8x1xf32> to vector<1xf32>
    %134 = vector.shape_cast %133 : vector<1xf32> to vector<1x1xf32>
    %135 = vector.extract_strided_slice %61 {offsets = [0, 6], sizes = [32, 1], strides = [1, 1]} : vector<32x16xf32> to vector<32x1xf32>
    %136 = vector.broadcast %134 : vector<1x1xf32> to vector<32x1xf32>
    %137 = arith.mulf %136, %135 : vector<32x1xf32>
    %138 = vector.extract_strided_slice %63 {offsets = [0, 6], sizes = [32, 1], strides = [1, 1]} : vector<32x16xf32> to vector<32x1xf32>
    %139 = vector.broadcast %134 : vector<1x1xf32> to vector<32x1xf32>
    %140 = arith.mulf %139, %138 : vector<32x1xf32>
    %141 = arith.addf %130, %137 : vector<32x1xf32>
    %142 = arith.addf %131, %140 : vector<32x1xf32>
    %143 = arith.mulf %111, %67 : vector<8x1xf32>
    %cst_44 = arith.constant dense<0.000000e+00> : vector<1xf32>
    %144 = vector.multi_reduction <add>, %143, %cst_44 [0] : vector<8x1xf32> to vector<1xf32>
    %145 = vector.shape_cast %144 : vector<1xf32> to vector<1x1xf32>
    %146 = vector.extract_strided_slice %61 {offsets = [0, 7], sizes = [32, 1], strides = [1, 1]} : vector<32x16xf32> to vector<32x1xf32>
    %147 = vector.broadcast %145 : vector<1x1xf32> to vector<32x1xf32>
    %148 = arith.mulf %147, %146 : vector<32x1xf32>
    %149 = vector.extract_strided_slice %63 {offsets = [0, 7], sizes = [32, 1], strides = [1, 1]} : vector<32x16xf32> to vector<32x1xf32>
    %150 = vector.broadcast %145 : vector<1x1xf32> to vector<32x1xf32>
    %151 = arith.mulf %150, %149 : vector<32x1xf32>
    %152 = arith.addf %141, %148 : vector<32x1xf32>
    %153 = arith.addf %142, %151 : vector<32x1xf32>
    %154 = vector.extract_strided_slice %32 {offsets = [16, 0], sizes = [8, 1], strides = [1, 1]} : vector<32x1xf32> to vector<8x1xf32>
    %155 = arith.mulf %154, %64 : vector<8x1xf32>
    %cst_45 = arith.constant dense<0.000000e+00> : vector<1xf32>
    %156 = vector.multi_reduction <add>, %155, %cst_45 [0] : vector<8x1xf32> to vector<1xf32>
    %157 = vector.shape_cast %156 : vector<1xf32> to vector<1x1xf32>
    %158 = vector.extract_strided_slice %61 {offsets = [0, 8], sizes = [32, 1], strides = [1, 1]} : vector<32x16xf32> to vector<32x1xf32>
    %159 = vector.broadcast %157 : vector<1x1xf32> to vector<32x1xf32>
    %160 = arith.mulf %159, %158 : vector<32x1xf32>
    %161 = vector.extract_strided_slice %63 {offsets = [0, 8], sizes = [32, 1], strides = [1, 1]} : vector<32x16xf32> to vector<32x1xf32>
    %162 = vector.broadcast %157 : vector<1x1xf32> to vector<32x1xf32>
    %163 = arith.mulf %162, %161 : vector<32x1xf32>
    %164 = arith.mulf %154, %65 : vector<8x1xf32>
    %cst_46 = arith.constant dense<0.000000e+00> : vector<1xf32>
    %165 = vector.multi_reduction <add>, %164, %cst_46 [0] : vector<8x1xf32> to vector<1xf32>
    %166 = vector.shape_cast %165 : vector<1xf32> to vector<1x1xf32>
    %167 = vector.extract_strided_slice %61 {offsets = [0, 9], sizes = [32, 1], strides = [1, 1]} : vector<32x16xf32> to vector<32x1xf32>
    %168 = vector.broadcast %166 : vector<1x1xf32> to vector<32x1xf32>
    %169 = arith.mulf %168, %167 : vector<32x1xf32>
    %170 = vector.extract_strided_slice %63 {offsets = [0, 9], sizes = [32, 1], strides = [1, 1]} : vector<32x16xf32> to vector<32x1xf32>
    %171 = vector.broadcast %166 : vector<1x1xf32> to vector<32x1xf32>
    %172 = arith.mulf %171, %170 : vector<32x1xf32>
    %173 = arith.addf %160, %169 : vector<32x1xf32>
    %174 = arith.addf %163, %172 : vector<32x1xf32>
    %175 = arith.mulf %154, %66 : vector<8x1xf32>
    %cst_47 = arith.constant dense<0.000000e+00> : vector<1xf32>
    %176 = vector.multi_reduction <add>, %175, %cst_47 [0] : vector<8x1xf32> to vector<1xf32>
    %177 = vector.shape_cast %176 : vector<1xf32> to vector<1x1xf32>
    %178 = vector.extract_strided_slice %61 {offsets = [0, 10], sizes = [32, 1], strides = [1, 1]} : vector<32x16xf32> to vector<32x1xf32>
    %179 = vector.broadcast %177 : vector<1x1xf32> to vector<32x1xf32>
    %180 = arith.mulf %179, %178 : vector<32x1xf32>
    %181 = vector.extract_strided_slice %63 {offsets = [0, 10], sizes = [32, 1], strides = [1, 1]} : vector<32x16xf32> to vector<32x1xf32>
    %182 = vector.broadcast %177 : vector<1x1xf32> to vector<32x1xf32>
    %183 = arith.mulf %182, %181 : vector<32x1xf32>
    %184 = arith.addf %173, %180 : vector<32x1xf32>
    %185 = arith.addf %174, %183 : vector<32x1xf32>
    %186 = arith.mulf %154, %67 : vector<8x1xf32>
    %cst_48 = arith.constant dense<0.000000e+00> : vector<1xf32>
    %187 = vector.multi_reduction <add>, %186, %cst_48 [0] : vector<8x1xf32> to vector<1xf32>
    %188 = vector.shape_cast %187 : vector<1xf32> to vector<1x1xf32>
    %189 = vector.extract_strided_slice %61 {offsets = [0, 11], sizes = [32, 1], strides = [1, 1]} : vector<32x16xf32> to vector<32x1xf32>
    %190 = vector.broadcast %188 : vector<1x1xf32> to vector<32x1xf32>
    %191 = arith.mulf %190, %189 : vector<32x1xf32>
    %192 = vector.extract_strided_slice %63 {offsets = [0, 11], sizes = [32, 1], strides = [1, 1]} : vector<32x16xf32> to vector<32x1xf32>
    %193 = vector.broadcast %188 : vector<1x1xf32> to vector<32x1xf32>
    %194 = arith.mulf %193, %192 : vector<32x1xf32>
    %195 = arith.addf %184, %191 : vector<32x1xf32>
    %196 = arith.addf %185, %194 : vector<32x1xf32>
    %197 = vector.extract_strided_slice %32 {offsets = [24, 0], sizes = [8, 1], strides = [1, 1]} : vector<32x1xf32> to vector<8x1xf32>
    %198 = arith.mulf %197, %64 : vector<8x1xf32>
    %cst_49 = arith.constant dense<0.000000e+00> : vector<1xf32>
    %199 = vector.multi_reduction <add>, %198, %cst_49 [0] : vector<8x1xf32> to vector<1xf32>
    %200 = vector.shape_cast %199 : vector<1xf32> to vector<1x1xf32>
    %201 = vector.extract_strided_slice %61 {offsets = [0, 12], sizes = [32, 1], strides = [1, 1]} : vector<32x16xf32> to vector<32x1xf32>
    %202 = vector.broadcast %200 : vector<1x1xf32> to vector<32x1xf32>
    %203 = arith.mulf %202, %201 : vector<32x1xf32>
    %204 = vector.extract_strided_slice %63 {offsets = [0, 12], sizes = [32, 1], strides = [1, 1]} : vector<32x16xf32> to vector<32x1xf32>
    %205 = vector.broadcast %200 : vector<1x1xf32> to vector<32x1xf32>
    %206 = arith.mulf %205, %204 : vector<32x1xf32>
    %207 = arith.mulf %197, %65 : vector<8x1xf32>
    %cst_50 = arith.constant dense<0.000000e+00> : vector<1xf32>
    %208 = vector.multi_reduction <add>, %207, %cst_50 [0] : vector<8x1xf32> to vector<1xf32>
    %209 = vector.shape_cast %208 : vector<1xf32> to vector<1x1xf32>
    %210 = vector.extract_strided_slice %61 {offsets = [0, 13], sizes = [32, 1], strides = [1, 1]} : vector<32x16xf32> to vector<32x1xf32>
    %211 = vector.broadcast %209 : vector<1x1xf32> to vector<32x1xf32>
    %212 = arith.mulf %211, %210 : vector<32x1xf32>
    %213 = vector.extract_strided_slice %63 {offsets = [0, 13], sizes = [32, 1], strides = [1, 1]} : vector<32x16xf32> to vector<32x1xf32>
    %214 = vector.broadcast %209 : vector<1x1xf32> to vector<32x1xf32>
    %215 = arith.mulf %214, %213 : vector<32x1xf32>
    %216 = arith.addf %203, %212 : vector<32x1xf32>
    %217 = arith.addf %206, %215 : vector<32x1xf32>
    %218 = arith.mulf %197, %66 : vector<8x1xf32>
    %cst_51 = arith.constant dense<0.000000e+00> : vector<1xf32>
    %219 = vector.multi_reduction <add>, %218, %cst_51 [0] : vector<8x1xf32> to vector<1xf32>
    %220 = vector.shape_cast %219 : vector<1xf32> to vector<1x1xf32>
    %221 = vector.extract_strided_slice %61 {offsets = [0, 14], sizes = [32, 1], strides = [1, 1]} : vector<32x16xf32> to vector<32x1xf32>
    %222 = vector.broadcast %220 : vector<1x1xf32> to vector<32x1xf32>
    %223 = arith.mulf %222, %221 : vector<32x1xf32>
    %224 = vector.extract_strided_slice %63 {offsets = [0, 14], sizes = [32, 1], strides = [1, 1]} : vector<32x16xf32> to vector<32x1xf32>
    %225 = vector.broadcast %220 : vector<1x1xf32> to vector<32x1xf32>
    %226 = arith.mulf %225, %224 : vector<32x1xf32>
    %227 = arith.addf %216, %223 : vector<32x1xf32>
    %228 = arith.addf %217, %226 : vector<32x1xf32>
    %229 = arith.mulf %197, %67 : vector<8x1xf32>
    %cst_52 = arith.constant dense<0.000000e+00> : vector<1xf32>
    %230 = vector.multi_reduction <add>, %229, %cst_52 [0] : vector<8x1xf32> to vector<1xf32>
    %231 = vector.shape_cast %230 : vector<1xf32> to vector<1x1xf32>
    %232 = vector.extract_strided_slice %61 {offsets = [0, 15], sizes = [32, 1], strides = [1, 1]} : vector<32x16xf32> to vector<32x1xf32>
    %233 = vector.broadcast %231 : vector<1x1xf32> to vector<32x1xf32>
    %234 = arith.mulf %233, %232 : vector<32x1xf32>
    %235 = vector.extract_strided_slice %63 {offsets = [0, 15], sizes = [32, 1], strides = [1, 1]} : vector<32x16xf32> to vector<32x1xf32>
    %236 = vector.broadcast %231 : vector<1x1xf32> to vector<32x1xf32>
    %237 = arith.mulf %236, %235 : vector<32x1xf32>
    %238 = arith.addf %227, %234 : vector<32x1xf32>
    %239 = arith.addf %228, %237 : vector<32x1xf32>
    %cst_53 = arith.constant 0.000000e+00 : f32
    %240 = vector.broadcast %cst_53 : f32 to vector<32x1xf32>
    %241 = arith.addf %240, %109 : vector<32x1xf32>
    %242 = arith.addf %241, %152 : vector<32x1xf32>
    %243 = arith.addf %242, %195 : vector<32x1xf32>
    %244 = arith.addf %243, %238 : vector<32x1xf32>
    %c0_54 = arith.constant 0 : index
    %c3 = arith.constant 3 : index
    %245 = vector.load %arg6[%c0_54, %c3] : memref<32x9xf32, #tpu.memory_space<vmem>>, vector<32x1xf32>
    %246 = arith.addf %244, %245 : vector<32x1xf32>
    %cst_55 = arith.constant 0.000000e+00 : f32
    %247 = vector.broadcast %cst_55 : f32 to vector<32x1xf32>
    %248 = arith.maximumf %246, %247 : vector<32x1xf32>
    %cst_56 = arith.constant 0.000000e+00 : f32
    %249 = vector.broadcast %cst_56 : f32 to vector<32x1xf32>
    %250 = arith.addf %249, %110 : vector<32x1xf32>
    %251 = arith.addf %250, %153 : vector<32x1xf32>
    %252 = arith.addf %251, %196 : vector<32x1xf32>
    %253 = arith.addf %252, %239 : vector<32x1xf32>
    %c0_57 = arith.constant 0 : index
    %c5 = arith.constant 5 : index
    %254 = vector.load %arg6[%c0_57, %c5] : memref<32x9xf32, #tpu.memory_space<vmem>>, vector<32x1xf32>
    %255 = arith.addf %253, %254 : vector<32x1xf32>
    %cst_58 = arith.constant 0.000000e+00 : f32
    %256 = vector.broadcast %cst_58 : f32 to vector<32x1xf32>
    %257 = arith.maximumf %255, %256 : vector<32x1xf32>
    %c2_59 = arith.constant 2 : index
    %c0_60 = arith.constant 0 : index
    %c0_61 = arith.constant 0 : index
    %258 = vector.load %arg4[%c2_59, %c0_60, %c0_61] : memref<4x32x32xf32, #tpu.memory_space<vmem>>, vector<1x32x32xf32>
    %259 = vector.shape_cast %258 : vector<1x32x32xf32> to vector<32x32xf32>
    %cst_62 = arith.constant dense<0.000000e+00> : vector<32x1xf32>
    %260 = tpu.matmul %259, %248, %cst_62 {dimension_numbers = #tpu.dot_dimension_numbers<[1], [0], [0], [1], [0, 0, 1, 1], [], []>} : vector<32x32xf32>, vector<32x1xf32>, vector<32x1xf32> -> vector<32x1xf32>
    %c0_63 = arith.constant 0 : index
    %c4 = arith.constant 4 : index
    %261 = vector.load %arg6[%c0_63, %c4] : memref<32x9xf32, #tpu.memory_space<vmem>>, vector<32x1xf32>
    %262 = arith.addf %260, %261 : vector<32x1xf32>
    %cst_64 = arith.constant 0.000000e+00 : f32
    %263 = vector.broadcast %cst_64 : f32 to vector<32x1xf32>
    %264 = arith.maximumf %262, %263 : vector<32x1xf32>
    %c3_65 = arith.constant 3 : index
    %c0_66 = arith.constant 0 : index
    %c0_67 = arith.constant 0 : index
    %265 = vector.load %arg4[%c3_65, %c0_66, %c0_67] : memref<4x32x32xf32, #tpu.memory_space<vmem>>, vector<1x32x32xf32>
    %266 = vector.shape_cast %265 : vector<1x32x32xf32> to vector<32x32xf32>
    %cst_68 = arith.constant dense<0.000000e+00> : vector<32x1xf32>
    %267 = tpu.matmul %266, %257, %cst_68 {dimension_numbers = #tpu.dot_dimension_numbers<[1], [0], [0], [1], [0, 0, 1, 1], [], []>} : vector<32x32xf32>, vector<32x1xf32>, vector<32x1xf32> -> vector<32x1xf32>
    %c0_69 = arith.constant 0 : index
    %c6 = arith.constant 6 : index
    %268 = vector.load %arg6[%c0_69, %c6] : memref<32x9xf32, #tpu.memory_space<vmem>>, vector<32x1xf32>
    %269 = arith.addf %267, %268 : vector<32x1xf32>
    %cst_70 = arith.constant 0.000000e+00 : f32
    %270 = vector.broadcast %cst_70 : f32 to vector<32x1xf32>
    %271 = arith.maximumf %269, %270 : vector<32x1xf32>
    %c0_71 = arith.constant 0 : index
    %272 = memref.load %arg11[%c0_71] : memref<2xf32, #tpu.memory_space<smem>>
    %273 = vector.broadcast %272 : f32 to vector<32x1xf32>
    %274 = arith.mulf %273, %264 : vector<32x1xf32>
    %275 = arith.addf %32, %274 : vector<32x1xf32>
    %276 = arith.negf %275 : vector<32x1xf32>
    %277 = math.exp %276 : vector<32x1xf32>
    %cst_72 = arith.constant 1.000000e+00 : f32
    %278 = vector.broadcast %cst_72 : f32 to vector<32x1xf32>
    %279 = arith.addf %278, %277 : vector<32x1xf32>
    %280 = arith.divf %278, %279 : vector<32x1xf32>
    %c1_73 = arith.constant 1 : index
    %281 = memref.load %arg11[%c1_73] : memref<2xf32, #tpu.memory_space<smem>>
    %282 = vector.broadcast %281 : f32 to vector<32x1xf32>
    %283 = arith.mulf %282, %271 : vector<32x1xf32>
    %284 = arith.addf %59, %283 : vector<32x1xf32>
    %285 = arith.negf %284 : vector<32x1xf32>
    %286 = math.exp %285 : vector<32x1xf32>
    %cst_74 = arith.constant 1.000000e+00 : f32
    %287 = vector.broadcast %cst_74 : f32 to vector<32x1xf32>
    %288 = arith.addf %287, %286 : vector<32x1xf32>
    %289 = arith.divf %287, %288 : vector<32x1xf32>
    %290 = vector.broadcast %280 : vector<32x1xf32> to vector<32x256xf32>
    %291 = arith.mulf %6, %290 : vector<32x256xf32>
    %292 = vector.broadcast %289 : vector<32x1xf32> to vector<32x64xf32>
    %293 = arith.mulf %34, %292 : vector<32x64xf32>
    %c0_75 = arith.constant 0 : index
    %c0_76 = arith.constant 0 : index
    %294 = vector.load %arg8[%c0_75, %c0_76] : memref<64x256xf32, #tpu.memory_space<vmem>>, vector<64x256xf32>
    %cst_77 = arith.constant dense<0.000000e+00> : vector<32x256xf32>
    %295 = tpu.matmul %293, %294, %cst_77 {dimension_numbers = #tpu.dot_dimension_numbers<[1], [0], [0], [1], [0, 0, 1, 1], [], []>} : vector<32x64xf32>, vector<64x256xf32>, vector<32x256xf32> -> vector<32x256xf32>
    %c17_i32 = arith.constant 17 : i32
    %296 = tpu.dynamic_rotate %295 by %c17_i32 dim 1 : vector<32x256xf32>, i32 -> vector<32x256xf32>
    %c0_78 = arith.constant 0 : index
    %c0_79 = arith.constant 0 : index
    %297 = vector.load %arg9[%c0_78, %c0_79] : memref<11x256xf32, #tpu.memory_space<vmem>>, vector<1x256xf32>
    %298 = vector.broadcast %297 : vector<1x256xf32> to vector<32x256xf32>
    %299 = arith.mulf %296, %298 : vector<32x256xf32>
    %c16_i32 = arith.constant 16 : i32
    %300 = tpu.dynamic_rotate %295 by %c16_i32 dim 1 : vector<32x256xf32>, i32 -> vector<32x256xf32>
    %c1_80 = arith.constant 1 : index
    %c0_81 = arith.constant 0 : index
    %301 = vector.load %arg9[%c1_80, %c0_81] : memref<11x256xf32, #tpu.memory_space<vmem>>, vector<1x256xf32>
    %302 = vector.broadcast %301 : vector<1x256xf32> to vector<32x256xf32>
    %303 = arith.mulf %300, %302 : vector<32x256xf32>
    %c15_i32 = arith.constant 15 : i32
    %304 = tpu.dynamic_rotate %295 by %c15_i32 dim 1 : vector<32x256xf32>, i32 -> vector<32x256xf32>
    %c2_82 = arith.constant 2 : index
    %c0_83 = arith.constant 0 : index
    %305 = vector.load %arg9[%c2_82, %c0_83] : memref<11x256xf32, #tpu.memory_space<vmem>>, vector<1x256xf32>
    %306 = vector.broadcast %305 : vector<1x256xf32> to vector<32x256xf32>
    %307 = arith.mulf %304, %306 : vector<32x256xf32>
    %c1_i32 = arith.constant 1 : i32
    %308 = tpu.dynamic_rotate %295 by %c1_i32 dim 1 : vector<32x256xf32>, i32 -> vector<32x256xf32>
    %c3_84 = arith.constant 3 : index
    %c0_85 = arith.constant 0 : index
    %309 = vector.load %arg9[%c3_84, %c0_85] : memref<11x256xf32, #tpu.memory_space<vmem>>, vector<1x256xf32>
    %310 = vector.broadcast %309 : vector<1x256xf32> to vector<32x256xf32>
    %311 = arith.mulf %308, %310 : vector<32x256xf32>
    %c255_i32_86 = arith.constant 255 : i32
    %312 = tpu.dynamic_rotate %295 by %c255_i32_86 dim 1 : vector<32x256xf32>, i32 -> vector<32x256xf32>
    %c5_87 = arith.constant 5 : index
    %c0_88 = arith.constant 0 : index
    %313 = vector.load %arg9[%c5_87, %c0_88] : memref<11x256xf32, #tpu.memory_space<vmem>>, vector<1x256xf32>
    %314 = vector.broadcast %313 : vector<1x256xf32> to vector<32x256xf32>
    %315 = arith.mulf %312, %314 : vector<32x256xf32>
    %c241_i32 = arith.constant 241 : i32
    %316 = tpu.dynamic_rotate %295 by %c241_i32 dim 1 : vector<32x256xf32>, i32 -> vector<32x256xf32>
    %c6_89 = arith.constant 6 : index
    %c0_90 = arith.constant 0 : index
    %317 = vector.load %arg9[%c6_89, %c0_90] : memref<11x256xf32, #tpu.memory_space<vmem>>, vector<1x256xf32>
    %318 = vector.broadcast %317 : vector<1x256xf32> to vector<32x256xf32>
    %319 = arith.mulf %316, %318 : vector<32x256xf32>
    %c240_i32_91 = arith.constant 240 : i32
    %320 = tpu.dynamic_rotate %295 by %c240_i32_91 dim 1 : vector<32x256xf32>, i32 -> vector<32x256xf32>
    %c7 = arith.constant 7 : index
    %c0_92 = arith.constant 0 : index
    %321 = vector.load %arg9[%c7, %c0_92] : memref<11x256xf32, #tpu.memory_space<vmem>>, vector<1x256xf32>
    %322 = vector.broadcast %321 : vector<1x256xf32> to vector<32x256xf32>
    %323 = arith.mulf %320, %322 : vector<32x256xf32>
    %c239_i32 = arith.constant 239 : i32
    %324 = tpu.dynamic_rotate %295 by %c239_i32 dim 1 : vector<32x256xf32>, i32 -> vector<32x256xf32>
    %c8 = arith.constant 8 : index
    %c0_93 = arith.constant 0 : index
    %325 = vector.load %arg9[%c8, %c0_93] : memref<11x256xf32, #tpu.memory_space<vmem>>, vector<1x256xf32>
    %326 = vector.broadcast %325 : vector<1x256xf32> to vector<32x256xf32>
    %327 = arith.mulf %324, %326 : vector<32x256xf32>
    %328 = tpu.concatenate %299, %303, %307, %311, %295, %315, %319, %323, %327 in 0 : vector<32x256xf32>, vector<32x256xf32>, vector<32x256xf32>, vector<32x256xf32>, vector<32x256xf32>, vector<32x256xf32>, vector<32x256xf32>, vector<32x256xf32>, vector<32x256xf32> -> vector<288x256xf32>
    %c0_94 = arith.constant 0 : index
    %c0_95 = arith.constant 0 : index
    %c0_96 = arith.constant 0 : index
    %329 = vector.load %arg7[%c0_94, %c0_95, %c0_96] : memref<2x32x288xf32, #tpu.memory_space<vmem>>, vector<1x32x288xf32>
    %330 = vector.shape_cast %329 : vector<1x32x288xf32> to vector<32x288xf32>
    %cst_97 = arith.constant dense<0.000000e+00> : vector<32x256xf32>
    %331 = tpu.matmul %330, %328, %cst_97 {dimension_numbers = #tpu.dot_dimension_numbers<[1], [0], [0], [1], [0, 0, 1, 1], [], []>} : vector<32x288xf32>, vector<288x256xf32>, vector<32x256xf32> -> vector<32x256xf32>
    %c0_98 = arith.constant 0 : index
    %c7_99 = arith.constant 7 : index
    %332 = vector.load %arg6[%c0_98, %c7_99] : memref<32x9xf32, #tpu.memory_space<vmem>>, vector<32x1xf32>
    %333 = vector.broadcast %332 : vector<32x1xf32> to vector<32x256xf32>
    %334 = arith.addf %331, %333 : vector<32x256xf32>
    %335 = arith.addf %291, %334 : vector<32x256xf32>
    %c17_i32_100 = arith.constant 17 : i32
    %336 = tpu.dynamic_rotate %335 by %c17_i32_100 dim 1 : vector<32x256xf32>, i32 -> vector<32x256xf32>
    %c0_101 = arith.constant 0 : index
    %c0_102 = arith.constant 0 : index
    %337 = vector.load %arg9[%c0_101, %c0_102] : memref<11x256xf32, #tpu.memory_space<vmem>>, vector<1x256xf32>
    %338 = vector.broadcast %337 : vector<1x256xf32> to vector<32x256xf32>
    %339 = arith.mulf %336, %338 : vector<32x256xf32>
    %c16_i32_103 = arith.constant 16 : i32
    %340 = tpu.dynamic_rotate %335 by %c16_i32_103 dim 1 : vector<32x256xf32>, i32 -> vector<32x256xf32>
    %c1_104 = arith.constant 1 : index
    %c0_105 = arith.constant 0 : index
    %341 = vector.load %arg9[%c1_104, %c0_105] : memref<11x256xf32, #tpu.memory_space<vmem>>, vector<1x256xf32>
    %342 = vector.broadcast %341 : vector<1x256xf32> to vector<32x256xf32>
    %343 = arith.mulf %340, %342 : vector<32x256xf32>
    %c15_i32_106 = arith.constant 15 : i32
    %344 = tpu.dynamic_rotate %335 by %c15_i32_106 dim 1 : vector<32x256xf32>, i32 -> vector<32x256xf32>
    %c2_107 = arith.constant 2 : index
    %c0_108 = arith.constant 0 : index
    %345 = vector.load %arg9[%c2_107, %c0_108] : memref<11x256xf32, #tpu.memory_space<vmem>>, vector<1x256xf32>
    %346 = vector.broadcast %345 : vector<1x256xf32> to vector<32x256xf32>
    %347 = arith.mulf %344, %346 : vector<32x256xf32>
    %c1_i32_109 = arith.constant 1 : i32
    %348 = tpu.dynamic_rotate %335 by %c1_i32_109 dim 1 : vector<32x256xf32>, i32 -> vector<32x256xf32>
    %c3_110 = arith.constant 3 : index
    %c0_111 = arith.constant 0 : index
    %349 = vector.load %arg9[%c3_110, %c0_111] : memref<11x256xf32, #tpu.memory_space<vmem>>, vector<1x256xf32>
    %350 = vector.broadcast %349 : vector<1x256xf32> to vector<32x256xf32>
    %351 = arith.mulf %348, %350 : vector<32x256xf32>
    %c255_i32_112 = arith.constant 255 : i32
    %352 = tpu.dynamic_rotate %335 by %c255_i32_112 dim 1 : vector<32x256xf32>, i32 -> vector<32x256xf32>
    %c5_113 = arith.constant 5 : index
    %c0_114 = arith.constant 0 : index
    %353 = vector.load %arg9[%c5_113, %c0_114] : memref<11x256xf32, #tpu.memory_space<vmem>>, vector<1x256xf32>
    %354 = vector.broadcast %353 : vector<1x256xf32> to vector<32x256xf32>
    %355 = arith.mulf %352, %354 : vector<32x256xf32>
    %c241_i32_115 = arith.constant 241 : i32
    %356 = tpu.dynamic_rotate %335 by %c241_i32_115 dim 1 : vector<32x256xf32>, i32 -> vector<32x256xf32>
    %c6_116 = arith.constant 6 : index
    %c0_117 = arith.constant 0 : index
    %357 = vector.load %arg9[%c6_116, %c0_117] : memref<11x256xf32, #tpu.memory_space<vmem>>, vector<1x256xf32>
    %358 = vector.broadcast %357 : vector<1x256xf32> to vector<32x256xf32>
    %359 = arith.mulf %356, %358 : vector<32x256xf32>
    %c240_i32_118 = arith.constant 240 : i32
    %360 = tpu.dynamic_rotate %335 by %c240_i32_118 dim 1 : vector<32x256xf32>, i32 -> vector<32x256xf32>
    %c7_119 = arith.constant 7 : index
    %c0_120 = arith.constant 0 : index
    %361 = vector.load %arg9[%c7_119, %c0_120] : memref<11x256xf32, #tpu.memory_space<vmem>>, vector<1x256xf32>
    %362 = vector.broadcast %361 : vector<1x256xf32> to vector<32x256xf32>
    %363 = arith.mulf %360, %362 : vector<32x256xf32>
    %c239_i32_121 = arith.constant 239 : i32
    %364 = tpu.dynamic_rotate %335 by %c239_i32_121 dim 1 : vector<32x256xf32>, i32 -> vector<32x256xf32>
    %c8_122 = arith.constant 8 : index
    %c0_123 = arith.constant 0 : index
    %365 = vector.load %arg9[%c8_122, %c0_123] : memref<11x256xf32, #tpu.memory_space<vmem>>, vector<1x256xf32>
    %366 = vector.broadcast %365 : vector<1x256xf32> to vector<32x256xf32>
    %367 = arith.mulf %364, %366 : vector<32x256xf32>
    %368 = tpu.concatenate %339, %343, %347, %351, %335, %355, %359, %363, %367 in 0 : vector<32x256xf32>, vector<32x256xf32>, vector<32x256xf32>, vector<32x256xf32>, vector<32x256xf32>, vector<32x256xf32>, vector<32x256xf32>, vector<32x256xf32>, vector<32x256xf32> -> vector<288x256xf32>
    %c1_124 = arith.constant 1 : index
    %c0_125 = arith.constant 0 : index
    %c0_126 = arith.constant 0 : index
    %369 = vector.load %arg7[%c1_124, %c0_125, %c0_126] : memref<2x32x288xf32, #tpu.memory_space<vmem>>, vector<1x32x288xf32>
    %370 = vector.shape_cast %369 : vector<1x32x288xf32> to vector<32x288xf32>
    %cst_127 = arith.constant dense<0.000000e+00> : vector<32x256xf32>
    %371 = tpu.matmul %370, %368, %cst_127 {dimension_numbers = #tpu.dot_dimension_numbers<[1], [0], [0], [1], [0, 0, 1, 1], [], []>} : vector<32x288xf32>, vector<288x256xf32>, vector<32x256xf32> -> vector<32x256xf32>
    %c0_128 = arith.constant 0 : index
    %c8_129 = arith.constant 8 : index
    %372 = vector.load %arg6[%c0_128, %c8_129] : memref<32x9xf32, #tpu.memory_space<vmem>>, vector<32x1xf32>
    %373 = vector.broadcast %372 : vector<32x1xf32> to vector<32x256xf32>
    %374 = arith.addf %371, %373 : vector<32x256xf32>
    %c0_130 = arith.constant 0 : index
    %c0_131 = arith.constant 0 : index
    %c0_132 = arith.constant 0 : index
    %375 = vector.load %arg12[%c0_130, %c0_131, %c0_132] : memref<1x32x256xf32, #tpu.memory_space<vmem>>, vector<1x32x256xf32>
    %376 = vector.shape_cast %375 : vector<1x32x256xf32> to vector<32x256xf32>
    %377 = vector.shape_cast %374 : vector<32x256xf32> to vector<1x32x256xf32>
    tpu.vector_store %arg12[%c0_130, %c0_131, %c0_132], %377 {strides = array<i32>} : memref<1x32x256xf32, #tpu.memory_space<vmem>>, vector<1x32x256xf32>,
    return
  }
  func.func @transform_0(%arg0: i32) -> (i32, i32, i32) {
    %c0_i32 = arith.constant 0 : i32
    %c0_i32_0 = arith.constant 0 : i32
    %c0_i32_1 = arith.constant 0 : i32
    return %arg0, %c0_i32, %c0_i32_0 : i32, i32, i32
  }
  func.func @transform_1(%arg0: i32) -> (i32, i32, i32) {
    %c0_i32 = arith.constant 0 : i32
    %c0_i32_0 = arith.constant 0 : i32
    %c0_i32_1 = arith.constant 0 : i32
    return %arg0, %c0_i32, %c0_i32_0 : i32, i32, i32
  }
  func.func @transform_2(%arg0: i32) -> (i32, i32) {
    %c0_i32 = arith.constant 0 : i32
    %c0_i32_0 = arith.constant 0 : i32
    %c0_i32_1 = arith.constant 0 : i32
    return %c0_i32, %c0_i32_0 : i32, i32
  }
  func.func @transform_3(%arg0: i32) -> (i32, i32, i32) {
    %c0_i32 = arith.constant 0 : i32
    %c0_i32_0 = arith.constant 0 : i32
    %c0_i32_1 = arith.constant 0 : i32
    %c0_i32_2 = arith.constant 0 : i32
    return %c0_i32, %c0_i32_0, %c0_i32_1 : i32, i32, i32
  }
  func.func @transform_4(%arg0: i32) -> (i32, i32, i32) {
    %c0_i32 = arith.constant 0 : i32
    %c0_i32_0 = arith.constant 0 : i32
    %c0_i32_1 = arith.constant 0 : i32
    %c0_i32_2 = arith.constant 0 : i32
    return %c0_i32, %c0_i32_0, %c0_i32_1 : i32, i32, i32
  }
  func.func @transform_5(%arg0: i32) -> (i32, i32) {
    %c0_i32 = arith.constant 0 : i32
    %c0_i32_0 = arith.constant 0 : i32
    %c0_i32_1 = arith.constant 0 : i32
    return %c0_i32, %c0_i32_0 : i32, i32
  }
  func.func @transform_6(%arg0: i32) -> (i32, i32, i32) {
    %c0_i32 = arith.constant 0 : i32
    %c0_i32_0 = arith.constant 0 : i32
    %c0_i32_1 = arith.constant 0 : i32
    %c0_i32_2 = arith.constant 0 : i32
    return %c0_i32, %c0_i32_0, %c0_i32_1 : i32, i32, i32
  }
  func.func @transform_7(%arg0: i32) -> (i32, i32) {
    %c0_i32 = arith.constant 0 : i32
    %c0_i32_0 = arith.constant 0 : i32
    %c0_i32_1 = arith.constant 0 : i32
    return %c0_i32, %c0_i32_0 : i32, i32
  }
  func.func @transform_8(%arg0: i32) -> (i32, i32) {
    %c0_i32 = arith.constant 0 : i32
    %c0_i32_0 = arith.constant 0 : i32
    %c0_i32_1 = arith.constant 0 : i32
    return %c0_i32, %c0_i32_0 : i32, i32
  }
  func.func @transform_9(%arg0: i32) -> (i32, i32) {
    %c0_i32 = arith.constant 0 : i32
    %c0_i32_0 = arith.constant 0 : i32
    %c0_i32_1 = arith.constant 0 : i32
    return %c0_i32, %c0_i32_0 : i32, i32
  }
  func.func @transform_10(%arg0: i32) -> i32 {
    %c0_i32 = arith.constant 0 : i32
    %c0_i32_0 = arith.constant 0 : i32
    return %c0_i32 : i32
  }
  func.func @transform_11(%arg0: i32) -> (i32, i32, i32) {
    %c0_i32 = arith.constant 0 : i32
    %c0_i32_0 = arith.constant 0 : i32
    %c0_i32_1 = arith.constant 0 : i32
    return %arg0, %c0_i32, %c0_i32_0 : i32, i32, i32
  }
}

</mosaic_0001>

<llo_original>
// kernel: sa_embed_forward.1
$region0: #{sa_embed_forward.1}
  #allocation0 [shape = 'u32[]', space=smem, size = 0x4, offset = 0x4, fixed_abs, tag = 'smem constant byte address 0x4 - core index']
  #allocation1 [shape = 'u32[144,128]{1,0:T(1,128)}', space=vmem, size = 0x12000, scoped, tag = 'internal scratch']
  %s0 = inlined_call_operand.vmem [shape: f32[2,8,256], index: 0, kind: input, shape index: {}]
  %s1 = inlined_call_operand.vmem [shape: f32[2,32,64], index: 1, kind: input, shape index: {}]
  %s2 = inlined_call_operand.vmem [shape: f32[32,8], index: 2, kind: input, shape index: {}]
  %s3 = inlined_call_operand.vmem [shape: f32[4,32,32], index: 3, kind: input, shape index: {}]
  %s4 = inlined_call_operand.vmem [shape: f32[2,32,16], index: 4, kind: input, shape index: {}]
  %s5 = inlined_call_operand.vmem [shape: f32[32,9], index: 5, kind: input, shape index: {}]
  %s6 = inlined_call_operand.vmem [shape: f32[2,32,288], index: 6, kind: input, shape index: {}]
  %s7 = inlined_call_operand.vmem [shape: f32[64,256], index: 7, kind: input, shape index: {}]
  %s8 = inlined_call_operand.vmem [shape: f32[11,256], index: 8, kind: input, shape index: {}]
  %s9 = inlined_call_operand.vmem [shape: f32[1,63], index: 9, kind: input, shape index: {}]
  %s10 = inlined_call_operand.vmem [shape: f32[2], index: 10, kind: input, shape index: {}]
  %s11 = inlined_call_operand.vmem [shape: f32[2,32,256], index: 11, kind: output, shape index: {}]
  %s12 = sld [smem:[#allocation0]]
  $region81: #{sa_embed_forward.1} parent=0
    _
  %s14 = ssub.s32 1, %s12
  %s15 = scalar_select 0, %s14, %s12
  $region1: #{sa_embed_forward.1} parent=0
    #allocation2 [shape = 'u8[512]{0}', space=smem, size = 0x200, scoped, tag = 'input window, operand 10, single buffered']
    #allocation3 [shape = 's32[2]{0}', space=sflag, size = 0x8, scoped, tag = 'scoped memory for sa_embed_forward.1']
    %16 = vsyncpa [#allocation3], 0
    loop: start=0, step=1, limit=4
    $region2: #{sa_embed_forward.1} parent=1 // loop_pre_header
      _
    $region3: #{sa_embed_forward.1} parent=1 // loop_header
      %s18 = sphi 0, %s22
      %p19 = scmp.ge.s32.totalorder %s18, 4
      %s28 = sphi 0, %s30
      %s31 = sphi 0, %s28
      %s32 = sphi 0, %s31
      %s48 = sphi 0, %s32
      %s54 = sphi 0, %s56
      %s57 = sphi 0, %s54
      %s58 = sphi 0, %s57
      %s74 = sphi 0, %s58
      %s78 = sphi 0, %s78
      %s80 = sphi 0, %s78
      %s81 = sphi 0, %s80
      %s95 = sphi 0, %s81
      %s99 = sphi 0, %s99
      %s101 = sphi 0, %s99
      %s102 = sphi 0, %s101
      %s116 = sphi 0, %s102
      %s120 = sphi 0, %s120
      %s122 = sphi 0, %s120
      %s123 = sphi 0, %s122
      %s137 = sphi 0, %s123
      %s141 = sphi 0, %s141
      %s143 = sphi 0, %s141
      %s144 = sphi 0, %s143
      %s158 = sphi 0, %s144
      %s162 = sphi 0, %s162
      %s164 = sphi 0, %s162
      %s165 = sphi 0, %s164
      %s179 = sphi 0, %s165
      %s183 = sphi 0, %s183
      %s185 = sphi 0, %s183
      %s186 = sphi 0, %s185
      %s200 = sphi 0, %s186
      %s204 = sphi 0, %s204
      %s206 = sphi 0, %s204
      %s207 = sphi 0, %s206
      %s221 = sphi 0, %s207
      %s225 = sphi 0, %s225
      %s227 = sphi 0, %s225
      %s228 = sphi 0, %s227
      %s242 = sphi 0, %s228
      %s246 = sphi 0, %s246
      %s248 = sphi 0, %s246
      %s249 = sphi 0, %s248
      %s263 = sphi 0, %s249
      %s269 = sphi 0, %s271
      %s272 = sphi 0, %s269
      %s273 = sphi 0, %s272
      %s289 = sphi 0, %s273
    $region4: #{sa_embed_forward.1} parent=1 // loop_header_branch
      %21 = sbr.rel (%p19) target = $region8
    $region5: #{sa_embed_forward.1} parent=1 // loop_body
      %s23 = ssub.s32 %s18, 1
      %s24 = ssub.s32 %s18, 2
      %s25 = sadd.s32 %s18, 1
      %s26 = ssub.s32 %s18, %s25
      %p27 = scmp.eq.s32.totalorder %s26, 0
      %s29 = sadd.s32 %s28, 1
      %s30 = scalar_select %p27, %s28, %s29
      %p33 = pneg %p27
      %p34 = scmp.eq.s32.totalorder %s18, 1
      %p35 = por %p33, %p34
      %p36 = scmp.ne.s32.totalorder %s28, %s31
      %p37 = scmp.eq.s32.totalorder %s18, 0
      %p38 = por %p36, %p37
      %p39 = scmp.ne.s32.totalorder %s28, %s31
      %p40 = scmp.eq.s32.totalorder %s23, 1
      %p41 = por %p39, %p40
      %p42 = scmp.ne.s32.totalorder %s31, %s32
      %p43 = scmp.eq.s32.totalorder %s23, 0
      %p44 = por %p42, %p43
      %p45 = scmp.ne.s32.totalorder %s31, %s32
      %p46 = scmp.eq.s32.totalorder %s24, 1
      %p47 = por %p45, %p46
      %p49 = scmp.ne.s32.totalorder %s32, %s48
      %p50 = scmp.eq.s32.totalorder %s24, 0
      %p51 = por %p49, %p50
      %s52 = ssub.s32 %s18, %s25
      %p53 = scmp.eq.s32.totalorder %s52, 0
      %s55 = sadd.s32 %s54, 1
      %s56 = scalar_select %p53, %s54, %s55
      %p59 = pneg %p53
      %p60 = scmp.eq.s32.totalorder %s18, 1
      %p61 = por %p59, %p60
      %p62 = scmp.ne.s32.totalorder %s54, %s57
      %p63 = scmp.eq.s32.totalorder %s18, 0
      %p64 = por %p62, %p63
      %p65 = scmp.ne.s32.totalorder %s54, %s57
      %p66 = scmp.eq.s32.totalorder %s23, 1
      %p67 = por %p65, %p66
      %p68 = scmp.ne.s32.totalorder %s57, %s58
      %p69 = scmp.eq.s32.totalorder %s23, 0
      %p70 = por %p68, %p69
      %p71 = scmp.ne.s32.totalorder %s57, %s58
      %p72 = scmp.eq.s32.totalorder %s24, 1
      %p73 = por %p71, %p72
      %p75 = scmp.ne.s32.totalorder %s58, %s74
      %p76 = scmp.eq.s32.totalorder %s24, 0
      %p77 = por %p75, %p76
      %s79 = sadd.s32 %s78, 1
      %p82 = scmp.eq.s32.totalorder %s18, 1
      %p83 = scmp.ne.s32.totalorder %s78, %s80
      %p84 = scmp.eq.s32.totalorder %s18, 0
      %p85 = por %p83, %p84
      %p86 = scmp.ne.s32.totalorder %s78, %s80
      %p87 = scmp.eq.s32.totalorder %s23, 1
      %p88 = por %p86, %p87
      %p89 = scmp.ne.s32.totalorder %s80, %s81
      %p90 = scmp.eq.s32.totalorder %s23, 0
      %p91 = por %p89, %p90
      %p92 = scmp.ne.s32.totalorder %s80, %s81
      %p93 = scmp.eq.s32.totalorder %s24, 1
      %p94 = por %p92, %p93
      %p96 = scmp.ne.s32.totalorder %s81, %s95
      %p97 = scmp.eq.s32.totalorder %s24, 0
      %p98 = por %p96, %p97
      %s100 = sadd.s32 %s99, 1
      %p103 = scmp.eq.s32.totalorder %s18, 1
      %p104 = scmp.ne.s32.totalorder %s99, %s101
      %p105 = scmp.eq.s32.totalorder %s18, 0
      %p106 = por %p104, %p105
      %p107 = scmp.ne.s32.totalorder %s99, %s101
      %p108 = scmp.eq.s32.totalorder %s23, 1
      %p109 = por %p107, %p108
      %p110 = scmp.ne.s32.totalorder %s101, %s102
      %p111 = scmp.eq.s32.totalorder %s23, 0
      %p112 = por %p110, %p111
      %p113 = scmp.ne.s32.totalorder %s101, %s102
      %p114 = scmp.eq.s32.totalorder %s24, 1
      %p115 = por %p113, %p114
      %p117 = scmp.ne.s32.totalorder %s102, %s116
      %p118 = scmp.eq.s32.totalorder %s24, 0
      %p119 = por %p117, %p118
      %s121 = sadd.s32 %s120, 1
      %p124 = scmp.eq.s32.totalorder %s18, 1
      %p125 = scmp.ne.s32.totalorder %s120, %s122
      %p126 = scmp.eq.s32.totalorder %s18, 0
      %p127 = por %p125, %p126
      %p128 = scmp.ne.s32.totalorder %s120, %s122
      %p129 = scmp.eq.s32.totalorder %s23, 1
      %p130 = por %p128, %p129
      %p131 = scmp.ne.s32.totalorder %s122, %s123
      %p132 = scmp.eq.s32.totalorder %s23, 0
      %p133 = por %p131, %p132
      %p134 = scmp.ne.s32.totalorder %s122, %s123
      %p135 = scmp.eq.s32.totalorder %s24, 1
      %p136 = por %p134, %p135
      %p138 = scmp.ne.s32.totalorder %s123, %s137
      %p139 = scmp.eq.s32.totalorder %s24, 0
      %p140 = por %p138, %p139
      %s142 = sadd.s32 %s141, 1
      %p145 = scmp.eq.s32.totalorder %s18, 1
      %p146 = scmp.ne.s32.totalorder %s141, %s143
      %p147 = scmp.eq.s32.totalorder %s18, 0
      %p148 = por %p146, %p147
      %p149 = scmp.ne.s32.totalorder %s141, %s143
      %p150 = scmp.eq.s32.totalorder %s23, 1
      %p151 = por %p149, %p150
      %p152 = scmp.ne.s32.totalorder %s143, %s144
      %p153 = scmp.eq.s32.totalorder %s23, 0
      %p154 = por %p152, %p153
      %p155 = scmp.ne.s32.totalorder %s143, %s144
      %p156 = scmp.eq.s32.totalorder %s24, 1
      %p157 = por %p155, %p156
      %p159 = scmp.ne.s32.totalorder %s144, %s158
      %p160 = scmp.eq.s32.totalorder %s24, 0
      %p161 = por %p159, %p160
      %s163 = sadd.s32 %s162, 1
      %p166 = scmp.eq.s32.totalorder %s18, 1
      %p167 = scmp.ne.s32.totalorder %s162, %s164
      %p168 = scmp.eq.s32.totalorder %s18, 0
      %p169 = por %p167, %p168
      %p170 = scmp.ne.s32.totalorder %s162, %s164
      %p171 = scmp.eq.s32.totalorder %s23, 1
      %p172 = por %p170, %p171
      %p173 = scmp.ne.s32.totalorder %s164, %s165
      %p174 = scmp.eq.s32.totalorder %s23, 0
      %p175 = por %p173, %p174
      %p176 = scmp.ne.s32.totalorder %s164, %s165
      %p177 = scmp.eq.s32.totalorder %s24, 1
      %p178 = por %p176, %p177
      %p180 = scmp.ne.s32.totalorder %s165, %s179
      %p181 = scmp.eq.s32.totalorder %s24, 0
      %p182 = por %p180, %p181
      %s184 = sadd.s32 %s183, 1
      %p187 = scmp.eq.s32.totalorder %s18, 1
      %p188 = scmp.ne.s32.totalorder %s183, %s185
      %p189 = scmp.eq.s32.totalorder %s18, 0
      %p190 = por %p188, %p189
      %p191 = scmp.ne.s32.totalorder %s183, %s185
      %p192 = scmp.eq.s32.totalorder %s23, 1
      %p193 = por %p191, %p192
      %p194 = scmp.ne.s32.totalorder %s185, %s186
      %p195 = scmp.eq.s32.totalorder %s23, 0
      %p196 = por %p194, %p195
      %p197 = scmp.ne.s32.totalorder %s185, %s186
      %p198 = scmp.eq.s32.totalorder %s24, 1
      %p199 = por %p197, %p198
      %p201 = scmp.ne.s32.totalorder %s186, %s200
      %p202 = scmp.eq.s32.totalorder %s24, 0
      %p203 = por %p201, %p202
      %s205 = sadd.s32 %s204, 1
      %p208 = scmp.eq.s32.totalorder %s18, 1
      %p209 = scmp.ne.s32.totalorder %s204, %s206
      %p210 = scmp.eq.s32.totalorder %s18, 0
      %p211 = por %p209, %p210
      %p212 = scmp.ne.s32.totalorder %s204, %s206
      %p213 = scmp.eq.s32.totalorder %s23, 1
      %p214 = por %p212, %p213
      %p215 = scmp.ne.s32.totalorder %s206, %s207
      %p216 = scmp.eq.s32.totalorder %s23, 0
      %p217 = por %p215, %p216
      %p218 = scmp.ne.s32.totalorder %s206, %s207
      %p219 = scmp.eq.s32.totalorder %s24, 1
      %p220 = por %p218, %p219
      %p222 = scmp.ne.s32.totalorder %s207, %s221
      %p223 = scmp.eq.s32.totalorder %s24, 0
      %p224 = por %p222, %p223
      %s226 = sadd.s32 %s225, 1
      %p229 = scmp.eq.s32.totalorder %s18, 1
      %p230 = scmp.ne.s32.totalorder %s225, %s227
      %p231 = scmp.eq.s32.totalorder %s18, 0
      %p232 = por %p230, %p231
      %p233 = scmp.ne.s32.totalorder %s225, %s227
      %p234 = scmp.eq.s32.totalorder %s23, 1
      %p235 = por %p233, %p234
      %p236 = scmp.ne.s32.totalorder %s227, %s228
      %p237 = scmp.eq.s32.totalorder %s23, 0
      %p238 = por %p236, %p237
      %p239 = scmp.ne.s32.totalorder %s227, %s228
      %p240 = scmp.eq.s32.totalorder %s24, 1
      %p241 = por %p239, %p240
      %p243 = scmp.ne.s32.totalorder %s228, %s242
      %p244 = scmp.eq.s32.totalorder %s24, 0
      %p245 = por %p243, %p244
      %s247 = sadd.s32 %s246, 1
      %p250 = scmp.eq.s32.totalorder %s18, 1
      %p251 = scmp.ne.s32.totalorder %s246, %s248
      %p252 = scmp.eq.s32.totalorder %s18, 0
      %p253 = por %p251, %p252
      %p254 = scmp.ne.s32.totalorder %s246, %s248
      %p255 = scmp.eq.s32.totalorder %s23, 1
      %p256 = por %p254, %p255
      %p257 = scmp.ne.s32.totalorder %s248, %s249
      %p258 = scmp.eq.s32.totalorder %s23, 0
      %p259 = por %p257, %p258
      %p260 = scmp.ne.s32.totalorder %s248, %s249
      %p261 = scmp.eq.s32.totalorder %s24, 1
      %p262 = por %p260, %p261
      %p264 = scmp.ne.s32.totalorder %s249, %s263
      %p265 = scmp.eq.s32.totalorder %s24, 0
      %p266 = por %p264, %p265
      %s267 = ssub.s32 %s18, %s25
      %p268 = scmp.eq.s32.totalorder %s267, 0
      %s270 = sadd.s32 %s269, 1
      %s271 = scalar_select %p268, %s269, %s270
      %p274 = pneg %p268
      %p275 = scmp.eq.s32.totalorder %s18, 1
      %p276 = por %p274, %p275
      %p277 = scmp.ne.s32.totalorder %s269, %s272
      %p278 = scmp.eq.s32.totalorder %s18, 0
      %p279 = por %p277, %p278
      %p280 = scmp.ne.s32.totalorder %s269, %s272
      %p281 = scmp.eq.s32.totalorder %s23, 1
      %p282 = por %p280, %p281
      %p283 = scmp.ne.s32.totalorder %s272, %s273
      %p284 = scmp.eq.s32.totalorder %s23, 0
      %p285 = por %p283, %p284
      %p286 = scmp.ne.s32.totalorder %s272, %s273
      %p287 = scmp.eq.s32.totalorder %s24, 1
      %p288 = por %p286, %p287
      %p290 = scmp.ne.s32.totalorder %s273, %s289
      %p291 = scmp.eq.s32.totalorder %s24, 0
      %p292 = por %p290, %p291
      %p293 = scmp.le.s32.totalorder 1, %s18
      %p294 = scmp.lt.s32.totalorder %s18, 3
      %p295 = pnand %p293, %p294
      %p296 = pneg %p295
      // Predicated region
      $region9: #{sa_embed_forward.1} parent=5 // pred_check
        _
      $region10: #{sa_embed_forward.1} parent=5 // pred_check_branch
        %298 = sbr.rel (%p295) target = $region12
      $region11: #{sa_embed_forward.1} parent=5 // pred_region
        %s299 = ssub.s32 %s18, 1
        // Predicated region
        $region13: #{sa_embed_forward.1} parent=11 // pred_check
          %p300 = pneg %p91
        $region14: #{sa_embed_forward.1} parent=11 // pred_check_branch
          %302 = sbr.rel (%p300) target = $region16
        $region15: #{sa_embed_forward.1} parent=11 // pred_region
          _
        $region16: #{sa_embed_forward.1} parent=11 // pred_fallthru
          _
        // Predicated region
        $region17: #{sa_embed_forward.1} parent=11 // pred_check
          %p303 = pneg %p112
        $region18: #{sa_embed_forward.1} parent=11 // pred_check_branch
          %305 = sbr.rel (%p303) target = $region20
        $region19: #{sa_embed_forward.1} parent=11 // pred_region
          _
        $region20: #{sa_embed_forward.1} parent=11 // pred_fallthru
          _
        // Predicated region
        $region21: #{sa_embed_forward.1} parent=11 // pred_check
          %p306 = pneg %p133
        $region22: #{sa_embed_forward.1} parent=11 // pred_check_branch
          %308 = sbr.rel (%p306) target = $region24
        $region23: #{sa_embed_forward.1} parent=11 // pred_region
          _
        $region24: #{sa_embed_forward.1} parent=11 // pred_fallthru
          _
        // Predicated region
        $region25: #{sa_embed_forward.1} parent=11 // pred_check
          %p309 = pneg %p154
        $region26: #{sa_embed_forward.1} parent=11 // pred_check_branch
          %311 = sbr.rel (%p309) target = $region28
        $region27: #{sa_embed_forward.1} parent=11 // pred_region
          _
        $region28: #{sa_embed_forward.1} parent=11 // pred_fallthru
          _
        // Predicated region
        $region29: #{sa_embed_forward.1} parent=11 // pred_check
          %p312 = pneg %p175
        $region30: #{sa_embed_forward.1} parent=11 // pred_check_branch
          %314 = sbr.rel (%p312) target = $region32
        $region31: #{sa_embed_forward.1} parent=11 // pred_region
          _
        $region32: #{sa_embed_forward.1} parent=11 // pred_fallthru
          _
        // Predicated region
        $region33: #{sa_embed_forward.1} parent=11 // pred_check
          %p315 = pneg %p196
        $region34: #{sa_embed_forward.1} parent=11 // pred_check_branch
          %317 = sbr.rel (%p315) target = $region36
        $region35: #{sa_embed_forward.1} parent=11 // pred_region
          _
        $region36: #{sa_embed_forward.1} parent=11 // pred_fallthru
          _
        // Predicated region
        $region37: #{sa_embed_forward.1} parent=11 // pred_check
          %p318 = pneg %p217
        $region38: #{sa_embed_forward.1} parent=11 // pred_check_branch
          %320 = sbr.rel (%p318) target = $region40
        $region39: #{sa_embed_forward.1} parent=11 // pred_region
          _
        $region40: #{sa_embed_forward.1} parent=11 // pred_fallthru
          _
        // Predicated region
        $region41: #{sa_embed_forward.1} parent=11 // pred_check
          %p321 = pneg %p238
        $region42: #{sa_embed_forward.1} parent=11 // pred_check_branch
          %323 = sbr.rel (%p321) target = $region44
        $region43: #{sa_embed_forward.1} parent=11 // pred_region
          _
        $region44: #{sa_embed_forward.1} parent=11 // pred_fallthru
          _
        // Predicated region
        $region45: #{sa_embed_forward.1} parent=11 // pred_check
          %p324 = pneg %p259
        $region46: #{sa_embed_forward.1} parent=11 // pred_check_branch
          %326 = sbr.rel (%p324) target = $region48
        $region47: #{sa_embed_forward.1} parent=11 // pred_region
          %s328 = ssub.s32 16, 16
          %329 = vsyncadd [#allocation3], %s328
          %s331 = sshll.u32 %s10, 4
          %s332 = int_to_ptr.vmem [resolvable:$true] %s331
          %334 = dma.vmem_to_smem %s332, 16, [#allocation2], [#allocation3]
        $region48: #{sa_embed_forward.1} parent=11 // pred_fallthru
          _
      $region12: #{sa_embed_forward.1} parent=5 // pred_fallthru
        _
      %p335 = scmp.lt.s32.totalorder %s18, 2
      // Predicated region
      $region49: #{sa_embed_forward.1} parent=5 // pred_check
        %p336 = pneg %p335
      $region50: #{sa_embed_forward.1} parent=5 // pred_check_branch
        %338 = sbr.rel (%p336) target = $region52
      $region51: #{sa_embed_forward.1} parent=5 // pred_region
        // Predicated region
        $region53: #{sa_embed_forward.1} parent=51 // pred_check
          %p339 = pneg %p38
        $region54: #{sa_embed_forward.1} parent=51 // pred_check_branch
          %341 = sbr.rel (%p339) target = $region56
        $region55: #{sa_embed_forward.1} parent=51 // pred_region
          %p342 = scmp.lt.s32.totalorder %s18, 1
          %s343 = scalar_select %p342, %s18, 1
          %s344 = smul.addr %s343, 2
          %s345 = smul.addr %s344, 8
          %s346 = scalar_lea.vmem %s0, %s345
        $region56: #{sa_embed_forward.1} parent=51 // pred_fallthru
          _
        // Predicated region
        $region57: #{sa_embed_forward.1} parent=51 // pred_check
          %p347 = pneg %p64
        $region58: #{sa_embed_forward.1} parent=51 // pred_check_branch
          %349 = sbr.rel (%p347) target = $region60
        $region59: #{sa_embed_forward.1} parent=51 // pred_region
          %p350 = scmp.lt.s32.totalorder %s18, 1
          %s351 = scalar_select %p350, %s18, 1
          %s352 = smul.addr %s351, 4
          %s353 = smul.addr %s352, 8
          %s354 = scalar_lea.vmem %s1, %s353
        $region60: #{sa_embed_forward.1} parent=51 // pred_fallthru
          _
      $region52: #{sa_embed_forward.1} parent=5 // pred_fallthru
        _
      %p355 = scmp.le.s32.totalorder 1, %s18
      %p356 = scmp.lt.s32.totalorder %s18, 3
      %p357 = pnand %p355, %p356
      %p358 = pneg %p357
      // Predicated region
      $region61: #{sa_embed_forward.1} parent=5 // pred_check
        _
      $region62: #{sa_embed_forward.1} parent=5 // pred_check_branch
        %360 = sbr.rel (%p357) target = $region64
      $region63: #{sa_embed_forward.1} parent=5 // pred_region
        %s361 = ssub.s32 %s18, 1
        // Predicated region
        $region65: #{sa_embed_forward.1} parent=63 // pred_check
          %p362 = pneg %p259
        $region66: #{sa_embed_forward.1} parent=63 // pred_check_branch
          %364 = sbr.rel (%p362) target = $region68
        $region67: #{sa_embed_forward.1} parent=63 // pred_region
          %365 = dma.done [#allocation3], 16
        $region68: #{sa_embed_forward.1} parent=63 // pred_fallthru
          _
        %366 = sfence
        %p367 = scmp.lt.s32.totalorder %s23, 1
        %s368 = scalar_select %p367, %s23, 1
        %s369 = smul.addr %s368, 2
        %s370 = smul.addr %s369, 8
        %s371 = scalar_lea.vmem %s0, %s370
        %p372 = pneg %p44
        %p373 = pneg %p41
        %p374 = scmp.lt.s32.totalorder %s23, 1
        %s375 = scalar_select %p374, %s23, 1
        %s376 = smul.addr %s375, 4
        %s377 = smul.addr %s376, 8
        %s378 = scalar_lea.vmem %s1, %s377
        %p379 = pneg %p70
        %p380 = pneg %p67
        %p381 = pneg %p91
        %p382 = pneg %p88
        %p383 = pneg %p112
        %p384 = pneg %p109
        %p385 = pneg %p133
        %p386 = pneg %p130
        %p387 = pneg %p154
        %p388 = pneg %p151
        %p389 = pneg %p175
        %p390 = pneg %p172
        %p391 = pneg %p196
        %p392 = pneg %p193
        %p393 = pneg %p217
        %p394 = pneg %p214
        %p395 = pneg %p238
        %p396 = pneg %p235
        %p397 = pneg %p259
        %p398 = pneg %p256
        %p399 = pneg %p285
        %p400 = pneg %p282
        %p401 = scmp.lt.s32.totalorder %s23, 1
        %s402 = scalar_select %p401, %s23, 1
        %s403 = smul.addr %s402, 8
        %s404 = smul.addr %s403, 8
        %s405 = scalar_lea.vmem %s11, %s404
        %p406 = scmp.lt.s32.totalorder %s23, 1
        %s407 = scalar_select %p406, %s23, 1
        %s408 = smul.addr %s407, 2
        %s409 = smul.addr %s408, 8
        %s410 = scalar_lea.vmem %s0, %s409
        %p411 = scmp.lt.s32.totalorder %s23, 1
        %s412 = scalar_select %p411, %s23, 1
        %s413 = smul.addr %s412, 4
        %s414 = smul.addr %s413, 8
        %s415 = scalar_lea.vmem %s1, %s414
        %p416 = scmp.lt.s32.totalorder %s23, 1
        %s417 = scalar_select %p416, %s23, 1
        %s418 = smul.addr %s417, 8
        %s419 = smul.addr %s418, 8
        %s420 = scalar_lea.vmem %s11, %s419
        %v421 = vld [vmem:[%s410] sm:$0xff]
        %v422 = vld [vmem:[%s410 + $0x8] sm:$0xff]
        %v423 = vld [vmem:[%s2] sm:$0xff]
        %v424 = vld [vmem:[%s2 + $0x8] sm:$0xff]
        %v425 = vld [vmem:[%s2 + $0x10] sm:$0xff]
        %v426 = vld [vmem:[%s2 + $0x18] sm:$0xff]
        %v427 = vld [vmem:[%s5] sm:$0xff]
        %v428 = vld [vmem:[%s5 + $0x8] sm:$0xff]
        %v429 = vld [vmem:[%s5 + $0x10] sm:$0xff]
        %v430 = vld [vmem:[%s5 + $0x18] sm:$0xff]
        %432 = vset.pattern.permute.xlu0 0
        %433 = vperm.xlu0 %432, %v427
        %v434 = vpop.permute.xlu0 %433
        %437 = vset.pattern.permute.xlu0 0
        %438 = vperm.xlu0 %437, %v428
        %v439 = vpop.permute.xlu0 %438
        %442 = vset.pattern.permute.xlu0 0
        %443 = vperm.xlu0 %442, %v429
        %v444 = vpop.permute.xlu0 %443
        %447 = vset.pattern.permute.xlu0 0
        %448 = vperm.xlu0 %447, %v430
        %v449 = vpop.permute.xlu0 %448
        %vm451 = vcmask 64512
        %v453 = vsel %vm451, %v423, 0
        %v456 = vsel %vm451, %v424, 0
        %v459 = vsel %vm451, %v425, 0
        %v462 = vsel %vm451, %v426, 0
        %464 = vmatprep.subr.mxu0 %v422
        %465 = vmatpush1.msra.mxu0 %v421
        %466 = vmatprep.subr.mxu0 0.0
        %467 = vmatpush1.msra.mxu0 0.0
        %468 = vmatprep.subr.mxu0 0.0
        %469 = vmatpush1.msra.mxu0 0.0
        %470 = vmatprep.subr.mxu0 0.0
        %471 = vmatpush1.msra.mxu0 0.0
        %472 = vmatprep.subr.mxu0 0.0
        %473 = vmatpush1.msra.mxu0 0.0
        %474 = vmatprep.subr.mxu0 0.0
        %475 = vmatpush1.msra.mxu0 0.0
        %476 = vmatprep.subr.mxu0 0.0
        %477 = vmatpush1.msra.mxu0 0.0
        %478 = vmatprep.subr.mxu0 0.0
        %479 = vmatpush1.msra.mxu0 0.0
        %480 = vmatprep.subr.mxu0 0.0
        %481 = vmatpush1.msra.mxu0 0.0
        %482 = vmatprep.subr.mxu0 0.0
        %483 = vmatpush1.msra.mxu0 0.0
        %484 = vmatprep.subr.mxu0 0.0
        %485 = vmatpush1.msra.mxu0 0.0
        %486 = vmatprep.subr.mxu0 0.0
        %487 = vmatpush1.msra.mxu0 0.0
        %488 = vmatprep.subr.mxu0 0.0
        %489 = vmatpush1.msra.mxu0 0.0
        %490 = vmatprep.subr.mxu0 0.0
        %491 = vmatpush1.msra.mxu0 0.0
        %492 = vmatprep.subr.mxu0 0.0
        %493 = vmatpush1.msra.mxu0 0.0
        %494 = vmatprep.subr.mxu0 0.0
        %495 = vmatpush1.msra.mxu0 0.0
        %496 = vmatprep.subr.mxu0 0.0
        %497 = vmatpush1.msra.mxu0 0.0
        %498 = vmatprep.subr.mxu0 0.0
        %499 = vmatpush1.msra.mxu0 0.0
        %500 = vmatprep.subr.mxu0 0.0
        %501 = vmatpush1.msra.mxu0 0.0
        %502 = vmatprep.subr.mxu0 0.0
        %503 = vmatpush1.msra.mxu0 0.0
        %504 = vmatprep.subr.mxu0 0.0
        %505 = vmatpush1.msra.mxu0 0.0
        %506 = vmatprep.subr.mxu0 0.0
        %507 = vmatpush1.msra.mxu0 0.0
        %508 = vmatprep.subr.mxu0 0.0
        %509 = vmatpush1.msra.mxu0 0.0
        %510 = vmatprep.subr.mxu0 0.0
        %511 = vmatpush1.msra.mxu0 0.0
        %512 = vmatprep.subr.mxu0 0.0
        %513 = vmatpush1.msra.mxu0 0.0
        %514 = vmatprep.subr.mxu0 0.0
        %515 = vmatpush1.msra.mxu0 0.0
        %516 = vmatprep.subr.mxu0 0.0
        %517 = vmatpush1.msra.mxu0 0.0
        %518 = vmatprep.subr.mxu0 0.0
        %519 = vmatpush1.msra.mxu0 0.0
        %520 = vmatprep.subr.mxu0 0.0
        %521 = vmatpush1.msra.mxu0 0.0
        %522 = vmatprep.subr.mxu0 0.0
        %523 = vmatpush1.msra.mxu0 0.0
        %524 = vmatprep.subr.mxu0 0.0
        %525 = vmatpush1.msra.mxu0 0.0
        %526 = vmatprep.subr.mxu0 0.0
        %527 = vmatpush1.msra.mxu0 0.0
        %528 = vmatprep.mubr.f32.mxu0 0.0
        %529 = vmatmul.mubr.f32.gmra.mrb[0].mxu0 %v453
        %v530 = vpop.f32.mrb[0].mxu0
        %v531 = vadd.f32 %v434, %v530
        %v532 = vpop.f32.mrb[0].mxu0
        %v533 = vadd.f32 %v434, %v532
        %534 = vmatprep.mubr.f32.mxu0 0.0
        %535 = vmatmul.mubr.f32.gmra.mrb[0].mxu0 %v456
        %v536 = vpop.f32.mrb[0].mxu0
        %v537 = vadd.f32 %v439, %v536
        %v538 = vpop.f32.mrb[0].mxu0
        %v539 = vadd.f32 %v439, %v538
        %540 = vmatprep.mubr.f32.mxu0 0.0
        %541 = vmatmul.mubr.f32.gmra.mrb[0].mxu0 %v459
        %v542 = vpop.f32.mrb[0].mxu0
        %v543 = vadd.f32 %v444, %v542
        %v544 = vpop.f32.mrb[0].mxu0
        %v545 = vadd.f32 %v444, %v544
        %546 = vmatprep.mubr.f32.mxu0 0.0
        %547 = vmatmul.mubr.f32.gmra.mrb[0].mxu0 %v462
        %v548 = vpop.f32.mrb[0].mxu0
        %v549 = vadd.f32 %v449, %v548
        %v550 = vpop.f32.mrb[0].mxu0
        %v551 = vadd.f32 %v449, %v550
        %552 = vdwg.mxu0
        %s553 = scalar_lea.vmem %s8, 17
        %v554 = vld [vmem:[%s553] ss:$8 sm:$0x3]
        %s555 = scalar_lea.vmem %s8, 18
        %v556 = vld [vmem:[%s555] ss:$8 sm:$0x3]
        %557 = vrot.lane.b32.xlu0 %v531, 112
        %v558 = vpop.permute.xlu0 %557
        %559 = vrot.lane.b32.xlu0 %v537, 112
        %v560 = vpop.permute.xlu0 %559
        %561 = vrot.lane.b32.xlu0 %v543, 112
        %v562 = vpop.permute.xlu0 %561
        %563 = vrot.lane.b32.xlu0 %v549, 112
        %v564 = vpop.permute.xlu0 %563
        %565 = vrot.lane.b32.xlu0 %v533, 112
        %v566 = vpop.permute.xlu0 %565
        %567 = vrot.lane.b32.xlu0 %v539, 112
        %v568 = vpop.permute.xlu0 %567
        %569 = vrot.lane.b32.xlu0 %v545, 112
        %v570 = vpop.permute.xlu0 %569
        %571 = vrot.lane.b32.xlu0 %v551, 112
        %v572 = vpop.permute.xlu0 %571
        %v573 = vlaneseq
        %v574 = vand.u32 %v573, 127
        %vm575 = vcmp.lt.s32.totalorder %v574, 112
        %v576 = vsel %vm575, %v558, %v566
        %v577 = vsel %vm575, %v560, %v568
        %v578 = vsel %vm575, %v562, %v570
        %v579 = vsel %vm575, %v564, %v572
        %v580 = vsel %vm575, %v566, %v558
        %v581 = vsel %vm575, %v568, %v560
        %v582 = vsel %vm575, %v570, %v562
        %v583 = vsel %vm575, %v572, %v564
        %v584 = vsub.f32 %v576, %v531
        %v585 = vsub.f32 %v580, %v533
        %v586 = vsub.f32 %v577, %v537
        %v587 = vsub.f32 %v581, %v539
        %v588 = vsub.f32 %v578, %v543
        %v589 = vsub.f32 %v582, %v545
        %v590 = vsub.f32 %v579, %v549
        %v591 = vsub.f32 %v583, %v551
        %v593 = vlaneseq
        %v594 = vshrl.u32 %v593, 7
        %v595 = vsub.s32 0, %v594
        %v596 = vrot.slane %v554, %v595
        %v597 = vlaneseq
        %v598 = vshrl.u32 %v597, 7
        %v599 = vsub.s32 1, %v598
        %v600 = vrot.slane %v554, %v599
        %v603 = vmul.f32 %v584, %v596
        %v604 = vmul.f32 %v585, %v600
        %v605 = vmul.f32 %v586, %v596
        %v606 = vmul.f32 %v587, %v600
        %v607 = vmul.f32 %v588, %v596
        %v608 = vmul.f32 %v589, %v600
        %v609 = vmul.f32 %v590, %v596
        %v610 = vmul.f32 %v591, %v600
        %611 = vrot.lane.b32.xlu0 %v531, 127
        %v612 = vpop.permute.xlu0 %611
        %613 = vrot.lane.b32.xlu0 %v537, 127
        %v614 = vpop.permute.xlu0 %613
        %615 = vrot.lane.b32.xlu0 %v543, 127
        %v616 = vpop.permute.xlu0 %615
        %617 = vrot.lane.b32.xlu0 %v549, 127
        %v618 = vpop.permute.xlu0 %617
        %619 = vrot.lane.b32.xlu0 %v533, 127
        %v620 = vpop.permute.xlu0 %619
        %621 = vrot.lane.b32.xlu0 %v539, 127
        %v622 = vpop.permute.xlu0 %621
        %623 = vrot.lane.b32.xlu0 %v545, 127
        %v624 = vpop.permute.xlu0 %623
        %625 = vrot.lane.b32.xlu0 %v551, 127
        %v626 = vpop.permute.xlu0 %625
        %vm627 = vcmp.lt.s32.totalorder %v574, 127
        %v628 = vsel %vm627, %v612, %v620
        %v629 = vsel %vm627, %v614, %v622
        %v630 = vsel %vm627, %v616, %v624
        %v631 = vsel %vm627, %v618, %v626
        %v632 = vsel %vm627, %v620, %v612
        %v633 = vsel %vm627, %v622, %v614
        %v634 = vsel %vm627, %v624, %v616
        %v635 = vsel %vm627, %v626, %v618
        %v636 = vsub.f32 %v628, %v531
        %v637 = vsub.f32 %v632, %v533
        %v638 = vsub.f32 %v629, %v537
        %v639 = vsub.f32 %v633, %v539
        %v640 = vsub.f32 %v630, %v543
        %v641 = vsub.f32 %v634, %v545
        %v642 = vsub.f32 %v631, %v549
        %v643 = vsub.f32 %v635, %v551
        %v645 = vlaneseq
        %v646 = vshrl.u32 %v645, 7
        %v647 = vsub.s32 0, %v646
        %v648 = vrot.slane %v556, %v647
        %v649 = vlaneseq
        %v650 = vshrl.u32 %v649, 7
        %v651 = vsub.s32 1, %v650
        %v652 = vrot.slane %v556, %v651
        %v655 = vmul.f32 %v636, %v648
        %v656 = vmul.f32 %v637, %v652
        %v657 = vmul.f32 %v638, %v648
        %v658 = vmul.f32 %v639, %v652
        %v659 = vmul.f32 %v640, %v648
        %v660 = vmul.f32 %v641, %v652
        %v661 = vmul.f32 %v642, %v648
        %v662 = vmul.f32 %v643, %v652
        %v663 = vmul.f32 %v603, %v603
        %v664 = vmul.f32 %v604, %v604
        %v665 = vmul.f32 %v605, %v605
        %v666 = vmul.f32 %v606, %v606
        %v667 = vmul.f32 %v607, %v607
        %v668 = vmul.f32 %v608, %v608
        %v669 = vmul.f32 %v609, %v609
        %v670 = vmul.f32 %v610, %v610
        %v671 = vadd.f32 %v663, %v664
        %672 = vadd.xlane.f32.xlu0 %v671
        %v673 = vpop.xlane.xlu0 %672
        %v674 = vadd.f32 %v665, %v666
        %675 = vadd.xlane.f32.xlu0 %v674
        %v676 = vpop.xlane.xlu0 %675
        %v677 = vadd.f32 %v667, %v668
        %678 = vadd.xlane.f32.xlu0 %v677
        %v679 = vpop.xlane.xlu0 %678
        %v680 = vadd.f32 %v669, %v670
        %681 = vadd.xlane.f32.xlu0 %v680
        %v682 = vpop.xlane.xlu0 %681
        %v683 = vmul.f32 %v673, 0.004166667
        %v684 = vmul.f32 %v676, 0.004166667
        %v685 = vmul.f32 %v679, 0.004166667
        %v686 = vmul.f32 %v682, 0.004166667
        %v687 = vmul.f32 %v655, %v655
        %v688 = vmul.f32 %v656, %v656
        %v689 = vmul.f32 %v657, %v657
        %v690 = vmul.f32 %v658, %v658
        %v691 = vmul.f32 %v659, %v659
        %v692 = vmul.f32 %v660, %v660
        %v693 = vmul.f32 %v661, %v661
        %v694 = vmul.f32 %v662, %v662
        %v695 = vadd.f32 %v687, %v688
        %696 = vadd.xlane.f32.xlu0 %v695
        %v697 = vpop.xlane.xlu0 %696
        %v698 = vadd.f32 %v689, %v690
        %699 = vadd.xlane.f32.xlu0 %v698
        %v700 = vpop.xlane.xlu0 %699
        %v701 = vadd.f32 %v691, %v692
        %702 = vadd.xlane.f32.xlu0 %v701
        %v703 = vpop.xlane.xlu0 %702
        %v704 = vadd.f32 %v693, %v694
        %705 = vadd.xlane.f32.xlu0 %v704
        %v706 = vpop.xlane.xlu0 %705
        %v707 = vmul.f32 %v697, 0.004166667
        %v708 = vmul.f32 %v700, 0.004166667
        %v709 = vmul.f32 %v703, 0.004166667
        %v710 = vmul.f32 %v706, 0.004166667
        %v711 = vadd.f32 %v683, %v707
        %v712 = vadd.f32 %v684, %v708
        %v713 = vadd.f32 %v685, %v709
        %v714 = vadd.f32 %v686, %v710
        %v715 = vld [vmem:[%s3] sm:$0xff]
        %v716 = vld [vmem:[%s3 + $0x8] sm:$0xff]
        %v717 = vld [vmem:[%s3 + $0x10] sm:$0xff]
        %v718 = vld [vmem:[%s3 + $0x18] sm:$0xff]
        %719 = vrot.lane.b32.xlu0 %v427, 127
        %v720 = vpop.permute.xlu0 %719
        %721 = vrot.lane.b32.xlu0 %v428, 127
        %v722 = vpop.permute.xlu0 %721
        %723 = vrot.lane.b32.xlu0 %v429, 127
        %v724 = vpop.permute.xlu0 %723
        %725 = vrot.lane.b32.xlu0 %v430, 127
        %v726 = vpop.permute.xlu0 %725
        %vm731 = vcmask 261120
        %v733 = vsel %vm731, %v715, 0
        %v736 = vsel %vm731, %v716, 0
        %v739 = vsel %vm731, %v717, 0
        %v742 = vsel %vm731, %v718, 0
        %744 = vmatprep.subr.mxu0 0.0
        %745 = vmatpush1.msra.mxu0 %v711
        %746 = vmatprep.subr.mxu0 0.0
        %747 = vmatpush1.msra.mxu0 %v712
        %748 = vmatprep.subr.mxu0 0.0
        %749 = vmatpush1.msra.mxu0 %v713
        %750 = vmatprep.subr.mxu0 0.0
        %751 = vmatpush1.msra.mxu0 %v714
        %752 = vmatprep.subr.mxu0 0.0
        %753 = vmatpush1.msra.mxu0 0.0
        %754 = vmatprep.subr.mxu0 0.0
        %755 = vmatpush1.msra.mxu0 0.0
        %756 = vmatprep.subr.mxu0 0.0
        %757 = vmatpush1.msra.mxu0 0.0
        %758 = vmatprep.subr.mxu0 0.0
        %759 = vmatpush1.msra.mxu0 0.0
        %760 = vmatprep.subr.mxu0 0.0
        %761 = vmatpush1.msra.mxu0 0.0
        %762 = vmatprep.subr.mxu0 0.0
        %763 = vmatpush1.msra.mxu0 0.0
        %764 = vmatprep.subr.mxu0 0.0
        %765 = vmatpush1.msra.mxu0 0.0
        %766 = vmatprep.subr.mxu0 0.0
        %767 = vmatpush1.msra.mxu0 0.0
        %768 = vmatprep.subr.mxu0 0.0
        %769 = vmatpush1.msra.mxu0 0.0
        %770 = vmatprep.subr.mxu0 0.0
        %771 = vmatpush1.msra.mxu0 0.0
        %772 = vmatprep.subr.mxu0 0.0
        %773 = vmatpush1.msra.mxu0 0.0
        %774 = vmatprep.subr.mxu0 0.0
        %775 = vmatpush1.msra.mxu0 0.0
        %776 = vmatprep.subr.mxu0 0.0
        %777 = vmatpush1.msra.mxu0 0.0
        %778 = vmatprep.subr.mxu0 0.0
        %779 = vmatpush1.msra.mxu0 0.0
        %780 = vmatprep.subr.mxu0 0.0
        %781 = vmatpush1.msra.mxu0 0.0
        %782 = vmatprep.subr.mxu0 0.0
        %783 = vmatpush1.msra.mxu0 0.0
        %784 = vmatprep.subr.mxu0 0.0
        %785 = vmatpush1.msra.mxu0 0.0
        %786 = vmatprep.subr.mxu0 0.0
        %787 = vmatpush1.msra.mxu0 0.0
        %788 = vmatprep.subr.mxu0 0.0
        %789 = vmatpush1.msra.mxu0 0.0
        %790 = vmatprep.subr.mxu0 0.0
        %791 = vmatpush1.msra.mxu0 0.0
        %792 = vmatprep.subr.mxu0 0.0
        %793 = vmatpush1.msra.mxu0 0.0
        %794 = vmatprep.subr.mxu0 0.0
        %795 = vmatpush1.msra.mxu0 0.0
        %796 = vmatprep.subr.mxu0 0.0
        %797 = vmatpush1.msra.mxu0 0.0
        %798 = vmatprep.subr.mxu0 0.0
        %799 = vmatpush1.msra.mxu0 0.0
        %800 = vmatprep.subr.mxu0 0.0
        %801 = vmatpush1.msra.mxu0 0.0
        %802 = vmatprep.subr.mxu0 0.0
        %803 = vmatpush1.msra.mxu0 0.0
        %804 = vmatprep.subr.mxu0 0.0
        %805 = vmatpush1.msra.mxu0 0.0
        %806 = vmatprep.subr.mxu0 0.0
        %807 = vmatpush1.msra.mxu0 0.0
        %808 = vmatprep.mubr.f32.mxu0 0.0
        %809 = vmatmul.mubr.f32.gmra.mrb[0].mxu0 %v733
        %v810 = vpop.f32.mrb[0].mxu0
        %v811 = vadd.f32 %v720, %v810
        %v812 = vpop.f32.mrb[0].mxu0
        %813 = vmatprep.mubr.f32.mxu0 0.0
        %814 = vmatmul.mubr.f32.gmra.mrb[0].mxu0 %v736
        %v815 = vpop.f32.mrb[0].mxu0
        %v816 = vadd.f32 %v722, %v815
        %v817 = vpop.f32.mrb[0].mxu0
        %818 = vmatprep.mubr.f32.mxu0 0.0
        %819 = vmatmul.mubr.f32.gmra.mrb[0].mxu0 %v739
        %v820 = vpop.f32.mrb[0].mxu0
        %v821 = vadd.f32 %v724, %v820
        %v822 = vpop.f32.mrb[0].mxu0
        %823 = vmatprep.mubr.f32.mxu0 0.0
        %824 = vmatmul.mubr.f32.gmra.mrb[0].mxu0 %v742
        %v825 = vpop.f32.mrb[0].mxu0
        %v826 = vadd.f32 %v726, %v825
        %v827 = vpop.f32.mrb[0].mxu0
        %828 = vdwg.mxu0
        %v829 = vld [vmem:[%s415] sm:$0xff]
        %v830 = vld [vmem:[%s415 + $0x8] sm:$0xff]
        %v831 = vld [vmem:[%s415 + $0x10] sm:$0xff]
        %v832 = vld [vmem:[%s415 + $0x18] sm:$0xff]
        %837 = vrot.lane.b32.xlu0 %v829, 8
        %v838 = vpop.permute.xlu0 %837
        %839 = vrot.lane.b32.xlu0 %v830, 8
        %v840 = vpop.permute.xlu0 %839
        %841 = vrot.lane.b32.xlu0 %v831, 8
        %v842 = vpop.permute.xlu0 %841
        %843 = vrot.lane.b32.xlu0 %v832, 8
        %v844 = vpop.permute.xlu0 %843
        %v849 = vsub.f32 %v829, %v838
        %v850 = vsub.f32 %v830, %v840
        %v851 = vsub.f32 %v831, %v842
        %v852 = vsub.f32 %v832, %v844
        %853 = vrot.lane.b32.xlu0 %v829, 1
        %v854 = vpop.permute.xlu0 %853
        %855 = vrot.lane.b32.xlu0 %v830, 1
        %v856 = vpop.permute.xlu0 %855
        %857 = vrot.lane.b32.xlu0 %v831, 1
        %v858 = vpop.permute.xlu0 %857
        %859 = vrot.lane.b32.xlu0 %v832, 1
        %v860 = vpop.permute.xlu0 %859
        %v865 = vsub.f32 %v829, %v854
        %v866 = vsub.f32 %v830, %v856
        %v867 = vsub.f32 %v831, %v858
        %v868 = vsub.f32 %v832, %v860
        %v869 = vld [vmem:[%s9] sm:$0x1]
        %v871 = vlaneseq
        %v872 = vshrl.u32 %v871, 7
        %v873 = vsub.s32 0, %v872
        %v874 = vrot.slane %v869, %v873
        %875 = vrot.lane.b32.xlu0 %v874, 1
        %v876 = vpop.permute.xlu0 %875
        %v878 = vmul.f32 %v865, %v876
        %v879 = vmul.f32 %v866, %v876
        %v880 = vmul.f32 %v867, %v876
        %v881 = vmul.f32 %v868, %v876
        %v882 = vmul.f32 %v849, %v849
        %v883 = vmul.f32 %v850, %v850
        %v884 = vmul.f32 %v851, %v851
        %v885 = vmul.f32 %v852, %v852
        %890 = vrot.lane.b32.xlu0 %v882, 120
        %v891 = vpop.permute.xlu0 %890
        %892 = vrot.lane.b32.xlu0 %v883, 120
        %v893 = vpop.permute.xlu0 %892
        %894 = vrot.lane.b32.xlu0 %v884, 120
        %v895 = vpop.permute.xlu0 %894
        %896 = vrot.lane.b32.xlu0 %v885, 120
        %v897 = vpop.permute.xlu0 %896
        %vm902 = vcmask 457728
        %v903 = vsel %vm902, %v891, 0.0
        %904 = vadd.xlane.f32.xlu0 %v903
        %v905 = vpop.xlane.xlu0 %904
        %v906 = vsel %vm902, %v893, 0.0
        %907 = vadd.xlane.f32.xlu0 %v906
        %v908 = vpop.xlane.xlu0 %907
        %v909 = vsel %vm902, %v895, 0.0
        %910 = vadd.xlane.f32.xlu0 %v909
        %v911 = vpop.xlane.xlu0 %910
        %v912 = vsel %vm902, %v897, 0.0
        %913 = vadd.xlane.f32.xlu0 %v912
        %v914 = vpop.xlane.xlu0 %913
        %v915 = vmul.f32 %v905, 0.017857144
        %v916 = vmul.f32 %v908, 0.017857144
        %v917 = vmul.f32 %v911, 0.017857144
        %v918 = vmul.f32 %v914, 0.017857144
        %v919 = vmul.f32 %v878, %v878
        %v920 = vmul.f32 %v879, %v879
        %v921 = vmul.f32 %v880, %v880
        %v922 = vmul.f32 %v881, %v881
        %927 = vrot.lane.b32.xlu0 %v919, 127
        %v928 = vpop.permute.xlu0 %927
        %929 = vrot.lane.b32.xlu0 %v920, 127
        %v930 = vpop.permute.xlu0 %929
        %931 = vrot.lane.b32.xlu0 %v921, 127
        %v932 = vpop.permute.xlu0 %931
        %933 = vrot.lane.b32.xlu0 %v922, 127
        %v934 = vpop.permute.xlu0 %933
        %vm939 = vcmask 515072
        %v940 = vsel %vm939, %v928, 0.0
        %941 = vadd.xlane.f32.xlu0 %v940
        %v942 = vpop.xlane.xlu0 %941
        %v943 = vsel %vm939, %v930, 0.0
        %944 = vadd.xlane.f32.xlu0 %v943
        %v945 = vpop.xlane.xlu0 %944
        %v946 = vsel %vm939, %v932, 0.0
        %947 = vadd.xlane.f32.xlu0 %v946
        %v948 = vpop.xlane.xlu0 %947
        %v949 = vsel %vm939, %v934, 0.0
        %950 = vadd.xlane.f32.xlu0 %v949
        %v951 = vpop.xlane.xlu0 %950
        %v952 = vmul.f32 %v942, 0.017857144
        %v953 = vmul.f32 %v945, 0.017857144
        %v954 = vmul.f32 %v948, 0.017857144
        %v955 = vmul.f32 %v951, 0.017857144
        %v956 = vadd.f32 %v915, %v952
        %v957 = vadd.f32 %v916, %v953
        %v958 = vadd.f32 %v917, %v954
        %v959 = vadd.f32 %v918, %v955
        %s960 = scalar_lea.vmem %s3, 32
        %v961 = vld [vmem:[%s960] sm:$0xff]
        %v962 = vld [vmem:[%s960 + $0x8] sm:$0xff]
        %v963 = vld [vmem:[%s960 + $0x10] sm:$0xff]
        %v964 = vld [vmem:[%s960 + $0x18] sm:$0xff]
        %965 = vrot.lane.b32.xlu0 %v427, 126
        %v966 = vpop.permute.xlu0 %965
        %967 = vrot.lane.b32.xlu0 %v428, 126
        %v968 = vpop.permute.xlu0 %967
        %969 = vrot.lane.b32.xlu0 %v429, 126
        %v970 = vpop.permute.xlu0 %969
        %971 = vrot.lane.b32.xlu0 %v430, 126
        %v972 = vpop.permute.xlu0 %971
        %v978 = vsel %vm731, %v961, 0
        %v981 = vsel %vm731, %v962, 0
        %v984 = vsel %vm731, %v963, 0
        %v987 = vsel %vm731, %v964, 0
        %989 = vmatprep.subr.mxu0 0.0
        %990 = vmatpush1.msra.mxu0 %v956
        %991 = vmatprep.subr.mxu0 0.0
        %992 = vmatpush1.msra.mxu0 %v957
        %993 = vmatprep.subr.mxu0 0.0
        %994 = vmatpush1.msra.mxu0 %v958
        %995 = vmatprep.subr.mxu0 0.0
        %996 = vmatpush1.msra.mxu0 %v959
        %997 = vmatprep.subr.mxu0 0.0
        %998 = vmatpush1.msra.mxu0 0.0
        %999 = vmatprep.subr.mxu0 0.0
        %1000 = vmatpush1.msra.mxu0 0.0
        %1001 = vmatprep.subr.mxu0 0.0
        %1002 = vmatpush1.msra.mxu0 0.0
        %1003 = vmatprep.subr.mxu0 0.0
        %1004 = vmatpush1.msra.mxu0 0.0
        %1005 = vmatprep.subr.mxu0 0.0
        %1006 = vmatpush1.msra.mxu0 0.0
        %1007 = vmatprep.subr.mxu0 0.0
        %1008 = vmatpush1.msra.mxu0 0.0
        %1009 = vmatprep.subr.mxu0 0.0
        %1010 = vmatpush1.msra.mxu0 0.0
        %1011 = vmatprep.subr.mxu0 0.0
        %1012 = vmatpush1.msra.mxu0 0.0
        %1013 = vmatprep.subr.mxu0 0.0
        %1014 = vmatpush1.msra.mxu0 0.0
        %1015 = vmatprep.subr.mxu0 0.0
        %1016 = vmatpush1.msra.mxu0 0.0
        %1017 = vmatprep.subr.mxu0 0.0
        %1018 = vmatpush1.msra.mxu0 0.0
        %1019 = vmatprep.subr.mxu0 0.0
        %1020 = vmatpush1.msra.mxu0 0.0
        %1021 = vmatprep.subr.mxu0 0.0
        %1022 = vmatpush1.msra.mxu0 0.0
        %1023 = vmatprep.subr.mxu0 0.0
        %1024 = vmatpush1.msra.mxu0 0.0
        %1025 = vmatprep.subr.mxu0 0.0
        %1026 = vmatpush1.msra.mxu0 0.0
        %1027 = vmatprep.subr.mxu0 0.0
        %1028 = vmatpush1.msra.mxu0 0.0
        %1029 = vmatprep.subr.mxu0 0.0
        %1030 = vmatpush1.msra.mxu0 0.0
        %1031 = vmatprep.subr.mxu0 0.0
        %1032 = vmatpush1.msra.mxu0 0.0
        %1033 = vmatprep.subr.mxu0 0.0
        %1034 = vmatpush1.msra.mxu0 0.0
        %1035 = vmatprep.subr.mxu0 0.0
        %1036 = vmatpush1.msra.mxu0 0.0
        %1037 = vmatprep.subr.mxu0 0.0
        %1038 = vmatpush1.msra.mxu0 0.0
        %1039 = vmatprep.subr.mxu0 0.0
        %1040 = vmatpush1.msra.mxu0 0.0
        %1041 = vmatprep.subr.mxu0 0.0
        %1042 = vmatpush1.msra.mxu0 0.0
        %1043 = vmatprep.subr.mxu0 0.0
        %1044 = vmatpush1.msra.mxu0 0.0
        %1045 = vmatprep.subr.mxu0 0.0
        %1046 = vmatpush1.msra.mxu0 0.0
        %1047 = vmatprep.subr.mxu0 0.0
        %1048 = vmatpush1.msra.mxu0 0.0
        %1049 = vmatprep.subr.mxu0 0.0
        %1050 = vmatpush1.msra.mxu0 0.0
        %1051 = vmatprep.subr.mxu0 0.0
        %1052 = vmatpush1.msra.mxu0 0.0
        %1053 = vmatprep.mubr.f32.mxu0 0.0
        %1054 = vmatmul.mubr.f32.gmra.mrb[0].mxu0 %v978
        %v1055 = vpop.f32.mrb[0].mxu0
        %v1056 = vadd.f32 %v966, %v1055
        %v1057 = vpop.f32.mrb[0].mxu0
        %1058 = vmatprep.mubr.f32.mxu0 0.0
        %1059 = vmatmul.mubr.f32.gmra.mrb[0].mxu0 %v981
        %v1060 = vpop.f32.mrb[0].mxu0
        %v1061 = vadd.f32 %v968, %v1060
        %v1062 = vpop.f32.mrb[0].mxu0
        %1063 = vmatprep.mubr.f32.mxu0 0.0
        %1064 = vmatmul.mubr.f32.gmra.mrb[0].mxu0 %v984
        %v1065 = vpop.f32.mrb[0].mxu0
        %v1066 = vadd.f32 %v970, %v1065
        %v1067 = vpop.f32.mrb[0].mxu0
        %1068 = vmatprep.mubr.f32.mxu0 0.0
        %1069 = vmatmul.mubr.f32.gmra.mrb[0].mxu0 %v987
        %v1070 = vpop.f32.mrb[0].mxu0
        %v1071 = vadd.f32 %v972, %v1070
        %v1072 = vpop.f32.mrb[0].mxu0
        %1073 = vdwg.mxu0
        %v1074 = vld [vmem:[%s4] sm:$0xff]
        %v1075 = vld [vmem:[%s4 + $0x8] sm:$0xff]
        %v1076 = vld [vmem:[%s4 + $0x10] sm:$0xff]
        %v1077 = vld [vmem:[%s4 + $0x18] sm:$0xff]
        %s1078 = scalar_lea.vmem %s4, 32
        %v1079 = vld [vmem:[%s1078] sm:$0xff]
        %v1080 = vld [vmem:[%s1078 + $0x8] sm:$0xff]
        %v1081 = vld [vmem:[%s1078 + $0x10] sm:$0xff]
        %v1082 = vld [vmem:[%s1078 + $0x18] sm:$0xff]
        %v1083 = vmul.f32 %v811, %v1056
        %vm1084 = vcmask 7168
        %v1085 = vsel %vm1084, %v1083, 0.0
        %v1086 = vrot.slane %v1085, 4
        %v1087 = vadd.f32 %v1085, %v1086
        %v1088 = vrot.slane %v1087, 2
        %v1089 = vadd.f32 %v1087, %v1088
        %v1090 = vrot.slane %v1089, 1
        %v1091 = vadd.f32 %v1089, %v1090
        %v1092 = vmul.f32 %v1091, %v1074
        %v1093 = vmul.f32 %v1091, %v1075
        %v1094 = vmul.f32 %v1091, %v1076
        %v1095 = vmul.f32 %v1091, %v1077
        %v1096 = vmul.f32 %v1091, %v1079
        %v1097 = vmul.f32 %v1091, %v1080
        %v1098 = vmul.f32 %v1091, %v1081
        %v1099 = vmul.f32 %v1091, %v1082
        %v1100 = vmul.f32 %v811, %v1061
        %v1101 = vsel %vm1084, %v1100, 0.0
        %v1102 = vrot.slane %v1101, 4
        %v1103 = vadd.f32 %v1101, %v1102
        %v1104 = vrot.slane %v1103, 2
        %v1105 = vadd.f32 %v1103, %v1104
        %v1106 = vrot.slane %v1105, 1
        %v1107 = vadd.f32 %v1105, %v1106
        %1112 = vrot.lane.b32.xlu0 %v1074, 127
        %v1113 = vpop.permute.xlu0 %1112
        %1114 = vrot.lane.b32.xlu0 %v1075, 127
        %v1115 = vpop.permute.xlu0 %1114
        %1116 = vrot.lane.b32.xlu0 %v1076, 127
        %v1117 = vpop.permute.xlu0 %1116
        %1118 = vrot.lane.b32.xlu0 %v1077, 127
        %v1119 = vpop.permute.xlu0 %1118
        %v1124 = vmul.f32 %v1107, %v1113
        %v1125 = vmul.f32 %v1107, %v1115
        %v1126 = vmul.f32 %v1107, %v1117
        %v1127 = vmul.f32 %v1107, %v1119
        %1132 = vrot.lane.b32.xlu0 %v1079, 127
        %v1133 = vpop.permute.xlu0 %1132
        %1134 = vrot.lane.b32.xlu0 %v1080, 127
        %v1135 = vpop.permute.xlu0 %1134
        %1136 = vrot.lane.b32.xlu0 %v1081, 127
        %v1137 = vpop.permute.xlu0 %1136
        %1138 = vrot.lane.b32.xlu0 %v1082, 127
        %v1139 = vpop.permute.xlu0 %1138
        %v1144 = vmul.f32 %v1107, %v1133
        %v1145 = vmul.f32 %v1107, %v1135
        %v1146 = vmul.f32 %v1107, %v1137
        %v1147 = vmul.f32 %v1107, %v1139
        %v1148 = vadd.f32 %v1092, %v1124
        %v1149 = vadd.f32 %v1093, %v1125
        %v1150 = vadd.f32 %v1094, %v1126
        %v1151 = vadd.f32 %v1095, %v1127
        %v1152 = vadd.f32 %v1096, %v1144
        %v1153 = vadd.f32 %v1097, %v1145
        %v1154 = vadd.f32 %v1098, %v1146
        %v1155 = vadd.f32 %v1099, %v1147
        %v1156 = vmul.f32 %v811, %v1066
        %v1157 = vsel %vm1084, %v1156, 0.0
        %v1158 = vrot.slane %v1157, 4
        %v1159 = vadd.f32 %v1157, %v1158
        %v1160 = vrot.slane %v1159, 2
        %v1161 = vadd.f32 %v1159, %v1160
        %v1162 = vrot.slane %v1161, 1
        %v1163 = vadd.f32 %v1161, %v1162
        %1164 = vrot.lane.b32.xlu0 %v1074, 126
        %v1165 = vpop.permute.xlu0 %1164
        %1166 = vrot.lane.b32.xlu0 %v1075, 126
        %v1167 = vpop.permute.xlu0 %1166
        %1168 = vrot.lane.b32.xlu0 %v1076, 126
        %v1169 = vpop.permute.xlu0 %1168
        %1170 = vrot.lane.b32.xlu0 %v1077, 126
        %v1171 = vpop.permute.xlu0 %1170
        %v1176 = vmul.f32 %v1163, %v1165
        %v1177 = vmul.f32 %v1163, %v1167
        %v1178 = vmul.f32 %v1163, %v1169
        %v1179 = vmul.f32 %v1163, %v1171
        %1180 = vrot.lane.b32.xlu0 %v1079, 126
        %v1181 = vpop.permute.xlu0 %1180
        %1182 = vrot.lane.b32.xlu0 %v1080, 126
        %v1183 = vpop.permute.xlu0 %1182
        %1184 = vrot.lane.b32.xlu0 %v1081, 126
        %v1185 = vpop.permute.xlu0 %1184
        %1186 = vrot.lane.b32.xlu0 %v1082, 126
        %v1187 = vpop.permute.xlu0 %1186
        %v1192 = vmul.f32 %v1163, %v1181
        %v1193 = vmul.f32 %v1163, %v1183
        %v1194 = vmul.f32 %v1163, %v1185
        %v1195 = vmul.f32 %v1163, %v1187
        %v1196 = vadd.f32 %v1148, %v1176
        %v1197 = vadd.f32 %v1149, %v1177
        %v1198 = vadd.f32 %v1150, %v1178
        %v1199 = vadd.f32 %v1151, %v1179
        %v1200 = vadd.f32 %v1152, %v1192
        %v1201 = vadd.f32 %v1153, %v1193
        %v1202 = vadd.f32 %v1154, %v1194
        %v1203 = vadd.f32 %v1155, %v1195
        %v1204 = vmul.f32 %v811, %v1071
        %v1205 = vsel %vm1084, %v1204, 0.0
        %v1206 = vrot.slane %v1205, 4
        %v1207 = vadd.f32 %v1205, %v1206
        %v1208 = vrot.slane %v1207, 2
        %v1209 = vadd.f32 %v1207, %v1208
        %v1210 = vrot.slane %v1209, 1
        %v1211 = vadd.f32 %v1209, %v1210
        %1212 = vrot.lane.b32.xlu0 %v1074, 125
        %v1213 = vpop.permute.xlu0 %1212
        %1214 = vrot.lane.b32.xlu0 %v1075, 125
        %v1215 = vpop.permute.xlu0 %1214
        %1216 = vrot.lane.b32.xlu0 %v1076, 125
        %v1217 = vpop.permute.xlu0 %1216
        %1218 = vrot.lane.b32.xlu0 %v1077, 125
        %v1219 = vpop.permute.xlu0 %1218
        %v1224 = vmul.f32 %v1211, %v1213
        %v1225 = vmul.f32 %v1211, %v1215
        %v1226 = vmul.f32 %v1211, %v1217
        %v1227 = vmul.f32 %v1211, %v1219
        %1228 = vrot.lane.b32.xlu0 %v1079, 125
        %v1229 = vpop.permute.xlu0 %1228
        %1230 = vrot.lane.b32.xlu0 %v1080, 125
        %v1231 = vpop.permute.xlu0 %1230
        %1232 = vrot.lane.b32.xlu0 %v1081, 125
        %v1233 = vpop.permute.xlu0 %1232
        %1234 = vrot.lane.b32.xlu0 %v1082, 125
        %v1235 = vpop.permute.xlu0 %1234
        %v1240 = vmul.f32 %v1211, %v1229
        %v1241 = vmul.f32 %v1211, %v1231
        %v1242 = vmul.f32 %v1211, %v1233
        %v1243 = vmul.f32 %v1211, %v1235
        %v1244 = vadd.f32 %v1196, %v1224
        %v1245 = vadd.f32 %v1197, %v1225
        %v1246 = vadd.f32 %v1198, %v1226
        %v1247 = vadd.f32 %v1199, %v1227
        %v1248 = vadd.f32 %v1200, %v1240
        %v1249 = vadd.f32 %v1201, %v1241
        %v1250 = vadd.f32 %v1202, %v1242
        %v1251 = vadd.f32 %v1203, %v1243
        %v1252 = vmul.f32 %v816, %v1056
        %v1253 = vsel %vm1084, %v1252, 0.0
        %v1254 = vrot.slane %v1253, 4
        %v1255 = vadd.f32 %v1253, %v1254
        %v1256 = vrot.slane %v1255, 2
        %v1257 = vadd.f32 %v1255, %v1256
        %v1258 = vrot.slane %v1257, 1
        %v1259 = vadd.f32 %v1257, %v1258
        %1260 = vrot.lane.b32.xlu0 %v1074, 124
        %v1261 = vpop.permute.xlu0 %1260
        %1262 = vrot.lane.b32.xlu0 %v1075, 124
        %v1263 = vpop.permute.xlu0 %1262
        %1264 = vrot.lane.b32.xlu0 %v1076, 124
        %v1265 = vpop.permute.xlu0 %1264
        %1266 = vrot.lane.b32.xlu0 %v1077, 124
        %v1267 = vpop.permute.xlu0 %1266
        %v1272 = vmul.f32 %v1259, %v1261
        %v1273 = vmul.f32 %v1259, %v1263
        %v1274 = vmul.f32 %v1259, %v1265
        %v1275 = vmul.f32 %v1259, %v1267
        %1276 = vrot.lane.b32.xlu0 %v1079, 124
        %v1277 = vpop.permute.xlu0 %1276
        %1278 = vrot.lane.b32.xlu0 %v1080, 124
        %v1279 = vpop.permute.xlu0 %1278
        %1280 = vrot.lane.b32.xlu0 %v1081, 124
        %v1281 = vpop.permute.xlu0 %1280
        %1282 = vrot.lane.b32.xlu0 %v1082, 124
        %v1283 = vpop.permute.xlu0 %1282
        %v1288 = vmul.f32 %v1259, %v1277
        %v1289 = vmul.f32 %v1259, %v1279
        %v1290 = vmul.f32 %v1259, %v1281
        %v1291 = vmul.f32 %v1259, %v1283
        %v1292 = vmul.f32 %v816, %v1061
        %v1293 = vsel %vm1084, %v1292, 0.0
        %v1294 = vrot.slane %v1293, 4
        %v1295 = vadd.f32 %v1293, %v1294
        %v1296 = vrot.slane %v1295, 2
        %v1297 = vadd.f32 %v1295, %v1296
        %v1298 = vrot.slane %v1297, 1
        %v1299 = vadd.f32 %v1297, %v1298
        %1300 = vrot.lane.b32.xlu0 %v1074, 123
        %v1301 = vpop.permute.xlu0 %1300
        %1302 = vrot.lane.b32.xlu0 %v1075, 123
        %v1303 = vpop.permute.xlu0 %1302
        %1304 = vrot.lane.b32.xlu0 %v1076, 123
        %v1305 = vpop.permute.xlu0 %1304
        %1306 = vrot.lane.b32.xlu0 %v1077, 123
        %v1307 = vpop.permute.xlu0 %1306
        %v1312 = vmul.f32 %v1299, %v1301
        %v1313 = vmul.f32 %v1299, %v1303
        %v1314 = vmul.f32 %v1299, %v1305
        %v1315 = vmul.f32 %v1299, %v1307
        %1316 = vrot.lane.b32.xlu0 %v1079, 123
        %v1317 = vpop.permute.xlu0 %1316
        %1318 = vrot.lane.b32.xlu0 %v1080, 123
        %v1319 = vpop.permute.xlu0 %1318
        %1320 = vrot.lane.b32.xlu0 %v1081, 123
        %v1321 = vpop.permute.xlu0 %1320
        %1322 = vrot.lane.b32.xlu0 %v1082, 123
        %v1323 = vpop.permute.xlu0 %1322
        %v1328 = vmul.f32 %v1299, %v1317
        %v1329 = vmul.f32 %v1299, %v1319
        %v1330 = vmul.f32 %v1299, %v1321
        %v1331 = vmul.f32 %v1299, %v1323
        %v1332 = vadd.f32 %v1272, %v1312
        %v1333 = vadd.f32 %v1273, %v1313
        %v1334 = vadd.f32 %v1274, %v1314
        %v1335 = vadd.f32 %v1275, %v1315
        %v1336 = vadd.f32 %v1288, %v1328
        %v1337 = vadd.f32 %v1289, %v1329
        %v1338 = vadd.f32 %v1290, %v1330
        %v1339 = vadd.f32 %v1291, %v1331
        %v1340 = vmul.f32 %v816, %v1066
        %v1341 = vsel %vm1084, %v1340, 0.0
        %v1342 = vrot.slane %v1341, 4
        %v1343 = vadd.f32 %v1341, %v1342
        %v1344 = vrot.slane %v1343, 2
        %v1345 = vadd.f32 %v1343, %v1344
        %v1346 = vrot.slane %v1345, 1
        %v1347 = vadd.f32 %v1345, %v1346
        %1348 = vrot.lane.b32.xlu0 %v1074, 122
        %v1349 = vpop.permute.xlu0 %1348
        %1350 = vrot.lane.b32.xlu0 %v1075, 122
        %v1351 = vpop.permute.xlu0 %1350
        %1352 = vrot.lane.b32.xlu0 %v1076, 122
        %v1353 = vpop.permute.xlu0 %1352
        %1354 = vrot.lane.b32.xlu0 %v1077, 122
        %v1355 = vpop.permute.xlu0 %1354
        %v1360 = vmul.f32 %v1347, %v1349
        %v1361 = vmul.f32 %v1347, %v1351
        %v1362 = vmul.f32 %v1347, %v1353
        %v1363 = vmul.f32 %v1347, %v1355
        %1364 = vrot.lane.b32.xlu0 %v1079, 122
        %v1365 = vpop.permute.xlu0 %1364
        %1366 = vrot.lane.b32.xlu0 %v1080, 122
        %v1367 = vpop.permute.xlu0 %1366
        %1368 = vrot.lane.b32.xlu0 %v1081, 122
        %v1369 = vpop.permute.xlu0 %1368
        %1370 = vrot.lane.b32.xlu0 %v1082, 122
        %v1371 = vpop.permute.xlu0 %1370
        %v1376 = vmul.f32 %v1347, %v1365
        %v1377 = vmul.f32 %v1347, %v1367
        %v1378 = vmul.f32 %v1347, %v1369
        %v1379 = vmul.f32 %v1347, %v1371
        %v1380 = vadd.f32 %v1332, %v1360
        %v1381 = vadd.f32 %v1333, %v1361
        %v1382 = vadd.f32 %v1334, %v1362
        %v1383 = vadd.f32 %v1335, %v1363
        %v1384 = vadd.f32 %v1336, %v1376
        %v1385 = vadd.f32 %v1337, %v1377
        %v1386 = vadd.f32 %v1338, %v1378
        %v1387 = vadd.f32 %v1339, %v1379
        %v1388 = vmul.f32 %v816, %v1071
        %v1389 = vsel %vm1084, %v1388, 0.0
        %v1390 = vrot.slane %v1389, 4
        %v1391 = vadd.f32 %v1389, %v1390
        %v1392 = vrot.slane %v1391, 2
        %v1393 = vadd.f32 %v1391, %v1392
        %v1394 = vrot.slane %v1393, 1
        %v1395 = vadd.f32 %v1393, %v1394
        %1396 = vrot.lane.b32.xlu0 %v1074, 121
        %v1397 = vpop.permute.xlu0 %1396
        %1398 = vrot.lane.b32.xlu0 %v1075, 121
        %v1399 = vpop.permute.xlu0 %1398
        %1400 = vrot.lane.b32.xlu0 %v1076, 121
        %v1401 = vpop.permute.xlu0 %1400
        %1402 = vrot.lane.b32.xlu0 %v1077, 121
        %v1403 = vpop.permute.xlu0 %1402
        %v1408 = vmul.f32 %v1395, %v1397
        %v1409 = vmul.f32 %v1395, %v1399
        %v1410 = vmul.f32 %v1395, %v1401
        %v1411 = vmul.f32 %v1395, %v1403
        %1412 = vrot.lane.b32.xlu0 %v1079, 121
        %v1413 = vpop.permute.xlu0 %1412
        %1414 = vrot.lane.b32.xlu0 %v1080, 121
        %v1415 = vpop.permute.xlu0 %1414
        %1416 = vrot.lane.b32.xlu0 %v1081, 121
        %v1417 = vpop.permute.xlu0 %1416
        %1418 = vrot.lane.b32.xlu0 %v1082, 121
        %v1419 = vpop.permute.xlu0 %1418
        %v1424 = vmul.f32 %v1395, %v1413
        %v1425 = vmul.f32 %v1395, %v1415
        %v1426 = vmul.f32 %v1395, %v1417
        %v1427 = vmul.f32 %v1395, %v1419
        %v1428 = vadd.f32 %v1380, %v1408
        %v1429 = vadd.f32 %v1381, %v1409
        %v1430 = vadd.f32 %v1382, %v1410
        %v1431 = vadd.f32 %v1383, %v1411
        %v1432 = vadd.f32 %v1384, %v1424
        %v1433 = vadd.f32 %v1385, %v1425
        %v1434 = vadd.f32 %v1386, %v1426
        %v1435 = vadd.f32 %v1387, %v1427
        %v1436 = vmul.f32 %v821, %v1056
        %v1437 = vsel %vm1084, %v1436, 0.0
        %v1438 = vrot.slane %v1437, 4
        %v1439 = vadd.f32 %v1437, %v1438
        %v1440 = vrot.slane %v1439, 2
        %v1441 = vadd.f32 %v1439, %v1440
        %v1442 = vrot.slane %v1441, 1
        %v1443 = vadd.f32 %v1441, %v1442
        %1444 = vrot.lane.b32.xlu0 %v1074, 120
        %v1445 = vpop.permute.xlu0 %1444
        %1446 = vrot.lane.b32.xlu0 %v1075, 120
        %v1447 = vpop.permute.xlu0 %1446
        %1448 = vrot.lane.b32.xlu0 %v1076, 120
        %v1449 = vpop.permute.xlu0 %1448
        %1450 = vrot.lane.b32.xlu0 %v1077, 120
        %v1451 = vpop.permute.xlu0 %1450
        %v1456 = vmul.f32 %v1443, %v1445
        %v1457 = vmul.f32 %v1443, %v1447
        %v1458 = vmul.f32 %v1443, %v1449
        %v1459 = vmul.f32 %v1443, %v1451
        %1460 = vrot.lane.b32.xlu0 %v1079, 120
        %v1461 = vpop.permute.xlu0 %1460
        %1462 = vrot.lane.b32.xlu0 %v1080, 120
        %v1463 = vpop.permute.xlu0 %1462
        %1464 = vrot.lane.b32.xlu0 %v1081, 120
        %v1465 = vpop.permute.xlu0 %1464
        %1466 = vrot.lane.b32.xlu0 %v1082, 120
        %v1467 = vpop.permute.xlu0 %1466
        %v1472 = vmul.f32 %v1443, %v1461
        %v1473 = vmul.f32 %v1443, %v1463
        %v1474 = vmul.f32 %v1443, %v1465
        %v1475 = vmul.f32 %v1443, %v1467
        %v1476 = vmul.f32 %v821, %v1061
        %v1477 = vsel %vm1084, %v1476, 0.0
        %v1478 = vrot.slane %v1477, 4
        %v1479 = vadd.f32 %v1477, %v1478
        %v1480 = vrot.slane %v1479, 2
        %v1481 = vadd.f32 %v1479, %v1480
        %v1482 = vrot.slane %v1481, 1
        %v1483 = vadd.f32 %v1481, %v1482
        %1484 = vrot.lane.b32.xlu0 %v1074, 119
        %v1485 = vpop.permute.xlu0 %1484
        %1486 = vrot.lane.b32.xlu0 %v1075, 119
        %v1487 = vpop.permute.xlu0 %1486
        %1488 = vrot.lane.b32.xlu0 %v1076, 119
        %v1489 = vpop.permute.xlu0 %1488
        %1490 = vrot.lane.b32.xlu0 %v1077, 119
        %v1491 = vpop.permute.xlu0 %1490
        %v1496 = vmul.f32 %v1483, %v1485
        %v1497 = vmul.f32 %v1483, %v1487
        %v1498 = vmul.f32 %v1483, %v1489
        %v1499 = vmul.f32 %v1483, %v1491
        %1500 = vrot.lane.b32.xlu0 %v1079, 119
        %v1501 = vpop.permute.xlu0 %1500
        %1502 = vrot.lane.b32.xlu0 %v1080, 119
        %v1503 = vpop.permute.xlu0 %1502
        %1504 = vrot.lane.b32.xlu0 %v1081, 119
        %v1505 = vpop.permute.xlu0 %1504
        %1506 = vrot.lane.b32.xlu0 %v1082, 119
        %v1507 = vpop.permute.xlu0 %1506
        %v1512 = vmul.f32 %v1483, %v1501
        %v1513 = vmul.f32 %v1483, %v1503
        %v1514 = vmul.f32 %v1483, %v1505
        %v1515 = vmul.f32 %v1483, %v1507
        %v1516 = vadd.f32 %v1456, %v1496
        %v1517 = vadd.f32 %v1457, %v1497
        %v1518 = vadd.f32 %v1458, %v1498
        %v1519 = vadd.f32 %v1459, %v1499
        %v1520 = vadd.f32 %v1472, %v1512
        %v1521 = vadd.f32 %v1473, %v1513
        %v1522 = vadd.f32 %v1474, %v1514
        %v1523 = vadd.f32 %v1475, %v1515
        %v1524 = vmul.f32 %v821, %v1066
        %v1525 = vsel %vm1084, %v1524, 0.0
        %v1526 = vrot.slane %v1525, 4
        %v1527 = vadd.f32 %v1525, %v1526
        %v1528 = vrot.slane %v1527, 2
        %v1529 = vadd.f32 %v1527, %v1528
        %v1530 = vrot.slane %v1529, 1
        %v1531 = vadd.f32 %v1529, %v1530
        %1532 = vrot.lane.b32.xlu0 %v1074, 118
        %v1533 = vpop.permute.xlu0 %1532
        %1534 = vrot.lane.b32.xlu0 %v1075, 118
        %v1535 = vpop.permute.xlu0 %1534
        %1536 = vrot.lane.b32.xlu0 %v1076, 118
        %v1537 = vpop.permute.xlu0 %1536
        %1538 = vrot.lane.b32.xlu0 %v1077, 118
        %v1539 = vpop.permute.xlu0 %1538
        %v1544 = vmul.f32 %v1531, %v1533
        %v1545 = vmul.f32 %v1531, %v1535
        %v1546 = vmul.f32 %v1531, %v1537
        %v1547 = vmul.f32 %v1531, %v1539
        %1548 = vrot.lane.b32.xlu0 %v1079, 118
        %v1549 = vpop.permute.xlu0 %1548
        %1550 = vrot.lane.b32.xlu0 %v1080, 118
        %v1551 = vpop.permute.xlu0 %1550
        %1552 = vrot.lane.b32.xlu0 %v1081, 118
        %v1553 = vpop.permute.xlu0 %1552
        %1554 = vrot.lane.b32.xlu0 %v1082, 118
        %v1555 = vpop.permute.xlu0 %1554
        %v1560 = vmul.f32 %v1531, %v1549
        %v1561 = vmul.f32 %v1531, %v1551
        %v1562 = vmul.f32 %v1531, %v1553
        %v1563 = vmul.f32 %v1531, %v1555
        %v1564 = vadd.f32 %v1516, %v1544
        %v1565 = vadd.f32 %v1517, %v1545
        %v1566 = vadd.f32 %v1518, %v1546
        %v1567 = vadd.f32 %v1519, %v1547
        %v1568 = vadd.f32 %v1520, %v1560
        %v1569 = vadd.f32 %v1521, %v1561
        %v1570 = vadd.f32 %v1522, %v1562
        %v1571 = vadd.f32 %v1523, %v1563
        %v1572 = vmul.f32 %v821, %v1071
        %v1573 = vsel %vm1084, %v1572, 0.0
        %v1574 = vrot.slane %v1573, 4
        %v1575 = vadd.f32 %v1573, %v1574
        %v1576 = vrot.slane %v1575, 2
        %v1577 = vadd.f32 %v1575, %v1576
        %v1578 = vrot.slane %v1577, 1
        %v1579 = vadd.f32 %v1577, %v1578
        %1580 = vrot.lane.b32.xlu0 %v1074, 117
        %v1581 = vpop.permute.xlu0 %1580
        %1582 = vrot.lane.b32.xlu0 %v1075, 117
        %v1583 = vpop.permute.xlu0 %1582
        %1584 = vrot.lane.b32.xlu0 %v1076, 117
        %v1585 = vpop.permute.xlu0 %1584
        %1586 = vrot.lane.b32.xlu0 %v1077, 117
        %v1587 = vpop.permute.xlu0 %1586
        %v1592 = vmul.f32 %v1579, %v1581
        %v1593 = vmul.f32 %v1579, %v1583
        %v1594 = vmul.f32 %v1579, %v1585
        %v1595 = vmul.f32 %v1579, %v1587
        %1596 = vrot.lane.b32.xlu0 %v1079, 117
        %v1597 = vpop.permute.xlu0 %1596
        %1598 = vrot.lane.b32.xlu0 %v1080, 117
        %v1599 = vpop.permute.xlu0 %1598
        %1600 = vrot.lane.b32.xlu0 %v1081, 117
        %v1601 = vpop.permute.xlu0 %1600
        %1602 = vrot.lane.b32.xlu0 %v1082, 117
        %v1603 = vpop.permute.xlu0 %1602
        %v1608 = vmul.f32 %v1579, %v1597
        %v1609 = vmul.f32 %v1579, %v1599
        %v1610 = vmul.f32 %v1579, %v1601
        %v1611 = vmul.f32 %v1579, %v1603
        %v1612 = vadd.f32 %v1564, %v1592
        %v1613 = vadd.f32 %v1565, %v1593
        %v1614 = vadd.f32 %v1566, %v1594
        %v1615 = vadd.f32 %v1567, %v1595
        %v1616 = vadd.f32 %v1568, %v1608
        %v1617 = vadd.f32 %v1569, %v1609
        %v1618 = vadd.f32 %v1570, %v1610
        %v1619 = vadd.f32 %v1571, %v1611
        %v1620 = vmul.f32 %v826, %v1056
        %v1621 = vsel %vm1084, %v1620, 0.0
        %v1622 = vrot.slane %v1621, 4
        %v1623 = vadd.f32 %v1621, %v1622
        %v1624 = vrot.slane %v1623, 2
        %v1625 = vadd.f32 %v1623, %v1624
        %v1626 = vrot.slane %v1625, 1
        %v1627 = vadd.f32 %v1625, %v1626
        %1628 = vrot.lane.b32.xlu0 %v1074, 116
        %v1629 = vpop.permute.xlu0 %1628
        %1630 = vrot.lane.b32.xlu0 %v1075, 116
        %v1631 = vpop.permute.xlu0 %1630
        %1632 = vrot.lane.b32.xlu0 %v1076, 116
        %v1633 = vpop.permute.xlu0 %1632
        %1634 = vrot.lane.b32.xlu0 %v1077, 116
        %v1635 = vpop.permute.xlu0 %1634
        %v1640 = vmul.f32 %v1627, %v1629
        %v1641 = vmul.f32 %v1627, %v1631
        %v1642 = vmul.f32 %v1627, %v1633
        %v1643 = vmul.f32 %v1627, %v1635
        %1644 = vrot.lane.b32.xlu0 %v1079, 116
        %v1645 = vpop.permute.xlu0 %1644
        %1646 = vrot.lane.b32.xlu0 %v1080, 116
        %v1647 = vpop.permute.xlu0 %1646
        %1648 = vrot.lane.b32.xlu0 %v1081, 116
        %v1649 = vpop.permute.xlu0 %1648
        %1650 = vrot.lane.b32.xlu0 %v1082, 116
        %v1651 = vpop.permute.xlu0 %1650
        %v1656 = vmul.f32 %v1627, %v1645
        %v1657 = vmul.f32 %v1627, %v1647
        %v1658 = vmul.f32 %v1627, %v1649
        %v1659 = vmul.f32 %v1627, %v1651
        %v1660 = vmul.f32 %v826, %v1061
        %v1661 = vsel %vm1084, %v1660, 0.0
        %v1662 = vrot.slane %v1661, 4
        %v1663 = vadd.f32 %v1661, %v1662
        %v1664 = vrot.slane %v1663, 2
        %v1665 = vadd.f32 %v1663, %v1664
        %v1666 = vrot.slane %v1665, 1
        %v1667 = vadd.f32 %v1665, %v1666
        %1668 = vrot.lane.b32.xlu0 %v1074, 115
        %v1669 = vpop.permute.xlu0 %1668
        %1670 = vrot.lane.b32.xlu0 %v1075, 115
        %v1671 = vpop.permute.xlu0 %1670
        %1672 = vrot.lane.b32.xlu0 %v1076, 115
        %v1673 = vpop.permute.xlu0 %1672
        %1674 = vrot.lane.b32.xlu0 %v1077, 115
        %v1675 = vpop.permute.xlu0 %1674
        %v1680 = vmul.f32 %v1667, %v1669
        %v1681 = vmul.f32 %v1667, %v1671
        %v1682 = vmul.f32 %v1667, %v1673
        %v1683 = vmul.f32 %v1667, %v1675
        %1684 = vrot.lane.b32.xlu0 %v1079, 115
        %v1685 = vpop.permute.xlu0 %1684
        %1686 = vrot.lane.b32.xlu0 %v1080, 115
        %v1687 = vpop.permute.xlu0 %1686
        %1688 = vrot.lane.b32.xlu0 %v1081, 115
        %v1689 = vpop.permute.xlu0 %1688
        %1690 = vrot.lane.b32.xlu0 %v1082, 115
        %v1691 = vpop.permute.xlu0 %1690
        %v1696 = vmul.f32 %v1667, %v1685
        %v1697 = vmul.f32 %v1667, %v1687
        %v1698 = vmul.f32 %v1667, %v1689
        %v1699 = vmul.f32 %v1667, %v1691
        %v1700 = vadd.f32 %v1640, %v1680
        %v1701 = vadd.f32 %v1641, %v1681
        %v1702 = vadd.f32 %v1642, %v1682
        %v1703 = vadd.f32 %v1643, %v1683
        %v1704 = vadd.f32 %v1656, %v1696
        %v1705 = vadd.f32 %v1657, %v1697
        %v1706 = vadd.f32 %v1658, %v1698
        %v1707 = vadd.f32 %v1659, %v1699
        %v1708 = vmul.f32 %v826, %v1066
        %v1709 = vsel %vm1084, %v1708, 0.0
        %v1710 = vrot.slane %v1709, 4
        %v1711 = vadd.f32 %v1709, %v1710
        %v1712 = vrot.slane %v1711, 2
        %v1713 = vadd.f32 %v1711, %v1712
        %v1714 = vrot.slane %v1713, 1
        %v1715 = vadd.f32 %v1713, %v1714
        %1716 = vrot.lane.b32.xlu0 %v1074, 114
        %v1717 = vpop.permute.xlu0 %1716
        %1718 = vrot.lane.b32.xlu0 %v1075, 114
        %v1719 = vpop.permute.xlu0 %1718
        %1720 = vrot.lane.b32.xlu0 %v1076, 114
        %v1721 = vpop.permute.xlu0 %1720
        %1722 = vrot.lane.b32.xlu0 %v1077, 114
        %v1723 = vpop.permute.xlu0 %1722
        %v1728 = vmul.f32 %v1715, %v1717
        %v1729 = vmul.f32 %v1715, %v1719
        %v1730 = vmul.f32 %v1715, %v1721
        %v1731 = vmul.f32 %v1715, %v1723
        %1732 = vrot.lane.b32.xlu0 %v1079, 114
        %v1733 = vpop.permute.xlu0 %1732
        %1734 = vrot.lane.b32.xlu0 %v1080, 114
        %v1735 = vpop.permute.xlu0 %1734
        %1736 = vrot.lane.b32.xlu0 %v1081, 114
        %v1737 = vpop.permute.xlu0 %1736
        %1738 = vrot.lane.b32.xlu0 %v1082, 114
        %v1739 = vpop.permute.xlu0 %1738
        %v1744 = vmul.f32 %v1715, %v1733
        %v1745 = vmul.f32 %v1715, %v1735
        %v1746 = vmul.f32 %v1715, %v1737
        %v1747 = vmul.f32 %v1715, %v1739
        %v1748 = vadd.f32 %v1700, %v1728
        %v1749 = vadd.f32 %v1701, %v1729
        %v1750 = vadd.f32 %v1702, %v1730
        %v1751 = vadd.f32 %v1703, %v1731
        %v1752 = vadd.f32 %v1704, %v1744
        %v1753 = vadd.f32 %v1705, %v1745
        %v1754 = vadd.f32 %v1706, %v1746
        %v1755 = vadd.f32 %v1707, %v1747
        %v1756 = vmul.f32 %v826, %v1071
        %v1757 = vsel %vm1084, %v1756, 0.0
        %v1758 = vrot.slane %v1757, 4
        %v1759 = vadd.f32 %v1757, %v1758
        %v1760 = vrot.slane %v1759, 2
        %v1761 = vadd.f32 %v1759, %v1760
        %v1762 = vrot.slane %v1761, 1
        %v1763 = vadd.f32 %v1761, %v1762
        %1764 = vrot.lane.b32.xlu0 %v1074, 113
        %v1765 = vpop.permute.xlu0 %1764
        %1766 = vrot.lane.b32.xlu0 %v1075, 113
        %v1767 = vpop.permute.xlu0 %1766
        %1768 = vrot.lane.b32.xlu0 %v1076, 113
        %v1769 = vpop.permute.xlu0 %1768
        %1770 = vrot.lane.b32.xlu0 %v1077, 113
        %v1771 = vpop.permute.xlu0 %1770
        %v1776 = vmul.f32 %v1763, %v1765
        %v1777 = vmul.f32 %v1763, %v1767
        %v1778 = vmul.f32 %v1763, %v1769
        %v1779 = vmul.f32 %v1763, %v1771
        %1780 = vrot.lane.b32.xlu0 %v1079, 113
        %v1781 = vpop.permute.xlu0 %1780
        %1782 = vrot.lane.b32.xlu0 %v1080, 113
        %v1783 = vpop.permute.xlu0 %1782
        %1784 = vrot.lane.b32.xlu0 %v1081, 113
        %v1785 = vpop.permute.xlu0 %1784
        %1786 = vrot.lane.b32.xlu0 %v1082, 113
        %v1787 = vpop.permute.xlu0 %1786
        %v1792 = vmul.f32 %v1763, %v1781
        %v1793 = vmul.f32 %v1763, %v1783
        %v1794 = vmul.f32 %v1763, %v1785
        %v1795 = vmul.f32 %v1763, %v1787
        %v1796 = vadd.f32 %v1748, %v1776
        %v1797 = vadd.f32 %v1749, %v1777
        %v1798 = vadd.f32 %v1750, %v1778
        %v1799 = vadd.f32 %v1751, %v1779
        %v1800 = vadd.f32 %v1752, %v1792
        %v1801 = vadd.f32 %v1753, %v1793
        %v1802 = vadd.f32 %v1754, %v1794
        %v1803 = vadd.f32 %v1755, %v1795
        %v1804 = vadd.f32 %v1244, 0.0
        %v1805 = vadd.f32 %v1245, 0.0
        %v1806 = vadd.f32 %v1246, 0.0
        %v1807 = vadd.f32 %v1247, 0.0
        %v1808 = vadd.f32 %v1804, %v1428
        %v1809 = vadd.f32 %v1805, %v1429
        %v1810 = vadd.f32 %v1806, %v1430
        %v1811 = vadd.f32 %v1807, %v1431
        %v1812 = vadd.f32 %v1808, %v1612
        %v1813 = vadd.f32 %v1809, %v1613
        %v1814 = vadd.f32 %v1810, %v1614
        %v1815 = vadd.f32 %v1811, %v1615
        %v1816 = vadd.f32 %v1812, %v1796
        %v1817 = vadd.f32 %v1813, %v1797
        %v1818 = vadd.f32 %v1814, %v1798
        %v1819 = vadd.f32 %v1815, %v1799
        %1820 = vrot.lane.b32.xlu0 %v427, 125
        %v1821 = vpop.permute.xlu0 %1820
        %1822 = vrot.lane.b32.xlu0 %v428, 125
        %v1823 = vpop.permute.xlu0 %1822
        %1824 = vrot.lane.b32.xlu0 %v429, 125
        %v1825 = vpop.permute.xlu0 %1824
        %1826 = vrot.lane.b32.xlu0 %v430, 125
        %v1827 = vpop.permute.xlu0 %1826
        %v1832 = vadd.f32 %v1816, %v1821
        %v1833 = vadd.f32 %v1817, %v1823
        %v1834 = vadd.f32 %v1818, %v1825
        %v1835 = vadd.f32 %v1819, %v1827
        %v1836 = vmax.f32 %v1832, 0.0
        %v1837 = vmax.f32 %v1833, 0.0
        %v1838 = vmax.f32 %v1834, 0.0
        %v1839 = vmax.f32 %v1835, 0.0
        %v1840 = vadd.f32 %v1248, 0.0
        %v1841 = vadd.f32 %v1249, 0.0
        %v1842 = vadd.f32 %v1250, 0.0
        %v1843 = vadd.f32 %v1251, 0.0
        %v1844 = vadd.f32 %v1840, %v1432
        %v1845 = vadd.f32 %v1841, %v1433
        %v1846 = vadd.f32 %v1842, %v1434
        %v1847 = vadd.f32 %v1843, %v1435
        %v1848 = vadd.f32 %v1844, %v1616
        %v1849 = vadd.f32 %v1845, %v1617
        %v1850 = vadd.f32 %v1846, %v1618
        %v1851 = vadd.f32 %v1847, %v1619
        %v1852 = vadd.f32 %v1848, %v1800
        %v1853 = vadd.f32 %v1849, %v1801
        %v1854 = vadd.f32 %v1850, %v1802
        %v1855 = vadd.f32 %v1851, %v1803
        %1856 = vrot.lane.b32.xlu0 %v427, 123
        %v1857 = vpop.permute.xlu0 %1856
        %1858 = vrot.lane.b32.xlu0 %v428, 123
        %v1859 = vpop.permute.xlu0 %1858
        %1860 = vrot.lane.b32.xlu0 %v429, 123
        %v1861 = vpop.permute.xlu0 %1860
        %1862 = vrot.lane.b32.xlu0 %v430, 123
        %v1863 = vpop.permute.xlu0 %1862
        %v1868 = vadd.f32 %v1852, %v1857
        %v1869 = vadd.f32 %v1853, %v1859
        %v1870 = vadd.f32 %v1854, %v1861
        %v1871 = vadd.f32 %v1855, %v1863
        %v1872 = vmax.f32 %v1868, 0.0
        %v1873 = vmax.f32 %v1869, 0.0
        %v1874 = vmax.f32 %v1870, 0.0
        %v1875 = vmax.f32 %v1871, 0.0
        %s1876 = scalar_lea.vmem %s3, 64
        %v1877 = vld [vmem:[%s1876] sm:$0xff]
        %v1878 = vld [vmem:[%s1876 + $0x8] sm:$0xff]
        %v1879 = vld [vmem:[%s1876 + $0x10] sm:$0xff]
        %v1880 = vld [vmem:[%s1876 + $0x18] sm:$0xff]
        %1881 = vrot.lane.b32.xlu0 %v427, 124
        %v1882 = vpop.permute.xlu0 %1881
        %1883 = vrot.lane.b32.xlu0 %v428, 124
        %v1884 = vpop.permute.xlu0 %1883
        %1885 = vrot.lane.b32.xlu0 %v429, 124
        %v1886 = vpop.permute.xlu0 %1885
        %1887 = vrot.lane.b32.xlu0 %v430, 124
        %v1888 = vpop.permute.xlu0 %1887
        %v1894 = vsel %vm731, %v1877, 0
        %v1897 = vsel %vm731, %v1878, 0
        %v1900 = vsel %vm731, %v1879, 0
        %v1903 = vsel %vm731, %v1880, 0
        %1905 = vmatprep.subr.mxu0 0.0
        %1906 = vmatpush1.msra.mxu0 %v1836
        %1907 = vmatprep.subr.mxu0 0.0
        %1908 = vmatpush1.msra.mxu0 %v1837
        %1909 = vmatprep.subr.mxu0 0.0
        %1910 = vmatpush1.msra.mxu0 %v1838
        %1911 = vmatprep.subr.mxu0 0.0
        %1912 = vmatpush1.msra.mxu0 %v1839
        %1913 = vmatprep.subr.mxu0 0.0
        %1914 = vmatpush1.msra.mxu0 0.0
        %1915 = vmatprep.subr.mxu0 0.0
        %1916 = vmatpush1.msra.mxu0 0.0
        %1917 = vmatprep.subr.mxu0 0.0
        %1918 = vmatpush1.msra.mxu0 0.0
        %1919 = vmatprep.subr.mxu0 0.0
        %1920 = vmatpush1.msra.mxu0 0.0
        %1921 = vmatprep.subr.mxu0 0.0
        %1922 = vmatpush1.msra.mxu0 0.0
        %1923 = vmatprep.subr.mxu0 0.0
        %1924 = vmatpush1.msra.mxu0 0.0
        %1925 = vmatprep.subr.mxu0 0.0
        %1926 = vmatpush1.msra.mxu0 0.0
        %1927 = vmatprep.subr.mxu0 0.0
        %1928 = vmatpush1.msra.mxu0 0.0
        %1929 = vmatprep.subr.mxu0 0.0
        %1930 = vmatpush1.msra.mxu0 0.0
        %1931 = vmatprep.subr.mxu0 0.0
        %1932 = vmatpush1.msra.mxu0 0.0
        %1933 = vmatprep.subr.mxu0 0.0
        %1934 = vmatpush1.msra.mxu0 0.0
        %1935 = vmatprep.subr.mxu0 0.0
        %1936 = vmatpush1.msra.mxu0 0.0
        %1937 = vmatprep.subr.mxu0 0.0
        %1938 = vmatpush1.msra.mxu0 0.0
        %1939 = vmatprep.subr.mxu0 0.0
        %1940 = vmatpush1.msra.mxu0 0.0
        %1941 = vmatprep.subr.mxu0 0.0
        %1942 = vmatpush1.msra.mxu0 0.0
        %1943 = vmatprep.subr.mxu0 0.0
        %1944 = vmatpush1.msra.mxu0 0.0
        %1945 = vmatprep.subr.mxu0 0.0
        %1946 = vmatpush1.msra.mxu0 0.0
        %1947 = vmatprep.subr.mxu0 0.0
        %1948 = vmatpush1.msra.mxu0 0.0
        %1949 = vmatprep.subr.mxu0 0.0
        %1950 = vmatpush1.msra.mxu0 0.0
        %1951 = vmatprep.subr.mxu0 0.0
        %1952 = vmatpush1.msra.mxu0 0.0
        %1953 = vmatprep.subr.mxu0 0.0
        %1954 = vmatpush1.msra.mxu0 0.0
        %1955 = vmatprep.subr.mxu0 0.0
        %1956 = vmatpush1.msra.mxu0 0.0
        %1957 = vmatprep.subr.mxu0 0.0
        %1958 = vmatpush1.msra.mxu0 0.0
        %1959 = vmatprep.subr.mxu0 0.0
        %1960 = vmatpush1.msra.mxu0 0.0
        %1961 = vmatprep.subr.mxu0 0.0
        %1962 = vmatpush1.msra.mxu0 0.0
        %1963 = vmatprep.subr.mxu0 0.0
        %1964 = vmatpush1.msra.mxu0 0.0
        %1965 = vmatprep.subr.mxu0 0.0
        %1966 = vmatpush1.msra.mxu0 0.0
        %1967 = vmatprep.subr.mxu0 0.0
        %1968 = vmatpush1.msra.mxu0 0.0
        %1969 = vmatprep.mubr.f32.mxu0 0.0
        %1970 = vmatmul.mubr.f32.gmra.mrb[0].mxu0 %v1894
        %v1971 = vpop.f32.mrb[0].mxu0
        %v1972 = vadd.f32 %v1882, %v1971
        %v1973 = vpop.f32.mrb[0].mxu0
        %1974 = vmatprep.mubr.f32.mxu0 0.0
        %1975 = vmatmul.mubr.f32.gmra.mrb[0].mxu0 %v1897
        %v1976 = vpop.f32.mrb[0].mxu0
        %v1977 = vadd.f32 %v1884, %v1976
        %v1978 = vpop.f32.mrb[0].mxu0
        %1979 = vmatprep.mubr.f32.mxu0 0.0
        %1980 = vmatmul.mubr.f32.gmra.mrb[0].mxu0 %v1900
        %v1981 = vpop.f32.mrb[0].mxu0
        %v1982 = vadd.f32 %v1886, %v1981
        %v1983 = vpop.f32.mrb[0].mxu0
        %1984 = vmatprep.mubr.f32.mxu0 0.0
        %1985 = vmatmul.mubr.f32.gmra.mrb[0].mxu0 %v1903
        %v1986 = vpop.f32.mrb[0].mxu0
        %v1987 = vadd.f32 %v1888, %v1986
        %v1988 = vpop.f32.mrb[0].mxu0
        %1989 = vdwg.mxu0
        %v1990 = vmax.f32 %v1972, 0.0
        %v1991 = vmax.f32 %v1977, 0.0
        %v1992 = vmax.f32 %v1982, 0.0
        %v1993 = vmax.f32 %v1987, 0.0
        %s1994 = scalar_lea.vmem %s3, 96
        %v1995 = vld [vmem:[%s1994] sm:$0xff]
        %v1996 = vld [vmem:[%s1994 + $0x8] sm:$0xff]
        %v1997 = vld [vmem:[%s1994 + $0x10] sm:$0xff]
        %v1998 = vld [vmem:[%s1994 + $0x18] sm:$0xff]
        %1999 = vrot.lane.b32.xlu0 %v427, 122
        %v2000 = vpop.permute.xlu0 %1999
        %2001 = vrot.lane.b32.xlu0 %v428, 122
        %v2002 = vpop.permute.xlu0 %2001
        %2003 = vrot.lane.b32.xlu0 %v429, 122
        %v2004 = vpop.permute.xlu0 %2003
        %2005 = vrot.lane.b32.xlu0 %v430, 122
        %v2006 = vpop.permute.xlu0 %2005
        %v2012 = vsel %vm731, %v1995, 0
        %v2015 = vsel %vm731, %v1996, 0
        %v2018 = vsel %vm731, %v1997, 0
        %v2021 = vsel %vm731, %v1998, 0
        %2023 = vmatprep.subr.mxu0 0.0
        %2024 = vmatpush1.msra.mxu0 %v1872
        %2025 = vmatprep.subr.mxu0 0.0
        %2026 = vmatpush1.msra.mxu0 %v1873
        %2027 = vmatprep.subr.mxu0 0.0
        %2028 = vmatpush1.msra.mxu0 %v1874
        %2029 = vmatprep.subr.mxu0 0.0
        %2030 = vmatpush1.msra.mxu0 %v1875
        %2031 = vmatprep.subr.mxu0 0.0
        %2032 = vmatpush1.msra.mxu0 0.0
        %2033 = vmatprep.subr.mxu0 0.0
        %2034 = vmatpush1.msra.mxu0 0.0
        %2035 = vmatprep.subr.mxu0 0.0
        %2036 = vmatpush1.msra.mxu0 0.0
        %2037 = vmatprep.subr.mxu0 0.0
        %2038 = vmatpush1.msra.mxu0 0.0
        %2039 = vmatprep.subr.mxu0 0.0
        %2040 = vmatpush1.msra.mxu0 0.0
        %2041 = vmatprep.subr.mxu0 0.0
        %2042 = vmatpush1.msra.mxu0 0.0
        %2043 = vmatprep.subr.mxu0 0.0
        %2044 = vmatpush1.msra.mxu0 0.0
        %2045 = vmatprep.subr.mxu0 0.0
        %2046 = vmatpush1.msra.mxu0 0.0
        %2047 = vmatprep.subr.mxu0 0.0
        %2048 = vmatpush1.msra.mxu0 0.0
        %2049 = vmatprep.subr.mxu0 0.0
        %2050 = vmatpush1.msra.mxu0 0.0
        %2051 = vmatprep.subr.mxu0 0.0
        %2052 = vmatpush1.msra.mxu0 0.0
        %2053 = vmatprep.subr.mxu0 0.0
        %2054 = vmatpush1.msra.mxu0 0.0
        %2055 = vmatprep.subr.mxu0 0.0
        %2056 = vmatpush1.msra.mxu0 0.0
        %2057 = vmatprep.subr.mxu0 0.0
        %2058 = vmatpush1.msra.mxu0 0.0
        %2059 = vmatprep.subr.mxu0 0.0
        %2060 = vmatpush1.msra.mxu0 0.0
        %2061 = vmatprep.subr.mxu0 0.0
        %2062 = vmatpush1.msra.mxu0 0.0
        %2063 = vmatprep.subr.mxu0 0.0
        %2064 = vmatpush1.msra.mxu0 0.0
        %2065 = vmatprep.subr.mxu0 0.0
        %2066 = vmatpush1.msra.mxu0 0.0
        %2067 = vmatprep.subr.mxu0 0.0
        %2068 = vmatpush1.msra.mxu0 0.0
        %2069 = vmatprep.subr.mxu0 0.0
        %2070 = vmatpush1.msra.mxu0 0.0
        %2071 = vmatprep.subr.mxu0 0.0
        %2072 = vmatpush1.msra.mxu0 0.0
        %2073 = vmatprep.subr.mxu0 0.0
        %2074 = vmatpush1.msra.mxu0 0.0
        %2075 = vmatprep.subr.mxu0 0.0
        %2076 = vmatpush1.msra.mxu0 0.0
        %2077 = vmatprep.subr.mxu0 0.0
        %2078 = vmatpush1.msra.mxu0 0.0
        %2079 = vmatprep.subr.mxu0 0.0
        %2080 = vmatpush1.msra.mxu0 0.0
        %2081 = vmatprep.subr.mxu0 0.0
        %2082 = vmatpush1.msra.mxu0 0.0
        %2083 = vmatprep.subr.mxu0 0.0
        %2084 = vmatpush1.msra.mxu0 0.0
        %2085 = vmatprep.subr.mxu0 0.0
        %2086 = vmatpush1.msra.mxu0 0.0
        %2087 = vmatprep.mubr.f32.mxu0 0.0
        %2088 = vmatmul.mubr.f32.gmra.mrb[0].mxu0 %v2012
        %v2089 = vpop.f32.mrb[0].mxu0
        %v2090 = vadd.f32 %v2000, %v2089
        %v2091 = vpop.f32.mrb[0].mxu0
        %2092 = vmatprep.mubr.f32.mxu0 0.0
        %2093 = vmatmul.mubr.f32.gmra.mrb[0].mxu0 %v2015
        %v2094 = vpop.f32.mrb[0].mxu0
        %v2095 = vadd.f32 %v2002, %v2094
        %v2096 = vpop.f32.mrb[0].mxu0
        %2097 = vmatprep.mubr.f32.mxu0 0.0
        %2098 = vmatmul.mubr.f32.gmra.mrb[0].mxu0 %v2018
        %v2099 = vpop.f32.mrb[0].mxu0
        %v2100 = vadd.f32 %v2004, %v2099
        %v2101 = vpop.f32.mrb[0].mxu0
        %2102 = vmatprep.mubr.f32.mxu0 0.0
        %2103 = vmatmul.mubr.f32.gmra.mrb[0].mxu0 %v2021
        %v2104 = vpop.f32.mrb[0].mxu0
        %v2105 = vadd.f32 %v2006, %v2104
        %v2106 = vpop.f32.mrb[0].mxu0
        %2107 = vdwg.mxu0
        %v2108 = vmax.f32 %v2090, 0.0
        %v2109 = vmax.f32 %v2095, 0.0
        %v2110 = vmax.f32 %v2100, 0.0
        %v2111 = vmax.f32 %v2105, 0.0
        %s2112 = sld [smem:[#allocation2]]
        %v2113 = vstv %s2112
        %v2114 = vmul.f32 %v2113, %v1990
        %v2115 = vmul.f32 %v2113, %v1991
        %v2116 = vmul.f32 %v2113, %v1992
        %v2117 = vmul.f32 %v2113, %v1993
        %v2118 = vadd.f32 %v811, %v2114
        %v2119 = vadd.f32 %v816, %v2115
        %v2120 = vadd.f32 %v821, %v2116
        %v2121 = vadd.f32 %v826, %v2117
        %v2122 = vxor.u32 %v2118, 2147483648
        %v2123 = vxor.u32 %v2119, 2147483648
        %v2124 = vxor.u32 %v2120, 2147483648
        %v2125 = vxor.u32 %v2121, 2147483648
        %v2126 = vmul.f32 %v2122, 1.442695
        %v2127 = vpow.pop %v2126
        %v2128 = vmul.f32 %v2123, 1.442695
        %v2129 = vpow.pop %v2128
        %v2130 = vmul.f32 %v2124, 1.442695
        %v2131 = vpow.pop %v2130
        %v2132 = vmul.f32 %v2125, 1.442695
        %v2133 = vpow.pop %v2132
        %v2134 = vadd.f32 %v2127, 1.0
        %v2135 = vadd.f32 %v2129, 1.0
        %v2136 = vadd.f32 %v2131, 1.0
        %v2137 = vadd.f32 %v2133, 1.0
        %v2138 = vrcp.pop %v2134
        %v2139 = vmul.f32 1.0, %v2138
        %v2140 = vrcp.pop %v2135
        %v2141 = vmul.f32 1.0, %v2140
        %v2142 = vrcp.pop %v2136
        %v2143 = vmul.f32 1.0, %v2142
        %v2144 = vrcp.pop %v2137
        %v2145 = vmul.f32 1.0, %v2144
        %s2146 = sld [smem:[#allocation2 + $0x1]]
        %v2147 = vstv %s2146
        %v2148 = vmul.f32 %v2147, %v2108
        %v2149 = vmul.f32 %v2147, %v2109
        %v2150 = vmul.f32 %v2147, %v2110
        %v2151 = vmul.f32 %v2147, %v2111
        %v2152 = vadd.f32 %v1056, %v2148
        %v2153 = vadd.f32 %v1061, %v2149
        %v2154 = vadd.f32 %v1066, %v2150
        %v2155 = vadd.f32 %v1071, %v2151
        %v2156 = vxor.u32 %v2152, 2147483648
        %v2157 = vxor.u32 %v2153, 2147483648
        %v2158 = vxor.u32 %v2154, 2147483648
        %v2159 = vxor.u32 %v2155, 2147483648
        %v2160 = vmul.f32 %v2156, 1.442695
        %v2161 = vpow.pop %v2160
        %v2162 = vmul.f32 %v2157, 1.442695
        %v2163 = vpow.pop %v2162
        %v2164 = vmul.f32 %v2158, 1.442695
        %v2165 = vpow.pop %v2164
        %v2166 = vmul.f32 %v2159, 1.442695
        %v2167 = vpow.pop %v2166
        %v2168 = vadd.f32 %v2161, 1.0
        %v2169 = vadd.f32 %v2163, 1.0
        %v2170 = vadd.f32 %v2165, 1.0
        %v2171 = vadd.f32 %v2167, 1.0
        %v2172 = vrcp.pop %v2168
        %v2173 = vmul.f32 1.0, %v2172
        %v2174 = vrcp.pop %v2169
        %v2175 = vmul.f32 1.0, %v2174
        %v2176 = vrcp.pop %v2170
        %v2177 = vmul.f32 1.0, %v2176
        %v2178 = vrcp.pop %v2171
        %v2179 = vmul.f32 1.0, %v2178
        %2181 = vset.pattern.permute.xlu0 0
        %2182 = vperm.xlu0 %2181, %v2139
        %v2183 = vpop.permute.xlu0 %2182
        %2186 = vset.pattern.permute.xlu0 0
        %2187 = vperm.xlu0 %2186, %v2141
        %v2188 = vpop.permute.xlu0 %2187
        %2191 = vset.pattern.permute.xlu0 0
        %2192 = vperm.xlu0 %2191, %v2143
        %v2193 = vpop.permute.xlu0 %2192
        %2196 = vset.pattern.permute.xlu0 0
        %2197 = vperm.xlu0 %2196, %v2145
        %v2198 = vpop.permute.xlu0 %2197
        %v2200 = vmul.f32 %v531, %v2183
        %v2201 = vmul.f32 %v533, %v2183
        %v2202 = vmul.f32 %v537, %v2188
        %v2203 = vmul.f32 %v539, %v2188
        %v2204 = vmul.f32 %v543, %v2193
        %v2205 = vmul.f32 %v545, %v2193
        %v2206 = vmul.f32 %v549, %v2198
        %v2207 = vmul.f32 %v551, %v2198
        %2209 = vset.pattern.permute.xlu0 0
        %2210 = vperm.xlu0 %2209, %v2173
        %v2211 = vpop.permute.xlu0 %2210
        %2214 = vset.pattern.permute.xlu0 0
        %2215 = vperm.xlu0 %2214, %v2175
        %v2216 = vpop.permute.xlu0 %2215
        %2219 = vset.pattern.permute.xlu0 0
        %2220 = vperm.xlu0 %2219, %v2177
        %v2221 = vpop.permute.xlu0 %2220
        %2224 = vset.pattern.permute.xlu0 0
        %2225 = vperm.xlu0 %2224, %v2179
        %v2226 = vpop.permute.xlu0 %2225
        %v2228 = vmul.f32 %v829, %v2211
        %v2229 = vmul.f32 %v830, %v2216
        %v2230 = vmul.f32 %v831, %v2221
        %v2231 = vmul.f32 %v832, %v2226
        %v2232 = vld [vmem:[%s7] sm:$0xff]
        %v2233 = vld [vmem:[%s7 + $0x8] sm:$0xff]
        %v2234 = vld [vmem:[%s7 + $0x10] sm:$0xff]
        %v2235 = vld [vmem:[%s7 + $0x18] sm:$0xff]
        %v2236 = vld [vmem:[%s7 + $0x20] sm:$0xff]
        %v2237 = vld [vmem:[%s7 + $0x28] sm:$0xff]
        %v2238 = vld [vmem:[%s7 + $0x30] sm:$0xff]
        %v2239 = vld [vmem:[%s7 + $0x38] sm:$0xff]
        %v2240 = vld [vmem:[%s7 + $0x40] sm:$0xff]
        %v2241 = vld [vmem:[%s7 + $0x48] sm:$0xff]
        %v2242 = vld [vmem:[%s7 + $0x50] sm:$0xff]
        %v2243 = vld [vmem:[%s7 + $0x58] sm:$0xff]
        %v2244 = vld [vmem:[%s7 + $0x60] sm:$0xff]
        %v2245 = vld [vmem:[%s7 + $0x68] sm:$0xff]
        %v2246 = vld [vmem:[%s7 + $0x70] sm:$0xff]
        %v2247 = vld [vmem:[%s7 + $0x78] sm:$0xff]
        %vm2248 = vcmask 523264
        %v2250 = vsel %vm2248, %v2228, 0
        %v2253 = vsel %vm2248, %v2229, 0
        %v2256 = vsel %vm2248, %v2230, 0
        %v2259 = vsel %vm2248, %v2231, 0
        %2261 = vmatprep.subr.mxu0 %v2233
        %2262 = vmatpush1.msra.mxu0 %v2232
        %2263 = vmatprep.subr.mxu0 %v2235
        %2264 = vmatpush1.msra.mxu0 %v2234
        %2265 = vmatprep.subr.mxu0 %v2237
        %2266 = vmatpush1.msra.mxu0 %v2236
        %2267 = vmatprep.subr.mxu0 %v2239
        %2268 = vmatpush1.msra.mxu0 %v2238
        %2269 = vmatprep.subr.mxu0 %v2241
        %2270 = vmatpush1.msra.mxu0 %v2240
        %2271 = vmatprep.subr.mxu0 %v2243
        %2272 = vmatpush1.msra.mxu0 %v2242
        %2273 = vmatprep.subr.mxu0 %v2245
        %2274 = vmatpush1.msra.mxu0 %v2244
        %2275 = vmatprep.subr.mxu0 %v2247
        %2276 = vmatpush1.msra.mxu0 %v2246
        %2277 = vmatprep.subr.mxu0 0.0
        %2278 = vmatpush1.msra.mxu0 0.0
        %2279 = vmatprep.subr.mxu0 0.0
        %2280 = vmatpush1.msra.mxu0 0.0
        %2281 = vmatprep.subr.mxu0 0.0
        %2282 = vmatpush1.msra.mxu0 0.0
        %2283 = vmatprep.subr.mxu0 0.0
        %2284 = vmatpush1.msra.mxu0 0.0
        %2285 = vmatprep.subr.mxu0 0.0
        %2286 = vmatpush1.msra.mxu0 0.0
        %2287 = vmatprep.subr.mxu0 0.0
        %2288 = vmatpush1.msra.mxu0 0.0
        %2289 = vmatprep.subr.mxu0 0.0
        %2290 = vmatpush1.msra.mxu0 0.0
        %2291 = vmatprep.subr.mxu0 0.0
        %2292 = vmatpush1.msra.mxu0 0.0
        %2293 = vmatprep.subr.mxu0 0.0
        %2294 = vmatpush1.msra.mxu0 0.0
        %2295 = vmatprep.subr.mxu0 0.0
        %2296 = vmatpush1.msra.mxu0 0.0
        %2297 = vmatprep.subr.mxu0 0.0
        %2298 = vmatpush1.msra.mxu0 0.0
        %2299 = vmatprep.subr.mxu0 0.0
        %2300 = vmatpush1.msra.mxu0 0.0
        %2301 = vmatprep.subr.mxu0 0.0
        %2302 = vmatpush1.msra.mxu0 0.0
        %2303 = vmatprep.subr.mxu0 0.0
        %2304 = vmatpush1.msra.mxu0 0.0
        %2305 = vmatprep.subr.mxu0 0.0
        %2306 = vmatpush1.msra.mxu0 0.0
        %2307 = vmatprep.subr.mxu0 0.0
        %2308 = vmatpush1.msra.mxu0 0.0
        %2309 = vmatprep.subr.mxu0 0.0
        %2310 = vmatpush1.msra.mxu0 0.0
        %2311 = vmatprep.subr.mxu0 0.0
        %2312 = vmatpush1.msra.mxu0 0.0
        %2313 = vmatprep.subr.mxu0 0.0
        %2314 = vmatpush1.msra.mxu0 0.0
        %2315 = vmatprep.subr.mxu0 0.0
        %2316 = vmatpush1.msra.mxu0 0.0
        %2317 = vmatprep.subr.mxu0 0.0
        %2318 = vmatpush1.msra.mxu0 0.0
        %2319 = vmatprep.subr.mxu0 0.0
        %2320 = vmatpush1.msra.mxu0 0.0
        %2321 = vmatprep.subr.mxu0 0.0
        %2322 = vmatpush1.msra.mxu0 0.0
        %2323 = vmatprep.subr.mxu0 0.0
        %2324 = vmatpush1.msra.mxu0 0.0
        %2325 = vmatprep.mubr.f32.mxu0 0.0
        %2326 = vmatmul.mubr.f32.gmra.mrb[0].mxu0 %v2250
        %v2327 = vpop.f32.mrb[0].mxu0
        %v2328 = vadd.f32 0.0, %v2327
        %v2329 = vpop.f32.mrb[0].mxu0
        %v2330 = vadd.f32 0.0, %v2329
        %2331 = vmatprep.mubr.f32.mxu0 0.0
        %2332 = vmatmul.mubr.f32.gmra.mrb[0].mxu0 %v2253
        %v2333 = vpop.f32.mrb[0].mxu0
        %v2334 = vadd.f32 0.0, %v2333
        %v2335 = vpop.f32.mrb[0].mxu0
        %v2336 = vadd.f32 0.0, %v2335
        %2337 = vmatprep.mubr.f32.mxu0 0.0
        %2338 = vmatmul.mubr.f32.gmra.mrb[0].mxu0 %v2256
        %v2339 = vpop.f32.mrb[0].mxu0
        %v2340 = vadd.f32 0.0, %v2339
        %v2341 = vpop.f32.mrb[0].mxu0
        %v2342 = vadd.f32 0.0, %v2341
        %2343 = vmatprep.mubr.f32.mxu0 0.0
        %2344 = vmatmul.mubr.f32.gmra.mrb[0].mxu0 %v2259
        %v2345 = vpop.f32.mrb[0].mxu0
        %v2346 = vadd.f32 0.0, %v2345
        %v2347 = vpop.f32.mrb[0].mxu0
        %v2348 = vadd.f32 0.0, %v2347
        %2349 = vdwg.mxu0
        %2350 = vrot.lane.b32.xlu0 %v2328, 17
        %v2351 = vpop.permute.xlu0 %2350
        %2352 = vrot.lane.b32.xlu0 %v2334, 17
        %v2353 = vpop.permute.xlu0 %2352
        %2354 = vrot.lane.b32.xlu0 %v2340, 17
        %v2355 = vpop.permute.xlu0 %2354
        %2356 = vrot.lane.b32.xlu0 %v2346, 17
        %v2357 = vpop.permute.xlu0 %2356
        %2358 = vrot.lane.b32.xlu0 %v2330, 17
        %v2359 = vpop.permute.xlu0 %2358
        %2360 = vrot.lane.b32.xlu0 %v2336, 17
        %v2361 = vpop.permute.xlu0 %2360
        %2362 = vrot.lane.b32.xlu0 %v2342, 17
        %v2363 = vpop.permute.xlu0 %2362
        %2364 = vrot.lane.b32.xlu0 %v2348, 17
        %v2365 = vpop.permute.xlu0 %2364
        %vm2366 = vcmp.lt.s32.totalorder %v574, 17
        %v2367 = vsel %vm2366, %v2351, %v2359
        %v2368 = vsel %vm2366, %v2353, %v2361
        %v2369 = vsel %vm2366, %v2355, %v2363
        %v2370 = vsel %vm2366, %v2357, %v2365
        %v2371 = vsel %vm2366, %v2359, %v2351
        %v2372 = vsel %vm2366, %v2361, %v2353
        %v2373 = vsel %vm2366, %v2363, %v2355
        %v2374 = vsel %vm2366, %v2365, %v2357
        %v2375 = vld [vmem:[%s8] ss:$8 sm:$0x3]
        %v2377 = vlaneseq
        %v2378 = vshrl.u32 %v2377, 7
        %v2379 = vsub.s32 0, %v2378
        %v2380 = vrot.slane %v2375, %v2379
        %v2381 = vlaneseq
        %v2382 = vshrl.u32 %v2381, 7
        %v2383 = vsub.s32 1, %v2382
        %v2384 = vrot.slane %v2375, %v2383
        %v2387 = vmul.f32 %v2371, %v2380
        %v2388 = vmul.f32 %v2367, %v2384
        %v2389 = vmul.f32 %v2372, %v2380
        %v2390 = vmul.f32 %v2368, %v2384
        %v2391 = vmul.f32 %v2373, %v2380
        %v2392 = vmul.f32 %v2369, %v2384
        %v2393 = vmul.f32 %v2374, %v2380
        %v2394 = vmul.f32 %v2370, %v2384
        %2395 = vrot.lane.b32.xlu0 %v2328, 16
        %v2396 = vpop.permute.xlu0 %2395
        %2397 = vrot.lane.b32.xlu0 %v2334, 16
        %v2398 = vpop.permute.xlu0 %2397
        %2399 = vrot.lane.b32.xlu0 %v2340, 16
        %v2400 = vpop.permute.xlu0 %2399
        %2401 = vrot.lane.b32.xlu0 %v2346, 16
        %v2402 = vpop.permute.xlu0 %2401
        %2403 = vrot.lane.b32.xlu0 %v2330, 16
        %v2404 = vpop.permute.xlu0 %2403
        %2405 = vrot.lane.b32.xlu0 %v2336, 16
        %v2406 = vpop.permute.xlu0 %2405
        %2407 = vrot.lane.b32.xlu0 %v2342, 16
        %v2408 = vpop.permute.xlu0 %2407
        %2409 = vrot.lane.b32.xlu0 %v2348, 16
        %v2410 = vpop.permute.xlu0 %2409
        %vm2411 = vcmp.lt.s32.totalorder %v574, 16
        %v2412 = vsel %vm2411, %v2396, %v2404
        %v2413 = vsel %vm2411, %v2398, %v2406
        %v2414 = vsel %vm2411, %v2400, %v2408
        %v2415 = vsel %vm2411, %v2402, %v2410
        %v2416 = vsel %vm2411, %v2404, %v2396
        %v2417 = vsel %vm2411, %v2406, %v2398
        %v2418 = vsel %vm2411, %v2408, %v2400
        %v2419 = vsel %vm2411, %v2410, %v2402
        %s2420 = scalar_lea.vmem %s8, 1
        %v2421 = vld [vmem:[%s2420] ss:$8 sm:$0x3]
        %v2423 = vlaneseq
        %v2424 = vshrl.u32 %v2423, 7
        %v2425 = vsub.s32 0, %v2424
        %v2426 = vrot.slane %v2421, %v2425
        %v2427 = vlaneseq
        %v2428 = vshrl.u32 %v2427, 7
        %v2429 = vsub.s32 1, %v2428
        %v2430 = vrot.slane %v2421, %v2429
        %v2433 = vmul.f32 %v2416, %v2426
        %v2434 = vmul.f32 %v2412, %v2430
        %v2435 = vmul.f32 %v2417, %v2426
        %v2436 = vmul.f32 %v2413, %v2430
        %v2437 = vmul.f32 %v2418, %v2426
        %v2438 = vmul.f32 %v2414, %v2430
        %v2439 = vmul.f32 %v2419, %v2426
        %v2440 = vmul.f32 %v2415, %v2430
        %2441 = vrot.lane.b32.xlu0 %v2328, 15
        %v2442 = vpop.permute.xlu0 %2441
        %2443 = vrot.lane.b32.xlu0 %v2334, 15
        %v2444 = vpop.permute.xlu0 %2443
        %2445 = vrot.lane.b32.xlu0 %v2340, 15
        %v2446 = vpop.permute.xlu0 %2445
        %2447 = vrot.lane.b32.xlu0 %v2346, 15
        %v2448 = vpop.permute.xlu0 %2447
        %2449 = vrot.lane.b32.xlu0 %v2330, 15
        %v2450 = vpop.permute.xlu0 %2449
        %2451 = vrot.lane.b32.xlu0 %v2336, 15
        %v2452 = vpop.permute.xlu0 %2451
        %2453 = vrot.lane.b32.xlu0 %v2342, 15
        %v2454 = vpop.permute.xlu0 %2453
        %2455 = vrot.lane.b32.xlu0 %v2348, 15
        %v2456 = vpop.permute.xlu0 %2455
        %vm2457 = vcmp.lt.s32.totalorder %v574, 15
        %v2458 = vsel %vm2457, %v2442, %v2450
        %v2459 = vsel %vm2457, %v2444, %v2452
        %v2460 = vsel %vm2457, %v2446, %v2454
        %v2461 = vsel %vm2457, %v2448, %v2456
        %v2462 = vsel %vm2457, %v2450, %v2442
        %v2463 = vsel %vm2457, %v2452, %v2444
        %v2464 = vsel %vm2457, %v2454, %v2446
        %v2465 = vsel %vm2457, %v2456, %v2448
        %s2466 = scalar_lea.vmem %s8, 2
        %v2467 = vld [vmem:[%s2466] ss:$8 sm:$0x3]
        %v2469 = vlaneseq
        %v2470 = vshrl.u32 %v2469, 7
        %v2471 = vsub.s32 0, %v2470
        %v2472 = vrot.slane %v2467, %v2471
        %v2473 = vlaneseq
        %v2474 = vshrl.u32 %v2473, 7
        %v2475 = vsub.s32 1, %v2474
        %v2476 = vrot.slane %v2467, %v2475
        %v2479 = vmul.f32 %v2462, %v2472
        %v2480 = vmul.f32 %v2458, %v2476
        %v2481 = vmul.f32 %v2463, %v2472
        %v2482 = vmul.f32 %v2459, %v2476
        %v2483 = vmul.f32 %v2464, %v2472
        %v2484 = vmul.f32 %v2460, %v2476
        %v2485 = vmul.f32 %v2465, %v2472
        %v2486 = vmul.f32 %v2461, %v2476
        %2487 = vrot.lane.b32.xlu0 %v2328, 1
        %v2488 = vpop.permute.xlu0 %2487
        %2489 = vrot.lane.b32.xlu0 %v2334, 1
        %v2490 = vpop.permute.xlu0 %2489
        %2491 = vrot.lane.b32.xlu0 %v2340, 1
        %v2492 = vpop.permute.xlu0 %2491
        %2493 = vrot.lane.b32.xlu0 %v2346, 1
        %v2494 = vpop.permute.xlu0 %2493
        %2495 = vrot.lane.b32.xlu0 %v2330, 1
        %v2496 = vpop.permute.xlu0 %2495
        %2497 = vrot.lane.b32.xlu0 %v2336, 1
        %v2498 = vpop.permute.xlu0 %2497
        %2499 = vrot.lane.b32.xlu0 %v2342, 1
        %v2500 = vpop.permute.xlu0 %2499
        %2501 = vrot.lane.b32.xlu0 %v2348, 1
        %v2502 = vpop.permute.xlu0 %2501
        %vm2503 = vcmp.lt.s32.totalorder %v574, 1
        %v2504 = vsel %vm2503, %v2488, %v2496
        %v2505 = vsel %vm2503, %v2490, %v2498
        %v2506 = vsel %vm2503, %v2492, %v2500
        %v2507 = vsel %vm2503, %v2494, %v2502
        %v2508 = vsel %vm2503, %v2496, %v2488
        %v2509 = vsel %vm2503, %v2498, %v2490
        %v2510 = vsel %vm2503, %v2500, %v2492
        %v2511 = vsel %vm2503, %v2502, %v2494
        %s2512 = scalar_lea.vmem %s8, 3
        %v2513 = vld [vmem:[%s2512] ss:$8 sm:$0x3]
        %v2515 = vlaneseq
        %v2516 = vshrl.u32 %v2515, 7
        %v2517 = vsub.s32 0, %v2516
        %v2518 = vrot.slane %v2513, %v2517
        %v2519 = vlaneseq
        %v2520 = vshrl.u32 %v2519, 7
        %v2521 = vsub.s32 1, %v2520
        %v2522 = vrot.slane %v2513, %v2521
        %v2525 = vmul.f32 %v2508, %v2518
        %v2526 = vmul.f32 %v2504, %v2522
        %v2527 = vmul.f32 %v2509, %v2518
        %v2528 = vmul.f32 %v2505, %v2522
        %v2529 = vmul.f32 %v2510, %v2518
        %v2530 = vmul.f32 %v2506, %v2522
        %v2531 = vmul.f32 %v2511, %v2518
        %v2532 = vmul.f32 %v2507, %v2522
        %2533 = vrot.lane.b32.xlu0 %v2328, 127
        %v2534 = vpop.permute.xlu0 %2533
        %2535 = vrot.lane.b32.xlu0 %v2334, 127
        %v2536 = vpop.permute.xlu0 %2535
        %2537 = vrot.lane.b32.xlu0 %v2340, 127
        %v2538 = vpop.permute.xlu0 %2537
        %2539 = vrot.lane.b32.xlu0 %v2346, 127
        %v2540 = vpop.permute.xlu0 %2539
        %2541 = vrot.lane.b32.xlu0 %v2330, 127
        %v2542 = vpop.permute.xlu0 %2541
        %2543 = vrot.lane.b32.xlu0 %v2336, 127
        %v2544 = vpop.permute.xlu0 %2543
        %2545 = vrot.lane.b32.xlu0 %v2342, 127
        %v2546 = vpop.permute.xlu0 %2545
        %2547 = vrot.lane.b32.xlu0 %v2348, 127
        %v2548 = vpop.permute.xlu0 %2547
        %v2549 = vsel %vm627, %v2534, %v2542
        %v2550 = vsel %vm627, %v2536, %v2544
        %v2551 = vsel %vm627, %v2538, %v2546
        %v2552 = vsel %vm627, %v2540, %v2548
        %v2553 = vsel %vm627, %v2542, %v2534
        %v2554 = vsel %vm627, %v2544, %v2536
        %v2555 = vsel %vm627, %v2546, %v2538
        %v2556 = vsel %vm627, %v2548, %v2540
        %s2557 = scalar_lea.vmem %s8, 5
        %v2558 = vld [vmem:[%s2557] ss:$8 sm:$0x3]
        %v2560 = vlaneseq
        %v2561 = vshrl.u32 %v2560, 7
        %v2562 = vsub.s32 0, %v2561
        %v2563 = vrot.slane %v2558, %v2562
        %v2564 = vlaneseq
        %v2565 = vshrl.u32 %v2564, 7
        %v2566 = vsub.s32 1, %v2565
        %v2567 = vrot.slane %v2558, %v2566
        %v2570 = vmul.f32 %v2549, %v2563
        %v2571 = vmul.f32 %v2553, %v2567
        %v2572 = vmul.f32 %v2550, %v2563
        %v2573 = vmul.f32 %v2554, %v2567
        %v2574 = vmul.f32 %v2551, %v2563
        %v2575 = vmul.f32 %v2555, %v2567
        %v2576 = vmul.f32 %v2552, %v2563
        %v2577 = vmul.f32 %v2556, %v2567
        %2578 = vrot.lane.b32.xlu0 %v2328, 113
        %v2579 = vpop.permute.xlu0 %2578
        %2580 = vrot.lane.b32.xlu0 %v2334, 113
        %v2581 = vpop.permute.xlu0 %2580
        %2582 = vrot.lane.b32.xlu0 %v2340, 113
        %v2583 = vpop.permute.xlu0 %2582
        %2584 = vrot.lane.b32.xlu0 %v2346, 113
        %v2585 = vpop.permute.xlu0 %2584
        %2586 = vrot.lane.b32.xlu0 %v2330, 113
        %v2587 = vpop.permute.xlu0 %2586
        %2588 = vrot.lane.b32.xlu0 %v2336, 113
        %v2589 = vpop.permute.xlu0 %2588
        %2590 = vrot.lane.b32.xlu0 %v2342, 113
        %v2591 = vpop.permute.xlu0 %2590
        %2592 = vrot.lane.b32.xlu0 %v2348, 113
        %v2593 = vpop.permute.xlu0 %2592
        %vm2594 = vcmp.lt.s32.totalorder %v574, 113
        %v2595 = vsel %vm2594, %v2579, %v2587
        %v2596 = vsel %vm2594, %v2581, %v2589
        %v2597 = vsel %vm2594, %v2583, %v2591
        %v2598 = vsel %vm2594, %v2585, %v2593
        %v2599 = vsel %vm2594, %v2587, %v2579
        %v2600 = vsel %vm2594, %v2589, %v2581
        %v2601 = vsel %vm2594, %v2591, %v2583
        %v2602 = vsel %vm2594, %v2593, %v2585
        %s2603 = scalar_lea.vmem %s8, 6
        %v2604 = vld [vmem:[%s2603] ss:$8 sm:$0x3]
        %v2606 = vlaneseq
        %v2607 = vshrl.u32 %v2606, 7
        %v2608 = vsub.s32 0, %v2607
        %v2609 = vrot.slane %v2604, %v2608
        %v2610 = vlaneseq
        %v2611 = vshrl.u32 %v2610, 7
        %v2612 = vsub.s32 1, %v2611
        %v2613 = vrot.slane %v2604, %v2612
        %v2616 = vmul.f32 %v2595, %v2609
        %v2617 = vmul.f32 %v2599, %v2613
        %v2618 = vmul.f32 %v2596, %v2609
        %v2619 = vmul.f32 %v2600, %v2613
        %v2620 = vmul.f32 %v2597, %v2609
        %v2621 = vmul.f32 %v2601, %v2613
        %v2622 = vmul.f32 %v2598, %v2609
        %v2623 = vmul.f32 %v2602, %v2613
        %2624 = vrot.lane.b32.xlu0 %v2328, 112
        %v2625 = vpop.permute.xlu0 %2624
        %2626 = vrot.lane.b32.xlu0 %v2334, 112
        %v2627 = vpop.permute.xlu0 %2626
        %2628 = vrot.lane.b32.xlu0 %v2340, 112
        %v2629 = vpop.permute.xlu0 %2628
        %2630 = vrot.lane.b32.xlu0 %v2346, 112
        %v2631 = vpop.permute.xlu0 %2630
        %2632 = vrot.lane.b32.xlu0 %v2330, 112
        %v2633 = vpop.permute.xlu0 %2632
        %2634 = vrot.lane.b32.xlu0 %v2336, 112
        %v2635 = vpop.permute.xlu0 %2634
        %2636 = vrot.lane.b32.xlu0 %v2342, 112
        %v2637 = vpop.permute.xlu0 %2636
        %2638 = vrot.lane.b32.xlu0 %v2348, 112
        %v2639 = vpop.permute.xlu0 %2638
        %v2640 = vsel %vm575, %v2625, %v2633
        %v2641 = vsel %vm575, %v2627, %v2635
        %v2642 = vsel %vm575, %v2629, %v2637
        %v2643 = vsel %vm575, %v2631, %v2639
        %v2644 = vsel %vm575, %v2633, %v2625
        %v2645 = vsel %vm575, %v2635, %v2627
        %v2646 = vsel %vm575, %v2637, %v2629
        %v2647 = vsel %vm575, %v2639, %v2631
        %s2648 = scalar_lea.vmem %s8, 7
        %v2649 = vld [vmem:[%s2648] ss:$8 sm:$0x3]
        %v2651 = vlaneseq
        %v2652 = vshrl.u32 %v2651, 7
        %v2653 = vsub.s32 0, %v2652
        %v2654 = vrot.slane %v2649, %v2653
        %v2655 = vlaneseq
        %v2656 = vshrl.u32 %v2655, 7
        %v2657 = vsub.s32 1, %v2656
        %v2658 = vrot.slane %v2649, %v2657
        %v2661 = vmul.f32 %v2640, %v2654
        %v2662 = vmul.f32 %v2644, %v2658
        %v2663 = vmul.f32 %v2641, %v2654
        %v2664 = vmul.f32 %v2645, %v2658
        %v2665 = vmul.f32 %v2642, %v2654
        %v2666 = vmul.f32 %v2646, %v2658
        %v2667 = vmul.f32 %v2643, %v2654
        %v2668 = vmul.f32 %v2647, %v2658
        %2669 = vrot.lane.b32.xlu0 %v2328, 111
        %v2670 = vpop.permute.xlu0 %2669
        %2671 = vrot.lane.b32.xlu0 %v2334, 111
        %v2672 = vpop.permute.xlu0 %2671
        %2673 = vrot.lane.b32.xlu0 %v2340, 111
        %v2674 = vpop.permute.xlu0 %2673
        %2675 = vrot.lane.b32.xlu0 %v2346, 111
        %v2676 = vpop.permute.xlu0 %2675
        %2677 = vrot.lane.b32.xlu0 %v2330, 111
        %v2678 = vpop.permute.xlu0 %2677
        %2679 = vrot.lane.b32.xlu0 %v2336, 111
        %v2680 = vpop.permute.xlu0 %2679
        %2681 = vrot.lane.b32.xlu0 %v2342, 111
        %v2682 = vpop.permute.xlu0 %2681
        %2683 = vrot.lane.b32.xlu0 %v2348, 111
        %v2684 = vpop.permute.xlu0 %2683
        %vm2685 = vcmp.lt.s32.totalorder %v574, 111
        %v2686 = vsel %vm2685, %v2670, %v2678
        %v2687 = vsel %vm2685, %v2672, %v2680
        %v2688 = vsel %vm2685, %v2674, %v2682
        %v2689 = vsel %vm2685, %v2676, %v2684
        %v2690 = vsel %vm2685, %v2678, %v2670
        %v2691 = vsel %vm2685, %v2680, %v2672
        %v2692 = vsel %vm2685, %v2682, %v2674
        %v2693 = vsel %vm2685, %v2684, %v2676
        %s2694 = scalar_lea.vmem %s8, 16
        %v2695 = vld [vmem:[%s2694] ss:$8 sm:$0x3]
        %v2697 = vlaneseq
        %v2698 = vshrl.u32 %v2697, 7
        %v2699 = vsub.s32 0, %v2698
        %v2700 = vrot.slane %v2695, %v2699
        %v2701 = vlaneseq
        %v2702 = vshrl.u32 %v2701, 7
        %v2703 = vsub.s32 1, %v2702
        %v2704 = vrot.slane %v2695, %v2703
        %v2707 = vmul.f32 %v2686, %v2700
        %v2708 = vmul.f32 %v2690, %v2704
        %v2709 = vmul.f32 %v2687, %v2700
        %v2710 = vmul.f32 %v2691, %v2704
        %v2711 = vmul.f32 %v2688, %v2700
        %v2712 = vmul.f32 %v2692, %v2704
        %v2713 = vmul.f32 %v2689, %v2700
        %v2714 = vmul.f32 %v2693, %v2704
        %v2715 = vld [vmem:[%s6] sm:$0xff]
        %v2716 = vld [vmem:[%s6 + $0x8] sm:$0xff]
        %v2717 = vld [vmem:[%s6 + $0x10] sm:$0xff]
        %v2718 = vld [vmem:[%s6 + $0x18] sm:$0xff]
        %v2719 = vld [vmem:[%s6 + $0x20] sm:$0xff]
        %v2720 = vld [vmem:[%s6 + $0x28] sm:$0xff]
        %v2721 = vld [vmem:[%s6 + $0x30] sm:$0xff]
        %v2722 = vld [vmem:[%s6 + $0x38] sm:$0xff]
        %v2723 = vld [vmem:[%s6 + $0x40] sm:$0xff]
        %v2724 = vld [vmem:[%s6 + $0x48] sm:$0xff]
        %v2725 = vld [vmem:[%s6 + $0x50] sm:$0xff]
        %v2726 = vld [vmem:[%s6 + $0x58] sm:$0xff]
        %2727 = vset.pattern.permute.xlu0 7
        %2728 = vperm.xlu0 %2727, %v427
        %v2729 = vpop.permute.xlu0 %2728
        %2731 = vset.pattern.permute.xlu0 7
        %2732 = vperm.xlu0 %2731, %v428
        %v2733 = vpop.permute.xlu0 %2732
        %2735 = vset.pattern.permute.xlu0 7
        %2736 = vperm.xlu0 %2735, %v429
        %v2737 = vpop.permute.xlu0 %2736
        %2739 = vset.pattern.permute.xlu0 7
        %2740 = vperm.xlu0 %2739, %v430
        %v2741 = vpop.permute.xlu0 %2740
        %v2744 = vsel %vm731, %v2717, 0
        %v2747 = vsel %vm731, %v2720, 0
        %v2750 = vsel %vm731, %v2723, 0
        %v2753 = vsel %vm731, %v2726, 0
        %2755 = vmatprep.subr.mxu0 %v2388
        %2756 = vmatpush1.msra.mxu0 %v2387
        %2757 = vmatprep.subr.mxu0 %v2390
        %2758 = vmatpush1.msra.mxu0 %v2389
        %2759 = vmatprep.subr.mxu0 %v2392
        %2760 = vmatpush1.msra.mxu0 %v2391
        %2761 = vmatprep.subr.mxu0 %v2394
        %2762 = vmatpush1.msra.mxu0 %v2393
        %2763 = vmatprep.subr.mxu0 %v2434
        %2764 = vmatpush1.msra.mxu0 %v2433
        %2765 = vmatprep.subr.mxu0 %v2436
        %2766 = vmatpush1.msra.mxu0 %v2435
        %2767 = vmatprep.subr.mxu0 %v2438
        %2768 = vmatpush1.msra.mxu0 %v2437
        %2769 = vmatprep.subr.mxu0 %v2440
        %2770 = vmatpush1.msra.mxu0 %v2439
        %2771 = vmatprep.subr.mxu0 %v2480
        %2772 = vmatpush1.msra.mxu0 %v2479
        %2773 = vmatprep.subr.mxu0 %v2482
        %2774 = vmatpush1.msra.mxu0 %v2481
        %2775 = vmatprep.subr.mxu0 %v2484
        %2776 = vmatpush1.msra.mxu0 %v2483
        %2777 = vmatprep.subr.mxu0 %v2486
        %2778 = vmatpush1.msra.mxu0 %v2485
        %2779 = vmatprep.subr.mxu0 %v2526
        %2780 = vmatpush1.msra.mxu0 %v2525
        %2781 = vmatprep.subr.mxu0 %v2528
        %2782 = vmatpush1.msra.mxu0 %v2527
        %2783 = vmatprep.subr.mxu0 %v2530
        %2784 = vmatpush1.msra.mxu0 %v2529
        %2785 = vmatprep.subr.mxu0 %v2532
        %2786 = vmatpush1.msra.mxu0 %v2531
        %2787 = vmatprep.subr.mxu0 %v2330
        %2788 = vmatpush1.msra.mxu0 %v2328
        %2789 = vmatprep.subr.mxu0 %v2336
        %2790 = vmatpush1.msra.mxu0 %v2334
        %2791 = vmatprep.subr.mxu0 %v2342
        %2792 = vmatpush1.msra.mxu0 %v2340
        %2793 = vmatprep.subr.mxu0 %v2348
        %2794 = vmatpush1.msra.mxu0 %v2346
        %2795 = vmatprep.subr.mxu0 %v2571
        %2796 = vmatpush1.msra.mxu0 %v2570
        %2797 = vmatprep.subr.mxu0 %v2573
        %2798 = vmatpush1.msra.mxu0 %v2572
        %2799 = vmatprep.subr.mxu0 %v2575
        %2800 = vmatpush1.msra.mxu0 %v2574
        %2801 = vmatprep.subr.mxu0 %v2577
        %2802 = vmatpush1.msra.mxu0 %v2576
        %2803 = vmatprep.subr.mxu0 %v2617
        %2804 = vmatpush1.msra.mxu0 %v2616
        %2805 = vmatprep.subr.mxu0 %v2619
        %2806 = vmatpush1.msra.mxu0 %v2618
        %2807 = vmatprep.subr.mxu0 %v2621
        %2808 = vmatpush1.msra.mxu0 %v2620
        %2809 = vmatprep.subr.mxu0 %v2623
        %2810 = vmatpush1.msra.mxu0 %v2622
        %2811 = vmatprep.subr.mxu0 %v2662
        %2812 = vmatpush1.msra.mxu0 %v2661
        %2813 = vmatprep.subr.mxu0 %v2664
        %2814 = vmatpush1.msra.mxu0 %v2663
        %2815 = vmatprep.subr.mxu0 %v2666
        %2816 = vmatpush1.msra.mxu0 %v2665
        %2817 = vmatprep.subr.mxu0 %v2668
        %2818 = vmatpush1.msra.mxu0 %v2667
        %2819 = vmatprep.mubr.f32.mxu0 %v2716
        %2820 = vmatmul.mubr.f32.gmra.mrb[0].mxu0 %v2715
        %v2821 = vpop.f32.mrb[0].mxu0
        %v2822 = vadd.f32 %v2729, %v2821
        %v2823 = vpop.f32.mrb[0].mxu0
        %v2824 = vadd.f32 %v2729, %v2823
        %2825 = vmatprep.mubr.f32.mxu0 %v2719
        %2826 = vmatmul.mubr.f32.gmra.mrb[0].mxu0 %v2718
        %v2827 = vpop.f32.mrb[0].mxu0
        %v2828 = vadd.f32 %v2733, %v2827
        %v2829 = vpop.f32.mrb[0].mxu0
        %v2830 = vadd.f32 %v2733, %v2829
        %2831 = vmatprep.mubr.f32.mxu0 %v2722
        %2832 = vmatmul.mubr.f32.gmra.mrb[0].mxu0 %v2721
        %v2833 = vpop.f32.mrb[0].mxu0
        %v2834 = vadd.f32 %v2737, %v2833
        %v2835 = vpop.f32.mrb[0].mxu0
        %v2836 = vadd.f32 %v2737, %v2835
        %2837 = vmatprep.mubr.f32.mxu0 %v2725
        %2838 = vmatmul.mubr.f32.gmra.mrb[0].mxu0 %v2724
        %v2839 = vpop.f32.mrb[0].mxu0
        %v2840 = vadd.f32 %v2741, %v2839
        %v2841 = vpop.f32.mrb[0].mxu0
        %v2842 = vadd.f32 %v2741, %v2841
        %2843 = vdwg.mxu0
        %2844 = vmatprep.subr.mxu0 %v2708
        %2845 = vmatpush1.msra.mxu0 %v2707
        %2846 = vmatprep.subr.mxu0 %v2710
        %2847 = vmatpush1.msra.mxu0 %v2709
        %2848 = vmatprep.subr.mxu0 %v2712
        %2849 = vmatpush1.msra.mxu0 %v2711
        %2850 = vmatprep.subr.mxu0 %v2714
        %2851 = vmatpush1.msra.mxu0 %v2713
        %2852 = vmatprep.subr.mxu0 0.0
        %2853 = vmatpush1.msra.mxu0 0.0
        %2854 = vmatprep.subr.mxu0 0.0
        %2855 = vmatpush1.msra.mxu0 0.0
        %2856 = vmatprep.subr.mxu0 0.0
        %2857 = vmatpush1.msra.mxu0 0.0
        %2858 = vmatprep.subr.mxu0 0.0
        %2859 = vmatpush1.msra.mxu0 0.0
        %2860 = vmatprep.subr.mxu0 0.0
        %2861 = vmatpush1.msra.mxu0 0.0
        %2862 = vmatprep.subr.mxu0 0.0
        %2863 = vmatpush1.msra.mxu0 0.0
        %2864 = vmatprep.subr.mxu0 0.0
        %2865 = vmatpush1.msra.mxu0 0.0
        %2866 = vmatprep.subr.mxu0 0.0
        %2867 = vmatpush1.msra.mxu0 0.0
        %2868 = vmatprep.subr.mxu0 0.0
        %2869 = vmatpush1.msra.mxu0 0.0
        %2870 = vmatprep.subr.mxu0 0.0
        %2871 = vmatpush1.msra.mxu0 0.0
        %2872 = vmatprep.subr.mxu0 0.0
        %2873 = vmatpush1.msra.mxu0 0.0
        %2874 = vmatprep.subr.mxu0 0.0
        %2875 = vmatpush1.msra.mxu0 0.0
        %2876 = vmatprep.subr.mxu0 0.0
        %2877 = vmatpush1.msra.mxu0 0.0
        %2878 = vmatprep.subr.mxu0 0.0
        %2879 = vmatpush1.msra.mxu0 0.0
        %2880 = vmatprep.subr.mxu0 0.0
        %2881 = vmatpush1.msra.mxu0 0.0
        %2882 = vmatprep.subr.mxu0 0.0
        %2883 = vmatpush1.msra.mxu0 0.0
        %2884 = vmatprep.subr.mxu0 0.0
        %2885 = vmatpush1.msra.mxu0 0.0
        %2886 = vmatprep.subr.mxu0 0.0
        %2887 = vmatpush1.msra.mxu0 0.0
        %2888 = vmatprep.subr.mxu0 0.0
        %2889 = vmatpush1.msra.mxu0 0.0
        %2890 = vmatprep.subr.mxu0 0.0
        %2891 = vmatpush1.msra.mxu0 0.0
        %2892 = vmatprep.subr.mxu0 0.0
        %2893 = vmatpush1.msra.mxu0 0.0
        %2894 = vmatprep.subr.mxu0 0.0
        %2895 = vmatpush1.msra.mxu0 0.0
        %2896 = vmatprep.subr.mxu0 0.0
        %2897 = vmatpush1.msra.mxu0 0.0
        %2898 = vmatprep.subr.mxu0 0.0
        %2899 = vmatpush1.msra.mxu0 0.0
        %2900 = vmatprep.subr.mxu0 0.0
        %2901 = vmatpush1.msra.mxu0 0.0
        %2902 = vmatprep.subr.mxu0 0.0
        %2903 = vmatpush1.msra.mxu0 0.0
        %2904 = vmatprep.subr.mxu0 0.0
        %2905 = vmatpush1.msra.mxu0 0.0
        %2906 = vmatprep.subr.mxu0 0.0
        %2907 = vmatpush1.msra.mxu0 0.0
        %2908 = vmatprep.mubr.f32.mxu0 0.0
        %2909 = vmatmul.mubr.f32.gmra.mrb[0].mxu0 %v2744
        %v2910 = vpop.f32.mrb[0].mxu0
        %v2911 = vadd.f32 %v2822, %v2910
        %v2912 = vpop.f32.mrb[0].mxu0
        %v2913 = vadd.f32 %v2824, %v2912
        %2914 = vmatprep.mubr.f32.mxu0 0.0
        %2915 = vmatmul.mubr.f32.gmra.mrb[0].mxu0 %v2747
        %v2916 = vpop.f32.mrb[0].mxu0
        %v2917 = vadd.f32 %v2828, %v2916
        %v2918 = vpop.f32.mrb[0].mxu0
        %v2919 = vadd.f32 %v2830, %v2918
        %2920 = vmatprep.mubr.f32.mxu0 0.0
        %2921 = vmatmul.mubr.f32.gmra.mrb[0].mxu0 %v2750
        %v2922 = vpop.f32.mrb[0].mxu0
        %v2923 = vadd.f32 %v2834, %v2922
        %v2924 = vpop.f32.mrb[0].mxu0
        %v2925 = vadd.f32 %v2836, %v2924
        %2926 = vmatprep.mubr.f32.mxu0 0.0
        %2927 = vmatmul.mubr.f32.gmra.mrb[0].mxu0 %v2753
        %v2928 = vpop.f32.mrb[0].mxu0
        %v2929 = vadd.f32 %v2840, %v2928
        %v2930 = vpop.f32.mrb[0].mxu0
        %v2931 = vadd.f32 %v2842, %v2930
        %2932 = vdwg.mxu0
        %v2933 = vadd.f32 %v2200, %v2911
        %v2934 = vadd.f32 %v2201, %v2913
        %v2935 = vadd.f32 %v2202, %v2917
        %v2936 = vadd.f32 %v2203, %v2919
        %v2937 = vadd.f32 %v2204, %v2923
        %v2938 = vadd.f32 %v2205, %v2925
        %v2939 = vadd.f32 %v2206, %v2929
        %v2940 = vadd.f32 %v2207, %v2931
        %2941 = vrot.lane.b32.xlu0 %v2933, 17
        %v2942 = vpop.permute.xlu0 %2941
        %2943 = vrot.lane.b32.xlu0 %v2935, 17
        %v2944 = vpop.permute.xlu0 %2943
        %2945 = vrot.lane.b32.xlu0 %v2937, 17
        %v2946 = vpop.permute.xlu0 %2945
        %2947 = vrot.lane.b32.xlu0 %v2939, 17
        %v2948 = vpop.permute.xlu0 %2947
        %2949 = vrot.lane.b32.xlu0 %v2934, 17
        %v2950 = vpop.permute.xlu0 %2949
        %2951 = vrot.lane.b32.xlu0 %v2936, 17
        %v2952 = vpop.permute.xlu0 %2951
        %2953 = vrot.lane.b32.xlu0 %v2938, 17
        %v2954 = vpop.permute.xlu0 %2953
        %2955 = vrot.lane.b32.xlu0 %v2940, 17
        %v2956 = vpop.permute.xlu0 %2955
        %v2957 = vsel %vm2366, %v2942, %v2950
        %v2958 = vsel %vm2366, %v2944, %v2952
        %v2959 = vsel %vm2366, %v2946, %v2954
        %v2960 = vsel %vm2366, %v2948, %v2956
        %v2961 = vsel %vm2366, %v2950, %v2942
        %v2962 = vsel %vm2366, %v2952, %v2944
        %v2963 = vsel %vm2366, %v2954, %v2946
        %v2964 = vsel %vm2366, %v2956, %v2948
        %v2965 = vmul.f32 %v2961, %v2380
        %v2966 = vmul.f32 %v2957, %v2384
        %v2967 = vmul.f32 %v2962, %v2380
        %v2968 = vmul.f32 %v2958, %v2384
        %v2969 = vmul.f32 %v2963, %v2380
        %v2970 = vmul.f32 %v2959, %v2384
        %v2971 = vmul.f32 %v2964, %v2380
        %v2972 = vmul.f32 %v2960, %v2384
        %2973 = vrot.lane.b32.xlu0 %v2933, 16
        %v2974 = vpop.permute.xlu0 %2973
        %2975 = vrot.lane.b32.xlu0 %v2935, 16
        %v2976 = vpop.permute.xlu0 %2975
        %2977 = vrot.lane.b32.xlu0 %v2937, 16
        %v2978 = vpop.permute.xlu0 %2977
        %2979 = vrot.lane.b32.xlu0 %v2939, 16
        %v2980 = vpop.permute.xlu0 %2979
        %2981 = vrot.lane.b32.xlu0 %v2934, 16
        %v2982 = vpop.permute.xlu0 %2981
        %2983 = vrot.lane.b32.xlu0 %v2936, 16
        %v2984 = vpop.permute.xlu0 %2983
        %2985 = vrot.lane.b32.xlu0 %v2938, 16
        %v2986 = vpop.permute.xlu0 %2985
        %2987 = vrot.lane.b32.xlu0 %v2940, 16
        %v2988 = vpop.permute.xlu0 %2987
        %v2989 = vsel %vm2411, %v2974, %v2982
        %v2990 = vsel %vm2411, %v2976, %v2984
        %v2991 = vsel %vm2411, %v2978, %v2986
        %v2992 = vsel %vm2411, %v2980, %v2988
        %v2993 = vsel %vm2411, %v2982, %v2974
        %v2994 = vsel %vm2411, %v2984, %v2976
        %v2995 = vsel %vm2411, %v2986, %v2978
        %v2996 = vsel %vm2411, %v2988, %v2980
        %v2997 = vmul.f32 %v2993, %v2426
        %v2998 = vmul.f32 %v2989, %v2430
        %v2999 = vmul.f32 %v2994, %v2426
        %v3000 = vmul.f32 %v2990, %v2430
        %v3001 = vmul.f32 %v2995, %v2426
        %v3002 = vmul.f32 %v2991, %v2430
        %v3003 = vmul.f32 %v2996, %v2426
        %v3004 = vmul.f32 %v2992, %v2430
        %3005 = vrot.lane.b32.xlu0 %v2933, 15
        %v3006 = vpop.permute.xlu0 %3005
        %3007 = vrot.lane.b32.xlu0 %v2935, 15
        %v3008 = vpop.permute.xlu0 %3007
        %3009 = vrot.lane.b32.xlu0 %v2937, 15
        %v3010 = vpop.permute.xlu0 %3009
        %3011 = vrot.lane.b32.xlu0 %v2939, 15
        %v3012 = vpop.permute.xlu0 %3011
        %3013 = vrot.lane.b32.xlu0 %v2934, 15
        %v3014 = vpop.permute.xlu0 %3013
        %3015 = vrot.lane.b32.xlu0 %v2936, 15
        %v3016 = vpop.permute.xlu0 %3015
        %3017 = vrot.lane.b32.xlu0 %v2938, 15
        %v3018 = vpop.permute.xlu0 %3017
        %3019 = vrot.lane.b32.xlu0 %v2940, 15
        %v3020 = vpop.permute.xlu0 %3019
        %v3021 = vsel %vm2457, %v3006, %v3014
        %v3022 = vsel %vm2457, %v3008, %v3016
        %v3023 = vsel %vm2457, %v3010, %v3018
        %v3024 = vsel %vm2457, %v3012, %v3020
        %v3025 = vsel %vm2457, %v3014, %v3006
        %v3026 = vsel %vm2457, %v3016, %v3008
        %v3027 = vsel %vm2457, %v3018, %v3010
        %v3028 = vsel %vm2457, %v3020, %v3012
        %v3029 = vmul.f32 %v3025, %v2472
        %v3030 = vmul.f32 %v3021, %v2476
        %v3031 = vmul.f32 %v3026, %v2472
        %v3032 = vmul.f32 %v3022, %v2476
        %v3033 = vmul.f32 %v3027, %v2472
        %v3034 = vmul.f32 %v3023, %v2476
        %v3035 = vmul.f32 %v3028, %v2472
        %v3036 = vmul.f32 %v3024, %v2476
        %3037 = vrot.lane.b32.xlu0 %v2933, 1
        %v3038 = vpop.permute.xlu0 %3037
        %3039 = vrot.lane.b32.xlu0 %v2935, 1
        %v3040 = vpop.permute.xlu0 %3039
        %3041 = vrot.lane.b32.xlu0 %v2937, 1
        %v3042 = vpop.permute.xlu0 %3041
        %3043 = vrot.lane.b32.xlu0 %v2939, 1
        %v3044 = vpop.permute.xlu0 %3043
        %3045 = vrot.lane.b32.xlu0 %v2934, 1
        %v3046 = vpop.permute.xlu0 %3045
        %3047 = vrot.lane.b32.xlu0 %v2936, 1
        %v3048 = vpop.permute.xlu0 %3047
        %3049 = vrot.lane.b32.xlu0 %v2938, 1
        %v3050 = vpop.permute.xlu0 %3049
        %3051 = vrot.lane.b32.xlu0 %v2940, 1
        %v3052 = vpop.permute.xlu0 %3051
        %v3053 = vsel %vm2503, %v3038, %v3046
        %v3054 = vsel %vm2503, %v3040, %v3048
        %v3055 = vsel %vm2503, %v3042, %v3050
        %v3056 = vsel %vm2503, %v3044, %v3052
        %v3057 = vsel %vm2503, %v3046, %v3038
        %v3058 = vsel %vm2503, %v3048, %v3040
        %v3059 = vsel %vm2503, %v3050, %v3042
        %v3060 = vsel %vm2503, %v3052, %v3044
        %v3061 = vmul.f32 %v3057, %v2518
        %v3062 = vmul.f32 %v3053, %v2522
        %v3063 = vmul.f32 %v3058, %v2518
        %v3064 = vmul.f32 %v3054, %v2522
        %v3065 = vmul.f32 %v3059, %v2518
        %v3066 = vmul.f32 %v3055, %v2522
        %v3067 = vmul.f32 %v3060, %v2518
        %v3068 = vmul.f32 %v3056, %v2522
        %3069 = vrot.lane.b32.xlu0 %v2933, 127
        %v3070 = vpop.permute.xlu0 %3069
        %3071 = vrot.lane.b32.xlu0 %v2935, 127
        %v3072 = vpop.permute.xlu0 %3071
        %3073 = vrot.lane.b32.xlu0 %v2937, 127
        %v3074 = vpop.permute.xlu0 %3073
        %3075 = vrot.lane.b32.xlu0 %v2939, 127
        %v3076 = vpop.permute.xlu0 %3075
        %3077 = vrot.lane.b32.xlu0 %v2934, 127
        %v3078 = vpop.permute.xlu0 %3077
        %3079 = vrot.lane.b32.xlu0 %v2936, 127
        %v3080 = vpop.permute.xlu0 %3079
        %3081 = vrot.lane.b32.xlu0 %v2938, 127
        %v3082 = vpop.permute.xlu0 %3081
        %3083 = vrot.lane.b32.xlu0 %v2940, 127
        %v3084 = vpop.permute.xlu0 %3083
        %v3085 = vsel %vm627, %v3070, %v3078
        %v3086 = vsel %vm627, %v3072, %v3080
        %v3087 = vsel %vm627, %v3074, %v3082
        %v3088 = vsel %vm627, %v3076, %v3084
        %v3089 = vsel %vm627, %v3078, %v3070
        %v3090 = vsel %vm627, %v3080, %v3072
        %v3091 = vsel %vm627, %v3082, %v3074
        %v3092 = vsel %vm627, %v3084, %v3076
        %v3093 = vmul.f32 %v3085, %v2563
        %v3094 = vmul.f32 %v3089, %v2567
        %v3095 = vmul.f32 %v3086, %v2563
        %v3096 = vmul.f32 %v3090, %v2567
        %v3097 = vmul.f32 %v3087, %v2563
        %v3098 = vmul.f32 %v3091, %v2567
        %v3099 = vmul.f32 %v3088, %v2563
        %v3100 = vmul.f32 %v3092, %v2567
        %3101 = vrot.lane.b32.xlu0 %v2933, 113
        %v3102 = vpop.permute.xlu0 %3101
        %3103 = vrot.lane.b32.xlu0 %v2935, 113
        %v3104 = vpop.permute.xlu0 %3103
        %3105 = vrot.lane.b32.xlu0 %v2937, 113
        %v3106 = vpop.permute.xlu0 %3105
        %3107 = vrot.lane.b32.xlu0 %v2939, 113
        %v3108 = vpop.permute.xlu0 %3107
        %3109 = vrot.lane.b32.xlu0 %v2934, 113
        %v3110 = vpop.permute.xlu0 %3109
        %3111 = vrot.lane.b32.xlu0 %v2936, 113
        %v3112 = vpop.permute.xlu0 %3111
        %3113 = vrot.lane.b32.xlu0 %v2938, 113
        %v3114 = vpop.permute.xlu0 %3113
        %3115 = vrot.lane.b32.xlu0 %v2940, 113
        %v3116 = vpop.permute.xlu0 %3115
        %v3117 = vsel %vm2594, %v3102, %v3110
        %v3118 = vsel %vm2594, %v3104, %v3112
        %v3119 = vsel %vm2594, %v3106, %v3114
        %v3120 = vsel %vm2594, %v3108, %v3116
        %v3121 = vsel %vm2594, %v3110, %v3102
        %v3122 = vsel %vm2594, %v3112, %v3104
        %v3123 = vsel %vm2594, %v3114, %v3106
        %v3124 = vsel %vm2594, %v3116, %v3108
        %v3125 = vmul.f32 %v3117, %v2609
        %v3126 = vmul.f32 %v3121, %v2613
        %v3127 = vmul.f32 %v3118, %v2609
        %v3128 = vmul.f32 %v3122, %v2613
        %v3129 = vmul.f32 %v3119, %v2609
        %v3130 = vmul.f32 %v3123, %v2613
        %v3131 = vmul.f32 %v3120, %v2609
        %v3132 = vmul.f32 %v3124, %v2613
        %3133 = vrot.lane.b32.xlu0 %v2933, 112
        %v3134 = vpop.permute.xlu0 %3133
        %3135 = vrot.lane.b32.xlu0 %v2935, 112
        %v3136 = vpop.permute.xlu0 %3135
        %3137 = vrot.lane.b32.xlu0 %v2937, 112
        %v3138 = vpop.permute.xlu0 %3137
        %3139 = vrot.lane.b32.xlu0 %v2939, 112
        %v3140 = vpop.permute.xlu0 %3139
        %3141 = vrot.lane.b32.xlu0 %v2934, 112
        %v3142 = vpop.permute.xlu0 %3141
        %3143 = vrot.lane.b32.xlu0 %v2936, 112
        %v3144 = vpop.permute.xlu0 %3143
        %3145 = vrot.lane.b32.xlu0 %v2938, 112
        %v3146 = vpop.permute.xlu0 %3145
        %3147 = vrot.lane.b32.xlu0 %v2940, 112
        %v3148 = vpop.permute.xlu0 %3147
        %v3149 = vsel %vm575, %v3134, %v3142
        %v3150 = vsel %vm575, %v3136, %v3144
        %v3151 = vsel %vm575, %v3138, %v3146
        %v3152 = vsel %vm575, %v3140, %v3148
        %v3153 = vsel %vm575, %v3142, %v3134
        %v3154 = vsel %vm575, %v3144, %v3136
        %v3155 = vsel %vm575, %v3146, %v3138
        %v3156 = vsel %vm575, %v3148, %v3140
        %v3157 = vmul.f32 %v3149, %v2654
        %v3158 = vmul.f32 %v3153, %v2658
        %v3159 = vmul.f32 %v3150, %v2654
        %v3160 = vmul.f32 %v3154, %v2658
        %v3161 = vmul.f32 %v3151, %v2654
        %v3162 = vmul.f32 %v3155, %v2658
        %v3163 = vmul.f32 %v3152, %v2654
        %v3164 = vmul.f32 %v3156, %v2658
        %3165 = vrot.lane.b32.xlu0 %v2933, 111
        %v3166 = vpop.permute.xlu0 %3165
        %3167 = vrot.lane.b32.xlu0 %v2935, 111
        %v3168 = vpop.permute.xlu0 %3167
        %3169 = vrot.lane.b32.xlu0 %v2937, 111
        %v3170 = vpop.permute.xlu0 %3169
        %3171 = vrot.lane.b32.xlu0 %v2939, 111
        %v3172 = vpop.permute.xlu0 %3171
        %3173 = vrot.lane.b32.xlu0 %v2934, 111
        %v3174 = vpop.permute.xlu0 %3173
        %3175 = vrot.lane.b32.xlu0 %v2936, 111
        %v3176 = vpop.permute.xlu0 %3175
        %3177 = vrot.lane.b32.xlu0 %v2938, 111
        %v3178 = vpop.permute.xlu0 %3177
        %3179 = vrot.lane.b32.xlu0 %v2940, 111
        %v3180 = vpop.permute.xlu0 %3179
        %v3181 = vsel %vm2685, %v3166, %v3174
        %v3182 = vsel %vm2685, %v3168, %v3176
        %v3183 = vsel %vm2685, %v3170, %v3178
        %v3184 = vsel %vm2685, %v3172, %v3180
        %v3185 = vsel %vm2685, %v3174, %v3166
        %v3186 = vsel %vm2685, %v3176, %v3168
        %v3187 = vsel %vm2685, %v3178, %v3170
        %v3188 = vsel %vm2685, %v3180, %v3172
        %v3189 = vmul.f32 %v3181, %v2700
        %v3190 = vmul.f32 %v3185, %v2704
        %v3191 = vmul.f32 %v3182, %v2700
        %v3192 = vmul.f32 %v3186, %v2704
        %v3193 = vmul.f32 %v3183, %v2700
        %v3194 = vmul.f32 %v3187, %v2704
        %v3195 = vmul.f32 %v3184, %v2700
        %v3196 = vmul.f32 %v3188, %v2704
        %s3197 = scalar_lea.vmem %s6, 96
        %v3198 = vld [vmem:[%s3197] sm:$0xff]
        %v3199 = vld [vmem:[%s3197 + $0x8] sm:$0xff]
        %v3200 = vld [vmem:[%s3197 + $0x10] sm:$0xff]
        %v3201 = vld [vmem:[%s3197 + $0x18] sm:$0xff]
        %v3202 = vld [vmem:[%s3197 + $0x20] sm:$0xff]
        %v3203 = vld [vmem:[%s3197 + $0x28] sm:$0xff]
        %v3204 = vld [vmem:[%s3197 + $0x30] sm:$0xff]
        %v3205 = vld [vmem:[%s3197 + $0x38] sm:$0xff]
        %v3206 = vld [vmem:[%s3197 + $0x40] sm:$0xff]
        %v3207 = vld [vmem:[%s3197 + $0x48] sm:$0xff]
        %v3208 = vld [vmem:[%s3197 + $0x50] sm:$0xff]
        %v3209 = vld [vmem:[%s3197 + $0x58] sm:$0xff]
        %3210 = vset.pattern.permute.xlu0 8
        %3211 = vperm.xlu0 %3210, %v427
        %v3212 = vpop.permute.xlu0 %3211
        %3214 = vset.pattern.permute.xlu0 8
        %3215 = vperm.xlu0 %3214, %v428
        %v3216 = vpop.permute.xlu0 %3215
        %3218 = vset.pattern.permute.xlu0 8
        %3219 = vperm.xlu0 %3218, %v429
        %v3220 = vpop.permute.xlu0 %3219
        %3222 = vset.pattern.permute.xlu0 8
        %3223 = vperm.xlu0 %3222, %v430
        %v3224 = vpop.permute.xlu0 %3223
        %v3227 = vsel %vm731, %v3200, 0
        %v3230 = vsel %vm731, %v3203, 0
        %v3233 = vsel %vm731, %v3206, 0
        %v3236 = vsel %vm731, %v3209, 0
        %3238 = vmatprep.subr.mxu0 %v2966
        %3239 = vmatpush1.msra.mxu0 %v2965
        %3240 = vmatprep.subr.mxu0 %v2968
        %3241 = vmatpush1.msra.mxu0 %v2967
        %3242 = vmatprep.subr.mxu0 %v2970
        %3243 = vmatpush1.msra.mxu0 %v2969
        %3244 = vmatprep.subr.mxu0 %v2972
        %3245 = vmatpush1.msra.mxu0 %v2971
        %3246 = vmatprep.subr.mxu0 %v2998
        %3247 = vmatpush1.msra.mxu0 %v2997
        %3248 = vmatprep.subr.mxu0 %v3000
        %3249 = vmatpush1.msra.mxu0 %v2999
        %3250 = vmatprep.subr.mxu0 %v3002
        %3251 = vmatpush1.msra.mxu0 %v3001
        %3252 = vmatprep.subr.mxu0 %v3004
        %3253 = vmatpush1.msra.mxu0 %v3003
        %3254 = vmatprep.subr.mxu0 %v3030
        %3255 = vmatpush1.msra.mxu0 %v3029
        %3256 = vmatprep.subr.mxu0 %v3032
        %3257 = vmatpush1.msra.mxu0 %v3031
        %3258 = vmatprep.subr.mxu0 %v3034
        %3259 = vmatpush1.msra.mxu0 %v3033
        %3260 = vmatprep.subr.mxu0 %v3036
        %3261 = vmatpush1.msra.mxu0 %v3035
        %3262 = vmatprep.subr.mxu0 %v3062
        %3263 = vmatpush1.msra.mxu0 %v3061
        %3264 = vmatprep.subr.mxu0 %v3064
        %3265 = vmatpush1.msra.mxu0 %v3063
        %3266 = vmatprep.subr.mxu0 %v3066
        %3267 = vmatpush1.msra.mxu0 %v3065
        %3268 = vmatprep.subr.mxu0 %v3068
        %3269 = vmatpush1.msra.mxu0 %v3067
        %3270 = vmatprep.subr.mxu0 %v2934
        %3271 = vmatpush1.msra.mxu0 %v2933
        %3272 = vmatprep.subr.mxu0 %v2936
        %3273 = vmatpush1.msra.mxu0 %v2935
        %3274 = vmatprep.subr.mxu0 %v2938
        %3275 = vmatpush1.msra.mxu0 %v2937
        %3276 = vmatprep.subr.mxu0 %v2940
        %3277 = vmatpush1.msra.mxu0 %v2939
        %3278 = vmatprep.subr.mxu0 %v3094
        %3279 = vmatpush1.msra.mxu0 %v3093
        %3280 = vmatprep.subr.mxu0 %v3096
        %3281 = vmatpush1.msra.mxu0 %v3095
        %3282 = vmatprep.subr.mxu0 %v3098
        %3283 = vmatpush1.msra.mxu0 %v3097
        %3284 = vmatprep.subr.mxu0 %v3100
        %3285 = vmatpush1.msra.mxu0 %v3099
        %3286 = vmatprep.subr.mxu0 %v3126
        %3287 = vmatpush1.msra.mxu0 %v3125
        %3288 = vmatprep.subr.mxu0 %v3128
        %3289 = vmatpush1.msra.mxu0 %v3127
        %3290 = vmatprep.subr.mxu0 %v3130
        %3291 = vmatpush1.msra.mxu0 %v3129
        %3292 = vmatprep.subr.mxu0 %v3132
        %3293 = vmatpush1.msra.mxu0 %v3131
        %3294 = vmatprep.subr.mxu0 %v3158
        %3295 = vmatpush1.msra.mxu0 %v3157
        %3296 = vmatprep.subr.mxu0 %v3160
        %3297 = vmatpush1.msra.mxu0 %v3159
        %3298 = vmatprep.subr.mxu0 %v3162
        %3299 = vmatpush1.msra.mxu0 %v3161
        %3300 = vmatprep.subr.mxu0 %v3164
        %3301 = vmatpush1.msra.mxu0 %v3163
        %3302 = vmatprep.mubr.f32.mxu0 %v3199
        %3303 = vmatmul.mubr.f32.gmra.mrb[0].mxu0 %v3198
        %v3304 = vpop.f32.mrb[0].mxu0
        %v3305 = vadd.f32 %v3212, %v3304
        %v3306 = vpop.f32.mrb[0].mxu0
        %v3307 = vadd.f32 %v3212, %v3306
        %3308 = vmatprep.mubr.f32.mxu0 %v3202
        %3309 = vmatmul.mubr.f32.gmra.mrb[0].mxu0 %v3201
        %v3310 = vpop.f32.mrb[0].mxu0
        %v3311 = vadd.f32 %v3216, %v3310
        %v3312 = vpop.f32.mrb[0].mxu0
        %v3313 = vadd.f32 %v3216, %v3312
        %3314 = vmatprep.mubr.f32.mxu0 %v3205
        %3315 = vmatmul.mubr.f32.gmra.mrb[0].mxu0 %v3204
        %v3316 = vpop.f32.mrb[0].mxu0
        %v3317 = vadd.f32 %v3220, %v3316
        %v3318 = vpop.f32.mrb[0].mxu0
        %v3319 = vadd.f32 %v3220, %v3318
        %3320 = vmatprep.mubr.f32.mxu0 %v3208
        %3321 = vmatmul.mubr.f32.gmra.mrb[0].mxu0 %v3207
        %v3322 = vpop.f32.mrb[0].mxu0
        %v3323 = vadd.f32 %v3224, %v3322
        %v3324 = vpop.f32.mrb[0].mxu0
        %v3325 = vadd.f32 %v3224, %v3324
        %3326 = vdwg.mxu0
        %3327 = vmatprep.subr.mxu0 %v3190
        %3328 = vmatpush1.msra.mxu0 %v3189
        %3329 = vmatprep.subr.mxu0 %v3192
        %3330 = vmatpush1.msra.mxu0 %v3191
        %3331 = vmatprep.subr.mxu0 %v3194
        %3332 = vmatpush1.msra.mxu0 %v3193
        %3333 = vmatprep.subr.mxu0 %v3196
        %3334 = vmatpush1.msra.mxu0 %v3195
        %3335 = vmatprep.subr.mxu0 0.0
        %3336 = vmatpush1.msra.mxu0 0.0
        %3337 = vmatprep.subr.mxu0 0.0
        %3338 = vmatpush1.msra.mxu0 0.0
        %3339 = vmatprep.subr.mxu0 0.0
        %3340 = vmatpush1.msra.mxu0 0.0
        %3341 = vmatprep.subr.mxu0 0.0
        %3342 = vmatpush1.msra.mxu0 0.0
        %3343 = vmatprep.subr.mxu0 0.0
        %3344 = vmatpush1.msra.mxu0 0.0
        %3345 = vmatprep.subr.mxu0 0.0
        %3346 = vmatpush1.msra.mxu0 0.0
        %3347 = vmatprep.subr.mxu0 0.0
        %3348 = vmatpush1.msra.mxu0 0.0
        %3349 = vmatprep.subr.mxu0 0.0
        %3350 = vmatpush1.msra.mxu0 0.0
        %3351 = vmatprep.subr.mxu0 0.0
        %3352 = vmatpush1.msra.mxu0 0.0
        %3353 = vmatprep.subr.mxu0 0.0
        %3354 = vmatpush1.msra.mxu0 0.0
        %3355 = vmatprep.subr.mxu0 0.0
        %3356 = vmatpush1.msra.mxu0 0.0
        %3357 = vmatprep.subr.mxu0 0.0
        %3358 = vmatpush1.msra.mxu0 0.0
        %3359 = vmatprep.subr.mxu0 0.0
        %3360 = vmatpush1.msra.mxu0 0.0
        %3361 = vmatprep.subr.mxu0 0.0
        %3362 = vmatpush1.msra.mxu0 0.0
        %3363 = vmatprep.subr.mxu0 0.0
        %3364 = vmatpush1.msra.mxu0 0.0
        %3365 = vmatprep.subr.mxu0 0.0
        %3366 = vmatpush1.msra.mxu0 0.0
        %3367 = vmatprep.subr.mxu0 0.0
        %3368 = vmatpush1.msra.mxu0 0.0
        %3369 = vmatprep.subr.mxu0 0.0
        %3370 = vmatpush1.msra.mxu0 0.0
        %3371 = vmatprep.subr.mxu0 0.0
        %3372 = vmatpush1.msra.mxu0 0.0
        %3373 = vmatprep.subr.mxu0 0.0
        %3374 = vmatpush1.msra.mxu0 0.0
        %3375 = vmatprep.subr.mxu0 0.0
        %3376 = vmatpush1.msra.mxu0 0.0
        %3377 = vmatprep.subr.mxu0 0.0
        %3378 = vmatpush1.msra.mxu0 0.0
        %3379 = vmatprep.subr.mxu0 0.0
        %3380 = vmatpush1.msra.mxu0 0.0
        %3381 = vmatprep.subr.mxu0 0.0
        %3382 = vmatpush1.msra.mxu0 0.0
        %3383 = vmatprep.subr.mxu0 0.0
        %3384 = vmatpush1.msra.mxu0 0.0
        %3385 = vmatprep.subr.mxu0 0.0
        %3386 = vmatpush1.msra.mxu0 0.0
        %3387 = vmatprep.subr.mxu0 0.0
        %3388 = vmatpush1.msra.mxu0 0.0
        %3389 = vmatprep.subr.mxu0 0.0
        %3390 = vmatpush1.msra.mxu0 0.0
        %3391 = vmatprep.mubr.f32.mxu0 0.0
        %3392 = vmatmul.mubr.f32.gmra.mrb[0].mxu0 %v3227
        %v3393 = vpop.f32.mrb[0].mxu0
        %v3394 = vadd.f32 %v3305, %v3393
        %v3395 = vpop.f32.mrb[0].mxu0
        %v3396 = vadd.f32 %v3307, %v3395
        %3397 = vmatprep.mubr.f32.mxu0 0.0
        %3398 = vmatmul.mubr.f32.gmra.mrb[0].mxu0 %v3230
        %v3399 = vpop.f32.mrb[0].mxu0
        %v3400 = vadd.f32 %v3311, %v3399
        %v3401 = vpop.f32.mrb[0].mxu0
        %v3402 = vadd.f32 %v3313, %v3401
        %3403 = vmatprep.mubr.f32.mxu0 0.0
        %3404 = vmatmul.mubr.f32.gmra.mrb[0].mxu0 %v3233
        %v3405 = vpop.f32.mrb[0].mxu0
        %v3406 = vadd.f32 %v3317, %v3405
        %v3407 = vpop.f32.mrb[0].mxu0
        %v3408 = vadd.f32 %v3319, %v3407
        %3409 = vmatprep.mubr.f32.mxu0 0.0
        %3410 = vmatmul.mubr.f32.gmra.mrb[0].mxu0 %v3236
        %v3411 = vpop.f32.mrb[0].mxu0
        %v3412 = vadd.f32 %v3323, %v3411
        %v3413 = vpop.f32.mrb[0].mxu0
        %v3414 = vadd.f32 %v3325, %v3413
        %3415 = vdwg.mxu0
        %3416 = vst [vmem:[%s420] sm:$0xff] %v3394
        %3417 = vst [vmem:[%s420 + $0x8] sm:$0xff] %v3396
        %3418 = vst [vmem:[%s420 + $0x10] sm:$0xff] %v3400
        %3419 = vst [vmem:[%s420 + $0x18] sm:$0xff] %v3402
        %3420 = vst [vmem:[%s420 + $0x20] sm:$0xff] %v3406
        %3421 = vst [vmem:[%s420 + $0x28] sm:$0xff] %v3408
        %3422 = vst [vmem:[%s420 + $0x30] sm:$0xff] %v3412
        %3423 = vst [vmem:[%s420 + $0x38] sm:$0xff] %v3414
        %p3424 = scmp.lt.s32.totalorder %s23, 1
        %s3425 = scalar_select %p3424, %s23, 1
        %s3426 = smul.addr %s3425, 8
        %s3427 = smul.addr %s3426, 8
        %s3428 = scalar_lea.vmem %s11, %s3427
        // Predicated region
        $region69: #{sa_embed_forward.1} parent=63 // pred_check
          %p3429 = pneg %p282
        $region70: #{sa_embed_forward.1} parent=63 // pred_check_branch
          %3431 = sbr.rel (%p3429) target = $region72
        $region71: #{sa_embed_forward.1} parent=63 // pred_region
          _
        $region72: #{sa_embed_forward.1} parent=63 // pred_fallthru
          _
      $region64: #{sa_embed_forward.1} parent=5 // pred_fallthru
        _
      %p3432 = scmp.le.s32.totalorder 2, %s18
      // Predicated region
      $region73: #{sa_embed_forward.1} parent=5 // pred_check
        %p3433 = pneg %p3432
      $region74: #{sa_embed_forward.1} parent=5 // pred_check_branch
        %3435 = sbr.rel (%p3433) target = $region76
      $region75: #{sa_embed_forward.1} parent=5 // pred_region
        %s3436 = ssub.s32 %s18, 2
        // Predicated region
        $region77: #{sa_embed_forward.1} parent=75 // pred_check
          %p3437 = pneg %p288
        $region78: #{sa_embed_forward.1} parent=75 // pred_check_branch
          %3439 = sbr.rel (%p3437) target = $region80
        $region79: #{sa_embed_forward.1} parent=75 // pred_region
          %p3440 = scmp.lt.s32.totalorder %s24, 1
          %s3441 = scalar_select %p3440, %s24, 1
          %s3442 = smul.addr %s3441, 8
          %s3443 = smul.addr %s3442, 8
          %s3444 = scalar_lea.vmem %s11, %s3443
        $region80: #{sa_embed_forward.1} parent=75 // pred_fallthru
          _
      $region76: #{sa_embed_forward.1} parent=5 // pred_fallthru
        _
    $region6: #{sa_embed_forward.1} parent=1 // loop_footer
      %s22 = sadd.s32 1, %s18
    $region7: #{sa_embed_forward.1} parent=1 // loop_footer_branch
      %17 = sbr.rel target = $region3
    $region8: #{sa_embed_forward.1} parent=1 // loop_exit
      _
    %3445 = vsyncpa [#allocation3], 1
    %s3446 = scalar_lea.sflag [#allocation3], 1
    %3447 = vsyncpa %s3446, 1

</llo_original>
